<compile_context>
chip_gen: v6e
topology: v6e:2x2x1
jax: 0.10.0
libtpu: 0.0.40
codegen_flags: <defaults>
</compile_context>

<pallas_src>
import math

import jax
import jax.numpy as jnp
from jax.experimental import pallas as pl
from jax.experimental.pallas import tpu as pltpu

# ----------------------------- model hyperparams -----------------------------
B = 2            # graphs in batch
N = 8            # nodes per graph (tokens)
NODE_FEAT_DIM = 4
NUM_RPES = 3     # cfg.posenc_RPE.num_rpes
EMBED_DIM = 32   # cfg.rpe_transformer.embed_dim == cfg.gnn.dim_inner
NUM_HEADS = 4
HEAD_DIM = EMBED_DIM // NUM_HEADS
DIST_HIDDEN = 16  # cfg.rpe_transformer.distance_encoder_hidden_dim
FFN_DIM = 2 * EMBED_DIM
NUM_LAYERS = 2
DIM_OUT = 3
LN_EPS = 1e-5
ATTN_SCALE = 1.0 / math.sqrt(HEAD_DIM)


# ------------------------------ Pallas kernel --------------------------------
def _fused_forward_kernel(nf_ref, rpe_ref, enc_w_ref, enc_b_ref,
                          rpe_w1_ref, rpe_b1_ref, rpe_w2_ref, rpe_b2_ref,
                          ln1g_ref, ln1b_ref, wqkv_ref, bqkv_ref,
                          wo_ref, bo_ref, ln2g_ref, ln2b_ref,
                          w1_ref, b1_ref, w2_ref, b2_ref,
                          hw_ref, hb_ref, out_ref):
    """Whole RPETransformer forward for ONE batch element (grid axis = batch).

    nf_ref  : [N, NODE_FEAT_DIM] node features of this graph
    rpe_ref : [1, N, N*R] relative positional encodings of this graph
    per-layer weights carry a leading NUM_LAYERS dim; the layer loop and the
    head loop are unrolled at trace time.
    """

    def ln(x, g, b):
        mu = jnp.mean(x, axis=-1, keepdims=True)
        var = jnp.mean((x - mu) ** 2, axis=-1, keepdims=True)
        return (x - mu) * jax.lax.rsqrt(var + LN_EPS) * g + b

    # ---- fused add+mult RPE bias encoders (shared by all layers) ----
    # bias_w[i, h*N + j]: heads 0..H-1 additive bias, heads H..2H-1 multiplicative.
    hid = jnp.maximum(
        jnp.dot(rpe_ref[0], rpe_w1_ref[...], preferred_element_type=jnp.float32)
        + rpe_b1_ref[...], 0.0)                                      # [N, N*2DH]
    bias_w = (jnp.dot(hid, rpe_w2_ref[...], preferred_element_type=jnp.float32)
              + rpe_b2_ref[...])                                     # [N, 2H*N]

    # ---- FeatureEncoder: [N, F] @ [F, E] + [1, E] ----
    x = (jnp.dot(nf_ref[...], enc_w_ref[...], preferred_element_type=jnp.float32)
         + enc_b_ref[...])                                           # [N, E]

    for l in range(NUM_LAYERS):                                      # unrolled
        # --- attention block (pre-LN) ---
        hn = ln(x, ln1g_ref[l], ln1b_ref[l])
        qkv = (jnp.dot(hn, wqkv_ref[l], preferred_element_type=jnp.float32)
               + bqkv_ref[l])                                        # [N, 3E]
        wo_l = wo_ref[l]                                             # [E, E]
        attn = bo_ref[l]                                             # [1, E]
        for h in range(NUM_HEADS):                                   # unrolled
            q = qkv[:, h * HEAD_DIM:(h + 1) * HEAD_DIM]
            k = qkv[:, EMBED_DIM + h * HEAD_DIM:EMBED_DIM + (h + 1) * HEAD_DIM]
            v = qkv[:, 2 * EMBED_DIM + h * HEAD_DIM:
                       2 * EMBED_DIM + (h + 1) * HEAD_DIM]
            s = jnp.dot(q, k.T, preferred_element_type=jnp.float32) * ATTN_SCALE
            add_b = bias_w[:, h * N:(h + 1) * N]
            mult_b = bias_w[:, (NUM_HEADS + h) * N:(NUM_HEADS + h + 1) * N]
            s = s * mult_b + add_b
            m = jnp.max(s, axis=-1, keepdims=True)
            p = jnp.exp(s - m)
            p = p * pl.reciprocal(jnp.sum(p, axis=-1, keepdims=True), approx=True)
            o_h = jnp.dot(p, v, preferred_element_type=jnp.float32)  # [N, d]
            # fold the merged-head out-projection per head: sum_h o_h @ Wo[h]
            attn = attn + jnp.dot(o_h, wo_l[h * HEAD_DIM:(h + 1) * HEAD_DIM, :],
                                  preferred_element_type=jnp.float32)
        x = x + attn

        # --- feed-forward block (pre-LN) ---
        hn2 = ln(x, ln2g_ref[l], ln2b_ref[l])
        ff = jnp.dot(hn2, w1_ref[l], preferred_element_type=jnp.float32) + b1_ref[l]
        ff = jax.nn.gelu(ff, approximate=True)
        x = x + jnp.dot(ff, w2_ref[l], preferred_element_type=jnp.float32) + b2_ref[l]

    # GNNHead: node-level linear
    out = jnp.dot(x, hw_ref[...], preferred_element_type=jnp.float32) + hb_ref[...]
    out_ref[...] = out.astype(out_ref.dtype)


# ------------------------------- forward wrapper ------------------------------
def rpe_transformer_forward(node_feat, rpe, kp):
    """node_feat: [B, N, F]; rpe: [B, N, N, R] -> [B, N, DIM_OUT]."""
    b, n, _ = node_feat.shape
    L, E, H = NUM_LAYERS, EMBED_DIM, NUM_HEADS

    nf_flat = node_feat.reshape(b * n, NODE_FEAT_DIM)
    rpe_wide = rpe.reshape(b, n, n * NUM_RPES)          # free reshape, no transpose

    def full(shape):
        return pl.BlockSpec(shape, lambda i, _r=len(shape): (0,) * _r)

    out = pl.pallas_call(
        _fused_forward_kernel,
        out_shape=jax.ShapeDtypeStruct((b * n, DIM_OUT), jnp.float32),
        grid=(b,),
        in_specs=[
            pl.BlockSpec((n, NODE_FEAT_DIM), lambda i: (i, 0)),          # node feats
            pl.BlockSpec((1, n, n * NUM_RPES), lambda i: (i, 0, 0)),     # RPEs
            full((NODE_FEAT_DIM, E)), full((1, E)),                      # encoder
            full((n * NUM_RPES, n * 2 * DIST_HIDDEN)),                   # rpe W1_big
            full((1, n * 2 * DIST_HIDDEN)),                              # rpe b1
            full((n * 2 * DIST_HIDDEN, 2 * H * n)),                      # rpe W2_perm
            full((1, 2 * H * n)),                                        # rpe b2
            full((L, 1, E)), full((L, 1, E)),                            # ln1 g/b
            full((L, E, 3 * E)), full((L, 1, 3 * E)),                    # fused qkv
            full((L, E, E)), full((L, 1, E)),                            # out proj
            full((L, 1, E)), full((L, 1, E)),                            # ln2 g/b
            full((L, E, FFN_DIM)), full((L, 1, FFN_DIM)),                # ffn w1/b1
            full((L, FFN_DIM, E)), full((L, 1, E)),                      # ffn w2/b2
            full((E, DIM_OUT)), full((1, DIM_OUT)),                      # gnn head
        ],
        out_specs=pl.BlockSpec((n, DIM_OUT), lambda i: (i, 0)),
        compiler_params=pltpu.CompilerParams(
            dimension_semantics=("parallel",)),  # v7x: one graph per TensorCore
    )(nf_flat, rpe_wide, kp["enc_w"], kp["enc_b"],
      kp["rpe_w1"], kp["rpe_b1"], kp["rpe_w2"], kp["rpe_b2"],
      kp["ln1_g"], kp["ln1_b"], kp["wqkv"], kp["bqkv"],
      kp["wo"], kp["bo"], kp["ln2_g"], kp["ln2_b"],
      kp["w1"], kp["b1"], kp["w2"], kp["b2"],
      kp["head_w"], kp["head_b"])
    return out.reshape(b, n, DIM_OUT)


# ---------------------------- parameter construction --------------------------
def _w(key, shape, scale=0.02):
    return scale * jax.random.normal(key, shape, dtype=jnp.float32)


def init_params(key):
    keys = iter(jax.random.split(key, 64))
    params = {
        "enc_w": _w(next(keys), (NODE_FEAT_DIM, EMBED_DIM)),
        "enc_b": jnp.zeros((EMBED_DIM,), jnp.float32),
        "add_enc": {
            "w1": _w(next(keys), (NUM_RPES, DIST_HIDDEN)),
            "b1": jnp.zeros((DIST_HIDDEN,), jnp.float32),
            "w2": _w(next(keys), (DIST_HIDDEN, NUM_HEADS)),
            "b2": jnp.zeros((NUM_HEADS,), jnp.float32),
        },
        "mult_enc": {
            "w1": _w(next(keys), (NUM_RPES, DIST_HIDDEN)),
            "b1": jnp.zeros((DIST_HIDDEN,), jnp.float32),
            "w2": _w(next(keys), (DIST_HIDDEN, NUM_HEADS)),
            "b2": jnp.ones((NUM_HEADS,), jnp.float32),   # mult bias ~ identity
        },
        "head_w": _w(next(keys), (EMBED_DIM, DIM_OUT)),
        "head_b": jnp.zeros((DIM_OUT,), jnp.float32),
        "layers": [],
    }
    for _ in range(NUM_LAYERS):
        lp = {
            "ln1_g": jnp.ones((EMBED_DIM,), jnp.float32),
            "ln1_b": jnp.zeros((EMBED_DIM,), jnp.float32),
            "wq": _w(next(keys), (EMBED_DIM, EMBED_DIM)),
            "bq": jnp.zeros((EMBED_DIM,), jnp.float32),
            "wk": _w(next(keys), (EMBED_DIM, EMBED_DIM)),
            "bk": jnp.zeros((EMBED_DIM,), jnp.float32),
            "wv": _w(next(keys), (EMBED_DIM, EMBED_DIM)),
            "bv": jnp.zeros((EMBED_DIM,), jnp.float32),
            "wo": _w(next(keys), (EMBED_DIM, EMBED_DIM)),
            "bo": jnp.zeros((EMBED_DIM,), jnp.float32),
            "ln2_g": jnp.ones((EMBED_DIM,), jnp.float32),
            "ln2_b": jnp.zeros((EMBED_DIM,), jnp.float32),
            "w1": _w(next(keys), (EMBED_DIM, FFN_DIM)),
            "b1": jnp.zeros((FFN_DIM,), jnp.float32),
            "w2": _w(next(keys), (FFN_DIM, EMBED_DIM)),
            "b2": jnp.zeros((EMBED_DIM,), jnp.float32),
        }
        params["layers"].append(lp)
    return params


def pack_params(p):
    """Pack per-layer / per-encoder params into kernel-friendly fused tensors."""
    L = NUM_LAYERS
    layers = p["layers"]

    def stack(name):
        return jnp.stack([lp[name] for lp in layers], axis=0)

    # fused add+mult RPE encoder: lane-concat hidden layer, block-diag output
    w1_cat = jnp.concatenate([p["add_enc"]["w1"], p["mult_enc"]["w1"]], axis=1)  # [R,2DH]
    b1_cat = jnp.concatenate([p["add_enc"]["b1"], p["mult_enc"]["b1"]])          # [2DH]
    zero = jnp.zeros_like(p["add_enc"]["w2"])
    w2_bd = jnp.concatenate(
        [jnp.concatenate([p["add_enc"]["w2"], zero], axis=1),
         jnp.concatenate([zero, p["mult_enc"]["w2"]], axis=1)], axis=0)          # [2DH,2H]
    b2_cat = jnp.concatenate([p["add_enc"]["b2"], p["mult_enc"]["b2"]])          # [2H]

    # Expand over the N key positions so the whole RPE MLP is two plain matmuls
    # and each head's [N, N] bias is a static, tile-aligned lane slice in-kernel:
    #   W1_big[j*R + r, j'*2DH + k]   = delta(j, j') * w1_cat[r, k]
    #   W2_perm[j*2DH + k, h*N + j']  = delta(j, j') * w2_bd[k, h]
    eye = jnp.eye(N, dtype=jnp.float32)
    w1_big = (eye[:, None, :, None] * w1_cat[None, :, None, :]).reshape(
        N * NUM_RPES, N * 2 * DIST_HIDDEN)
    b1_big = jnp.tile(b1_cat, N).reshape(1, N * 2 * DIST_HIDDEN)
    w2_perm = (w2_bd[None, :, :, None] * eye[:, None, None, :]).reshape(
        N * 2 * DIST_HIDDEN, 2 * NUM_HEADS * N)
    b2_perm = jnp.repeat(b2_cat, N).reshape(1, 2 * NUM_HEADS * N)

    return {
        "enc_w": p["enc_w"],
        "enc_b": p["enc_b"].reshape(1, EMBED_DIM),
        "rpe_w1": w1_big,
        "rpe_b1": b1_big,
        "rpe_w2": w2_perm,
        "rpe_b2": b2_perm,
        "ln1_g": stack("ln1_g").reshape(L, 1, EMBED_DIM),
        "ln1_b": stack("ln1_b").reshape(L, 1, EMBED_DIM),
        # fused QKV projection
        "wqkv": jnp.stack([jnp.concatenate([lp["wq"], lp["wk"], lp["wv"]], axis=1)
                           for lp in layers], axis=0),
        "bqkv": jnp.stack([jnp.concatenate([lp["bq"], lp["bk"], lp["bv"]])
                           for lp in layers], axis=0).reshape(L, 1, 3 * EMBED_DIM),
        "wo": stack("wo"),
        "bo": stack("bo").reshape(L, 1, EMBED_DIM),
        "ln2_g": stack("ln2_g").reshape(L, 1, EMBED_DIM),
        "ln2_b": stack("ln2_b").reshape(L, 1, EMBED_DIM),
        "w1": stack("w1"),
        "b1": stack("b1").reshape(L, 1, FFN_DIM),
        "w2": stack("w2"),
        "b2": stack("b2").reshape(L, 1, EMBED_DIM),
        "head_w": p["head_w"],
        "head_b": p["head_b"].reshape(1, DIM_OUT),
    }


# ------------------------------ pure-JAX reference -----------------------------
def reference_forward(node_feat, rpe, p):
    """Reference built directly from the RAW (unpacked) parameters."""
    b, n, _ = node_feat.shape
    rf = rpe.reshape(b * n * n, NUM_RPES)

    def enc(ep):
        hid = jnp.maximum(rf @ ep["w1"] + ep["b1"], 0.0)
        bias = hid @ ep["w2"] + ep["b2"]
        return bias.reshape(b, n, n, NUM_HEADS).transpose(0, 3, 1, 2)

    add_b, mult_b = enc(p["add_enc"]), enc(p["mult_enc"])

    def ln(v, g, bb):
        mu = v.mean(-1, keepdims=True)
        var = ((v - mu) ** 2).mean(-1, keepdims=True)
        return (v - mu) * jax.lax.rsqrt(var + LN_EPS) * g + bb

    h = node_feat @ p["enc_w"] + p["enc_b"]                     # [b, n, E]
    for lp in p["layers"]:
        hn = ln(h, lp["ln1_g"], lp["ln1_b"])
        q = hn @ lp["wq"] + lp["bq"]
        k = hn @ lp["wk"] + lp["bk"]
        v = hn @ lp["wv"] + lp["bv"]

        def split(t):
            return t.reshape(b, n, NUM_HEADS, HEAD_DIM).transpose(0, 2, 1, 3)

        qh, kh, vh = split(q), split(k), split(v)
        s = jnp.einsum("bhqd,bhkd->bhqk", qh, kh) * ATTN_SCALE
        s = s * mult_b + add_b
        pattn = jax.nn.softmax(s, axis=-1)
        o = jnp.einsum("bhqk,bhkd->bhqd", pattn, vh)
        o = o.transpose(0, 2, 1, 3).reshape(b, n, EMBED_DIM)
        h = h + o @ lp["wo"] + lp["bo"]
        hn2 = ln(h, lp["ln2_g"], lp["ln2_b"])
        ff = jax.nn.gelu(hn2 @ lp["w1"] + lp["b1"], approximate=True)
        h = h + ff @ lp["w2"] + lp["b2"]
    return h @ p["head_w"] + p["head_b"]


# ------------------------------------ main ------------------------------------
if __name__ == "__main__":
    key = jax.random.PRNGKey(0)
    k_param, k_feat, k_rpe = jax.random.split(key, 3)

    params = init_params(k_param)
    kernel_params = pack_params(params)

    node_feat = jax.random.normal(k_feat, (B, N, NODE_FEAT_DIM), dtype=jnp.float32)
    rpe = jax.random.normal(k_rpe, (B, N, N, NUM_RPES), dtype=jnp.float32)
    rpe = 0.5 * (rpe + rpe.transpose(0, 2, 1, 3))   # symmetric relative encodings

    fwd = jax.jit(rpe_transformer_forward)
    out = fwd(node_feat, rpe, kernel_params)
    jax.block_until_ready(out)

    ref = reference_forward(node_feat, rpe, params)
    jax.block_until_ready(ref)

    assert out.shape == (B, N, DIM_OUT)
    assert jnp.all(jnp.isfinite(out))
    assert jnp.allclose(out, ref, rtol=2e-2, atol=1e-4), "mismatch vs pure-JAX ref"
    print("KERNEL_OK")
</pallas_src>

<mosaic_0001>
module attributes {stable_mosaic.version = 11 : i64} {
  func.func @_fused_forward_kernel(%arg0: i32, %arg1: memref<8x4xf32, #tpu.memory_space<vmem>>, %arg2: memref<1x8x24xf32, #tpu.memory_space<vmem>>, %arg3: memref<4x32xf32, #tpu.memory_space<vmem>>, %arg4: memref<1x32xf32, #tpu.memory_space<vmem>>, %arg5: memref<24x256xf32, #tpu.memory_space<vmem>>, %arg6: memref<1x256xf32, #tpu.memory_space<vmem>>, %arg7: memref<256x64xf32, #tpu.memory_space<vmem>>, %arg8: memref<1x64xf32, #tpu.memory_space<vmem>>, %arg9: memref<2x1x32xf32, #tpu.memory_space<vmem>>, %arg10: memref<2x1x32xf32, #tpu.memory_space<vmem>>, %arg11: memref<2x32x96xf32, #tpu.memory_space<vmem>>, %arg12: memref<2x1x96xf32, #tpu.memory_space<vmem>>, %arg13: memref<2x32x32xf32, #tpu.memory_space<vmem>>, %arg14: memref<2x1x32xf32, #tpu.memory_space<vmem>>, %arg15: memref<2x1x32xf32, #tpu.memory_space<vmem>>, %arg16: memref<2x1x32xf32, #tpu.memory_space<vmem>>, %arg17: memref<2x32x64xf32, #tpu.memory_space<vmem>>, %arg18: memref<2x1x64xf32, #tpu.memory_space<vmem>>, %arg19: memref<2x64x32xf32, #tpu.memory_space<vmem>>, %arg20: memref<2x1x32xf32, #tpu.memory_space<vmem>>, %arg21: memref<32x3xf32, #tpu.memory_space<vmem>>, %arg22: memref<1x3xf32, #tpu.memory_space<vmem>>, %arg23: memref<8x3xf32, #tpu.memory_space<vmem>>) attributes {dimension_semantics = [#tpu.dimension_semantics<parallel>], iteration_bounds = array<i64: 2>, scalar_prefetch = 0 : i64, scratch_operands = 0 : i64, tpu.core_type = #tpu.core_type<tc>, window_params = [{transform_indices = @transform_0, window_bounds = array<i64: 8, 4>}, {transform_indices = @transform_1, window_bounds = array<i64: 1, 8, 24>}, {pipeline_mode = #tpu.pipeline_mode<synchronous>, transform_indices = @transform_2, window_bounds = array<i64: 4, 32>}, {pipeline_mode = #tpu.pipeline_mode<synchronous>, transform_indices = @transform_3, window_bounds = array<i64: 1, 32>}, {pipeline_mode = #tpu.pipeline_mode<synchronous>, transform_indices = @transform_4, window_bounds = array<i64: 24, 256>}, {pipeline_mode = #tpu.pipeline_mode<synchronous>, transform_indices = @transform_5, window_bounds = array<i64: 1, 256>}, {pipeline_mode = #tpu.pipeline_mode<synchronous>, transform_indices = @transform_6, window_bounds = array<i64: 256, 64>}, {pipeline_mode = #tpu.pipeline_mode<synchronous>, transform_indices = @transform_7, window_bounds = array<i64: 1, 64>}, {pipeline_mode = #tpu.pipeline_mode<synchronous>, transform_indices = @transform_8, window_bounds = array<i64: 2, 1, 32>}, {pipeline_mode = #tpu.pipeline_mode<synchronous>, transform_indices = @transform_9, window_bounds = array<i64: 2, 1, 32>}, {pipeline_mode = #tpu.pipeline_mode<synchronous>, transform_indices = @transform_10, window_bounds = array<i64: 2, 32, 96>}, {pipeline_mode = #tpu.pipeline_mode<synchronous>, transform_indices = @transform_11, window_bounds = array<i64: 2, 1, 96>}, {pipeline_mode = #tpu.pipeline_mode<synchronous>, transform_indices = @transform_12, window_bounds = array<i64: 2, 32, 32>}, {pipeline_mode = #tpu.pipeline_mode<synchronous>, transform_indices = @transform_13, window_bounds = array<i64: 2, 1, 32>}, {pipeline_mode = #tpu.pipeline_mode<synchronous>, transform_indices = @transform_14, window_bounds = array<i64: 2, 1, 32>}, {pipeline_mode = #tpu.pipeline_mode<synchronous>, transform_indices = @transform_15, window_bounds = array<i64: 2, 1, 32>}, {pipeline_mode = #tpu.pipeline_mode<synchronous>, transform_indices = @transform_16, window_bounds = array<i64: 2, 32, 64>}, {pipeline_mode = #tpu.pipeline_mode<synchronous>, transform_indices = @transform_17, window_bounds = array<i64: 2, 1, 64>}, {pipeline_mode = #tpu.pipeline_mode<synchronous>, transform_indices = @transform_18, window_bounds = array<i64: 2, 64, 32>}, {pipeline_mode = #tpu.pipeline_mode<synchronous>, transform_indices = @transform_19, window_bounds = array<i64: 2, 1, 32>}, {pipeline_mode = #tpu.pipeline_mode<synchronous>, transform_indices = @transform_20, window_bounds = array<i64: 32, 3>}, {pipeline_mode = #tpu.pipeline_mode<synchronous>, transform_indices = @transform_21, window_bounds = array<i64: 1, 3>}, {transform_indices = @transform_22, window_bounds = array<i64: 8, 3>}]} {
    %c0 = arith.constant 0 : index
    %c0_0 = arith.constant 0 : index
    %c0_1 = arith.constant 0 : index
    %0 = vector.load %arg2[%c0, %c0_0, %c0_1] : memref<1x8x24xf32, #tpu.memory_space<vmem>>, vector<1x8x24xf32>
    %1 = vector.shape_cast %0 : vector<1x8x24xf32> to vector<8x24xf32>
    %c0_2 = arith.constant 0 : index
    %c0_3 = arith.constant 0 : index
    %2 = vector.load %arg5[%c0_2, %c0_3] : memref<24x256xf32, #tpu.memory_space<vmem>>, vector<24x256xf32>
    %cst = arith.constant dense<0.000000e+00> : vector<8x256xf32>
    %3 = tpu.matmul %1, %2, %cst {dimension_numbers = #tpu.dot_dimension_numbers<[1], [0], [0], [1], [0, 0, 1, 1], [], []>} : vector<8x24xf32>, vector<24x256xf32>, vector<8x256xf32> -> vector<8x256xf32>
    %c0_4 = arith.constant 0 : index
    %c0_5 = arith.constant 0 : index
    %4 = vector.load %arg6[%c0_4, %c0_5] : memref<1x256xf32, #tpu.memory_space<vmem>>, vector<1x256xf32>
    %5 = vector.broadcast %4 : vector<1x256xf32> to vector<8x256xf32>
    %6 = arith.addf %3, %5 : vector<8x256xf32>
    %cst_6 = arith.constant 0.000000e+00 : f32
    %7 = vector.broadcast %cst_6 : f32 to vector<8x256xf32>
    %8 = arith.maximumf %6, %7 : vector<8x256xf32>
    %c0_7 = arith.constant 0 : index
    %c0_8 = arith.constant 0 : index
    %9 = vector.load %arg7[%c0_7, %c0_8] : memref<256x64xf32, #tpu.memory_space<vmem>>, vector<256x64xf32>
    %cst_9 = arith.constant dense<0.000000e+00> : vector<8x64xf32>
    %10 = tpu.matmul %8, %9, %cst_9 {dimension_numbers = #tpu.dot_dimension_numbers<[1], [0], [0], [1], [0, 0, 1, 1], [], []>} : vector<8x256xf32>, vector<256x64xf32>, vector<8x64xf32> -> vector<8x64xf32>
    %c0_10 = arith.constant 0 : index
    %c0_11 = arith.constant 0 : index
    %11 = vector.load %arg8[%c0_10, %c0_11] : memref<1x64xf32, #tpu.memory_space<vmem>>, vector<1x64xf32>
    %12 = vector.broadcast %11 : vector<1x64xf32> to vector<8x64xf32>
    %13 = arith.addf %10, %12 : vector<8x64xf32>
    %c0_12 = arith.constant 0 : index
    %c0_13 = arith.constant 0 : index
    %14 = vector.load %arg1[%c0_12, %c0_13] : memref<8x4xf32, #tpu.memory_space<vmem>>, vector<8x4xf32>
    %c0_14 = arith.constant 0 : index
    %c0_15 = arith.constant 0 : index
    %15 = vector.load %arg3[%c0_14, %c0_15] : memref<4x32xf32, #tpu.memory_space<vmem>>, vector<4x32xf32>
    %cst_16 = arith.constant dense<0.000000e+00> : vector<8x32xf32>
    %16 = tpu.matmul %14, %15, %cst_16 {dimension_numbers = #tpu.dot_dimension_numbers<[1], [0], [0], [1], [0, 0, 1, 1], [], []>} : vector<8x4xf32>, vector<4x32xf32>, vector<8x32xf32> -> vector<8x32xf32>
    %c0_17 = arith.constant 0 : index
    %c0_18 = arith.constant 0 : index
    %17 = vector.load %arg4[%c0_17, %c0_18] : memref<1x32xf32, #tpu.memory_space<vmem>>, vector<1x32xf32>
    %18 = vector.broadcast %17 : vector<1x32xf32> to vector<8x32xf32>
    %19 = arith.addf %16, %18 : vector<8x32xf32>
    %c0_19 = arith.constant 0 : index
    %c0_20 = arith.constant 0 : index
    %c0_21 = arith.constant 0 : index
    %20 = vector.load %arg9[%c0_19, %c0_20, %c0_21] : memref<2x1x32xf32, #tpu.memory_space<vmem>>, vector<1x1x32xf32>
    %21 = vector.shape_cast %20 : vector<1x1x32xf32> to vector<1x32xf32>
    %c0_22 = arith.constant 0 : index
    %c0_23 = arith.constant 0 : index
    %c0_24 = arith.constant 0 : index
    %22 = vector.load %arg10[%c0_22, %c0_23, %c0_24] : memref<2x1x32xf32, #tpu.memory_space<vmem>>, vector<1x1x32xf32>
    %23 = vector.shape_cast %22 : vector<1x1x32xf32> to vector<1x32xf32>
    %cst_25 = arith.constant dense<0.000000e+00> : vector<8xf32>
    %24 = vector.multi_reduction <add>, %19, %cst_25 [1] : vector<8x32xf32> to vector<8xf32>
    %25 = vector.shape_cast %24 : vector<8xf32> to vector<8x1xf32>
    %cst_26 = arith.constant 3.200000e+01 : f32
    %26 = vector.broadcast %cst_26 : f32 to vector<8x1xf32>
    %27 = arith.divf %25, %26 : vector<8x1xf32>
    %28 = vector.broadcast %27 : vector<8x1xf32> to vector<8x32xf32>
    %29 = arith.subf %19, %28 : vector<8x32xf32>
    %30 = arith.mulf %29, %29 : vector<8x32xf32>
    %cst_27 = arith.constant dense<0.000000e+00> : vector<8xf32>
    %31 = vector.multi_reduction <add>, %30, %cst_27 [1] : vector<8x32xf32> to vector<8xf32>
    %32 = vector.shape_cast %31 : vector<8xf32> to vector<8x1xf32>
    %cst_28 = arith.constant 3.200000e+01 : f32
    %33 = vector.broadcast %cst_28 : f32 to vector<8x1xf32>
    %34 = arith.divf %32, %33 : vector<8x1xf32>
    %35 = vector.broadcast %27 : vector<8x1xf32> to vector<8x32xf32>
    %36 = arith.subf %19, %35 : vector<8x32xf32>
    %cst_29 = arith.constant 9.99999974E-6 : f32
    %37 = vector.broadcast %cst_29 : f32 to vector<8x1xf32>
    %38 = arith.addf %34, %37 : vector<8x1xf32>
    %39 = math.rsqrt %38 : vector<8x1xf32>
    %40 = vector.broadcast %39 : vector<8x1xf32> to vector<8x32xf32>
    %41 = arith.mulf %36, %40 : vector<8x32xf32>
    %42 = vector.broadcast %21 : vector<1x32xf32> to vector<8x32xf32>
    %43 = arith.mulf %41, %42 : vector<8x32xf32>
    %44 = vector.broadcast %23 : vector<1x32xf32> to vector<8x32xf32>
    %45 = arith.addf %43, %44 : vector<8x32xf32>
    %c0_30 = arith.constant 0 : index
    %c0_31 = arith.constant 0 : index
    %c0_32 = arith.constant 0 : index
    %46 = vector.load %arg11[%c0_30, %c0_31, %c0_32] : memref<2x32x96xf32, #tpu.memory_space<vmem>>, vector<1x32x96xf32>
    %47 = vector.shape_cast %46 : vector<1x32x96xf32> to vector<32x96xf32>
    %cst_33 = arith.constant dense<0.000000e+00> : vector<8x96xf32>
    %48 = tpu.matmul %45, %47, %cst_33 {dimension_numbers = #tpu.dot_dimension_numbers<[1], [0], [0], [1], [0, 0, 1, 1], [], []>} : vector<8x32xf32>, vector<32x96xf32>, vector<8x96xf32> -> vector<8x96xf32>
    %c0_34 = arith.constant 0 : index
    %c0_35 = arith.constant 0 : index
    %c0_36 = arith.constant 0 : index
    %49 = vector.load %arg12[%c0_34, %c0_35, %c0_36] : memref<2x1x96xf32, #tpu.memory_space<vmem>>, vector<1x1x96xf32>
    %50 = vector.shape_cast %49 : vector<1x1x96xf32> to vector<1x96xf32>
    %51 = vector.broadcast %50 : vector<1x96xf32> to vector<8x96xf32>
    %52 = arith.addf %48, %51 : vector<8x96xf32>
    %c0_37 = arith.constant 0 : index
    %c0_38 = arith.constant 0 : index
    %c0_39 = arith.constant 0 : index
    %53 = vector.load %arg13[%c0_37, %c0_38, %c0_39] : memref<2x32x32xf32, #tpu.memory_space<vmem>>, vector<1x32x32xf32>
    %54 = vector.shape_cast %53 : vector<1x32x32xf32> to vector<32x32xf32>
    %c0_40 = arith.constant 0 : index
    %c0_41 = arith.constant 0 : index
    %c0_42 = arith.constant 0 : index
    %55 = vector.load %arg14[%c0_40, %c0_41, %c0_42] : memref<2x1x32xf32, #tpu.memory_space<vmem>>, vector<1x1x32xf32>
    %56 = vector.shape_cast %55 : vector<1x1x32xf32> to vector<1x32xf32>
    %57 = vector.extract_strided_slice %52 {offsets = [0, 0], sizes = [8, 8], strides = [1, 1]} : vector<8x96xf32> to vector<8x8xf32>
    %58 = vector.extract_strided_slice %52 {offsets = [0, 32], sizes = [8, 8], strides = [1, 1]} : vector<8x96xf32> to vector<8x8xf32>
    %59 = vector.extract_strided_slice %52 {offsets = [0, 64], sizes = [8, 8], strides = [1, 1]} : vector<8x96xf32> to vector<8x8xf32>
    %60 = tpu.transpose %58, [1, 0] : vector<8x8xf32> -> vector<8x8xf32>
    %cst_43 = arith.constant dense<0.000000e+00> : vector<8x8xf32>
    %61 = tpu.matmul %57, %60, %cst_43 {dimension_numbers = #tpu.dot_dimension_numbers<[1], [0], [0], [1], [0, 0, 1, 1], [], []>} : vector<8x8xf32>, vector<8x8xf32>, vector<8x8xf32> -> vector<8x8xf32>
    %cst_44 = arith.constant 0.353553385 : f32
    %62 = vector.broadcast %cst_44 : f32 to vector<8x8xf32>
    %63 = arith.mulf %61, %62 : vector<8x8xf32>
    %64 = vector.extract_strided_slice %13 {offsets = [0, 0], sizes = [8, 8], strides = [1, 1]} : vector<8x64xf32> to vector<8x8xf32>
    %65 = vector.extract_strided_slice %13 {offsets = [0, 32], sizes = [8, 8], strides = [1, 1]} : vector<8x64xf32> to vector<8x8xf32>
    %66 = arith.mulf %63, %65 : vector<8x8xf32>
    %67 = arith.addf %66, %64 : vector<8x8xf32>
    %cst_45 = arith.constant dense<0xFF800000> : vector<8xf32>
    %68 = vector.multi_reduction <maximumf>, %67, %cst_45 [1] : vector<8x8xf32> to vector<8xf32>
    %69 = vector.shape_cast %68 : vector<8xf32> to vector<8x1xf32>
    %70 = vector.broadcast %69 : vector<8x1xf32> to vector<8x8xf32>
    %71 = arith.subf %67, %70 : vector<8x8xf32>
    %72 = math.exp %71 : vector<8x8xf32>
    %cst_46 = arith.constant dense<0.000000e+00> : vector<8xf32>
    %73 = vector.multi_reduction <add>, %72, %cst_46 [1] : vector<8x8xf32> to vector<8xf32>
    %74 = vector.shape_cast %73 : vector<8xf32> to vector<8x1xf32>
    %75 = tpu.reciprocal %74 {approx = true} : vector<8x1xf32> -> vector<8x1xf32>
    %76 = vector.broadcast %75 : vector<8x1xf32> to vector<8x8xf32>
    %77 = arith.mulf %72, %76 : vector<8x8xf32>
    %cst_47 = arith.constant dense<0.000000e+00> : vector<8x8xf32>
    %78 = tpu.matmul %77, %59, %cst_47 {dimension_numbers = #tpu.dot_dimension_numbers<[1], [0], [0], [1], [0, 0, 1, 1], [], []>} : vector<8x8xf32>, vector<8x8xf32>, vector<8x8xf32> -> vector<8x8xf32>
    %79 = vector.extract_strided_slice %54 {offsets = [0, 0], sizes = [8, 32], strides = [1, 1]} : vector<32x32xf32> to vector<8x32xf32>
    %cst_48 = arith.constant dense<0.000000e+00> : vector<8x32xf32>
    %80 = tpu.matmul %78, %79, %cst_48 {dimension_numbers = #tpu.dot_dimension_numbers<[1], [0], [0], [1], [0, 0, 1, 1], [], []>} : vector<8x8xf32>, vector<8x32xf32>, vector<8x32xf32> -> vector<8x32xf32>
    %81 = vector.broadcast %56 : vector<1x32xf32> to vector<8x32xf32>
    %82 = arith.addf %81, %80 : vector<8x32xf32>
    %83 = vector.extract_strided_slice %52 {offsets = [0, 8], sizes = [8, 8], strides = [1, 1]} : vector<8x96xf32> to vector<8x8xf32>
    %84 = vector.extract_strided_slice %52 {offsets = [0, 40], sizes = [8, 8], strides = [1, 1]} : vector<8x96xf32> to vector<8x8xf32>
    %85 = vector.extract_strided_slice %52 {offsets = [0, 72], sizes = [8, 8], strides = [1, 1]} : vector<8x96xf32> to vector<8x8xf32>
    %86 = tpu.transpose %84, [1, 0] : vector<8x8xf32> -> vector<8x8xf32>
    %cst_49 = arith.constant dense<0.000000e+00> : vector<8x8xf32>
    %87 = tpu.matmul %83, %86, %cst_49 {dimension_numbers = #tpu.dot_dimension_numbers<[1], [0], [0], [1], [0, 0, 1, 1], [], []>} : vector<8x8xf32>, vector<8x8xf32>, vector<8x8xf32> -> vector<8x8xf32>
    %cst_50 = arith.constant 0.353553385 : f32
    %88 = vector.broadcast %cst_50 : f32 to vector<8x8xf32>
    %89 = arith.mulf %87, %88 : vector<8x8xf32>
    %90 = vector.extract_strided_slice %13 {offsets = [0, 8], sizes = [8, 8], strides = [1, 1]} : vector<8x64xf32> to vector<8x8xf32>
    %91 = vector.extract_strided_slice %13 {offsets = [0, 40], sizes = [8, 8], strides = [1, 1]} : vector<8x64xf32> to vector<8x8xf32>
    %92 = arith.mulf %89, %91 : vector<8x8xf32>
    %93 = arith.addf %92, %90 : vector<8x8xf32>
    %cst_51 = arith.constant dense<0xFF800000> : vector<8xf32>
    %94 = vector.multi_reduction <maximumf>, %93, %cst_51 [1] : vector<8x8xf32> to vector<8xf32>
    %95 = vector.shape_cast %94 : vector<8xf32> to vector<8x1xf32>
    %96 = vector.broadcast %95 : vector<8x1xf32> to vector<8x8xf32>
    %97 = arith.subf %93, %96 : vector<8x8xf32>
    %98 = math.exp %97 : vector<8x8xf32>
    %cst_52 = arith.constant dense<0.000000e+00> : vector<8xf32>
    %99 = vector.multi_reduction <add>, %98, %cst_52 [1] : vector<8x8xf32> to vector<8xf32>
    %100 = vector.shape_cast %99 : vector<8xf32> to vector<8x1xf32>
    %101 = tpu.reciprocal %100 {approx = true} : vector<8x1xf32> -> vector<8x1xf32>
    %102 = vector.broadcast %101 : vector<8x1xf32> to vector<8x8xf32>
    %103 = arith.mulf %98, %102 : vector<8x8xf32>
    %cst_53 = arith.constant dense<0.000000e+00> : vector<8x8xf32>
    %104 = tpu.matmul %103, %85, %cst_53 {dimension_numbers = #tpu.dot_dimension_numbers<[1], [0], [0], [1], [0, 0, 1, 1], [], []>} : vector<8x8xf32>, vector<8x8xf32>, vector<8x8xf32> -> vector<8x8xf32>
    %105 = vector.extract_strided_slice %54 {offsets = [8, 0], sizes = [8, 32], strides = [1, 1]} : vector<32x32xf32> to vector<8x32xf32>
    %cst_54 = arith.constant dense<0.000000e+00> : vector<8x32xf32>
    %106 = tpu.matmul %104, %105, %cst_54 {dimension_numbers = #tpu.dot_dimension_numbers<[1], [0], [0], [1], [0, 0, 1, 1], [], []>} : vector<8x8xf32>, vector<8x32xf32>, vector<8x32xf32> -> vector<8x32xf32>
    %107 = arith.addf %82, %106 : vector<8x32xf32>
    %108 = vector.extract_strided_slice %52 {offsets = [0, 16], sizes = [8, 8], strides = [1, 1]} : vector<8x96xf32> to vector<8x8xf32>
    %109 = vector.extract_strided_slice %52 {offsets = [0, 48], sizes = [8, 8], strides = [1, 1]} : vector<8x96xf32> to vector<8x8xf32>
    %110 = vector.extract_strided_slice %52 {offsets = [0, 80], sizes = [8, 8], strides = [1, 1]} : vector<8x96xf32> to vector<8x8xf32>
    %111 = tpu.transpose %109, [1, 0] : vector<8x8xf32> -> vector<8x8xf32>
    %cst_55 = arith.constant dense<0.000000e+00> : vector<8x8xf32>
    %112 = tpu.matmul %108, %111, %cst_55 {dimension_numbers = #tpu.dot_dimension_numbers<[1], [0], [0], [1], [0, 0, 1, 1], [], []>} : vector<8x8xf32>, vector<8x8xf32>, vector<8x8xf32> -> vector<8x8xf32>
    %cst_56 = arith.constant 0.353553385 : f32
    %113 = vector.broadcast %cst_56 : f32 to vector<8x8xf32>
    %114 = arith.mulf %112, %113 : vector<8x8xf32>
    %115 = vector.extract_strided_slice %13 {offsets = [0, 16], sizes = [8, 8], strides = [1, 1]} : vector<8x64xf32> to vector<8x8xf32>
    %116 = vector.extract_strided_slice %13 {offsets = [0, 48], sizes = [8, 8], strides = [1, 1]} : vector<8x64xf32> to vector<8x8xf32>
    %117 = arith.mulf %114, %116 : vector<8x8xf32>
    %118 = arith.addf %117, %115 : vector<8x8xf32>
    %cst_57 = arith.constant dense<0xFF800000> : vector<8xf32>
    %119 = vector.multi_reduction <maximumf>, %118, %cst_57 [1] : vector<8x8xf32> to vector<8xf32>
    %120 = vector.shape_cast %119 : vector<8xf32> to vector<8x1xf32>
    %121 = vector.broadcast %120 : vector<8x1xf32> to vector<8x8xf32>
    %122 = arith.subf %118, %121 : vector<8x8xf32>
    %123 = math.exp %122 : vector<8x8xf32>
    %cst_58 = arith.constant dense<0.000000e+00> : vector<8xf32>
    %124 = vector.multi_reduction <add>, %123, %cst_58 [1] : vector<8x8xf32> to vector<8xf32>
    %125 = vector.shape_cast %124 : vector<8xf32> to vector<8x1xf32>
    %126 = tpu.reciprocal %125 {approx = true} : vector<8x1xf32> -> vector<8x1xf32>
    %127 = vector.broadcast %126 : vector<8x1xf32> to vector<8x8xf32>
    %128 = arith.mulf %123, %127 : vector<8x8xf32>
    %cst_59 = arith.constant dense<0.000000e+00> : vector<8x8xf32>
    %129 = tpu.matmul %128, %110, %cst_59 {dimension_numbers = #tpu.dot_dimension_numbers<[1], [0], [0], [1], [0, 0, 1, 1], [], []>} : vector<8x8xf32>, vector<8x8xf32>, vector<8x8xf32> -> vector<8x8xf32>
    %130 = vector.extract_strided_slice %54 {offsets = [16, 0], sizes = [8, 32], strides = [1, 1]} : vector<32x32xf32> to vector<8x32xf32>
    %cst_60 = arith.constant dense<0.000000e+00> : vector<8x32xf32>
    %131 = tpu.matmul %129, %130, %cst_60 {dimension_numbers = #tpu.dot_dimension_numbers<[1], [0], [0], [1], [0, 0, 1, 1], [], []>} : vector<8x8xf32>, vector<8x32xf32>, vector<8x32xf32> -> vector<8x32xf32>
    %132 = arith.addf %107, %131 : vector<8x32xf32>
    %133 = vector.extract_strided_slice %52 {offsets = [0, 24], sizes = [8, 8], strides = [1, 1]} : vector<8x96xf32> to vector<8x8xf32>
    %134 = vector.extract_strided_slice %52 {offsets = [0, 56], sizes = [8, 8], strides = [1, 1]} : vector<8x96xf32> to vector<8x8xf32>
    %135 = vector.extract_strided_slice %52 {offsets = [0, 88], sizes = [8, 8], strides = [1, 1]} : vector<8x96xf32> to vector<8x8xf32>
    %136 = tpu.transpose %134, [1, 0] : vector<8x8xf32> -> vector<8x8xf32>
    %cst_61 = arith.constant dense<0.000000e+00> : vector<8x8xf32>
    %137 = tpu.matmul %133, %136, %cst_61 {dimension_numbers = #tpu.dot_dimension_numbers<[1], [0], [0], [1], [0, 0, 1, 1], [], []>} : vector<8x8xf32>, vector<8x8xf32>, vector<8x8xf32> -> vector<8x8xf32>
    %cst_62 = arith.constant 0.353553385 : f32
    %138 = vector.broadcast %cst_62 : f32 to vector<8x8xf32>
    %139 = arith.mulf %137, %138 : vector<8x8xf32>
    %140 = vector.extract_strided_slice %13 {offsets = [0, 24], sizes = [8, 8], strides = [1, 1]} : vector<8x64xf32> to vector<8x8xf32>
    %141 = vector.extract_strided_slice %13 {offsets = [0, 56], sizes = [8, 8], strides = [1, 1]} : vector<8x64xf32> to vector<8x8xf32>
    %142 = arith.mulf %139, %141 : vector<8x8xf32>
    %143 = arith.addf %142, %140 : vector<8x8xf32>
    %cst_63 = arith.constant dense<0xFF800000> : vector<8xf32>
    %144 = vector.multi_reduction <maximumf>, %143, %cst_63 [1] : vector<8x8xf32> to vector<8xf32>
    %145 = vector.shape_cast %144 : vector<8xf32> to vector<8x1xf32>
    %146 = vector.broadcast %145 : vector<8x1xf32> to vector<8x8xf32>
    %147 = arith.subf %143, %146 : vector<8x8xf32>
    %148 = math.exp %147 : vector<8x8xf32>
    %cst_64 = arith.constant dense<0.000000e+00> : vector<8xf32>
    %149 = vector.multi_reduction <add>, %148, %cst_64 [1] : vector<8x8xf32> to vector<8xf32>
    %150 = vector.shape_cast %149 : vector<8xf32> to vector<8x1xf32>
    %151 = tpu.reciprocal %150 {approx = true} : vector<8x1xf32> -> vector<8x1xf32>
    %152 = vector.broadcast %151 : vector<8x1xf32> to vector<8x8xf32>
    %153 = arith.mulf %148, %152 : vector<8x8xf32>
    %cst_65 = arith.constant dense<0.000000e+00> : vector<8x8xf32>
    %154 = tpu.matmul %153, %135, %cst_65 {dimension_numbers = #tpu.dot_dimension_numbers<[1], [0], [0], [1], [0, 0, 1, 1], [], []>} : vector<8x8xf32>, vector<8x8xf32>, vector<8x8xf32> -> vector<8x8xf32>
    %155 = vector.extract_strided_slice %54 {offsets = [24, 0], sizes = [8, 32], strides = [1, 1]} : vector<32x32xf32> to vector<8x32xf32>
    %cst_66 = arith.constant dense<0.000000e+00> : vector<8x32xf32>
    %156 = tpu.matmul %154, %155, %cst_66 {dimension_numbers = #tpu.dot_dimension_numbers<[1], [0], [0], [1], [0, 0, 1, 1], [], []>} : vector<8x8xf32>, vector<8x32xf32>, vector<8x32xf32> -> vector<8x32xf32>
    %157 = arith.addf %132, %156 : vector<8x32xf32>
    %158 = arith.addf %19, %157 : vector<8x32xf32>
    %c0_67 = arith.constant 0 : index
    %c0_68 = arith.constant 0 : index
    %c0_69 = arith.constant 0 : index
    %159 = vector.load %arg15[%c0_67, %c0_68, %c0_69] : memref<2x1x32xf32, #tpu.memory_space<vmem>>, vector<1x1x32xf32>
    %160 = vector.shape_cast %159 : vector<1x1x32xf32> to vector<1x32xf32>
    %c0_70 = arith.constant 0 : index
    %c0_71 = arith.constant 0 : index
    %c0_72 = arith.constant 0 : index
    %161 = vector.load %arg16[%c0_70, %c0_71, %c0_72] : memref<2x1x32xf32, #tpu.memory_space<vmem>>, vector<1x1x32xf32>
    %162 = vector.shape_cast %161 : vector<1x1x32xf32> to vector<1x32xf32>
    %cst_73 = arith.constant dense<0.000000e+00> : vector<8xf32>
    %163 = vector.multi_reduction <add>, %158, %cst_73 [1] : vector<8x32xf32> to vector<8xf32>
    %164 = vector.shape_cast %163 : vector<8xf32> to vector<8x1xf32>
    %cst_74 = arith.constant 3.200000e+01 : f32
    %165 = vector.broadcast %cst_74 : f32 to vector<8x1xf32>
    %166 = arith.divf %164, %165 : vector<8x1xf32>
    %167 = vector.broadcast %166 : vector<8x1xf32> to vector<8x32xf32>
    %168 = arith.subf %158, %167 : vector<8x32xf32>
    %169 = arith.mulf %168, %168 : vector<8x32xf32>
    %cst_75 = arith.constant dense<0.000000e+00> : vector<8xf32>
    %170 = vector.multi_reduction <add>, %169, %cst_75 [1] : vector<8x32xf32> to vector<8xf32>
    %171 = vector.shape_cast %170 : vector<8xf32> to vector<8x1xf32>
    %cst_76 = arith.constant 3.200000e+01 : f32
    %172 = vector.broadcast %cst_76 : f32 to vector<8x1xf32>
    %173 = arith.divf %171, %172 : vector<8x1xf32>
    %174 = vector.broadcast %166 : vector<8x1xf32> to vector<8x32xf32>
    %175 = arith.subf %158, %174 : vector<8x32xf32>
    %cst_77 = arith.constant 9.99999974E-6 : f32
    %176 = vector.broadcast %cst_77 : f32 to vector<8x1xf32>
    %177 = arith.addf %173, %176 : vector<8x1xf32>
    %178 = math.rsqrt %177 : vector<8x1xf32>
    %179 = vector.broadcast %178 : vector<8x1xf32> to vector<8x32xf32>
    %180 = arith.mulf %175, %179 : vector<8x32xf32>
    %181 = vector.broadcast %160 : vector<1x32xf32> to vector<8x32xf32>
    %182 = arith.mulf %180, %181 : vector<8x32xf32>
    %183 = vector.broadcast %162 : vector<1x32xf32> to vector<8x32xf32>
    %184 = arith.addf %182, %183 : vector<8x32xf32>
    %c0_78 = arith.constant 0 : index
    %c0_79 = arith.constant 0 : index
    %c0_80 = arith.constant 0 : index
    %185 = vector.load %arg17[%c0_78, %c0_79, %c0_80] : memref<2x32x64xf32, #tpu.memory_space<vmem>>, vector<1x32x64xf32>
    %186 = vector.shape_cast %185 : vector<1x32x64xf32> to vector<32x64xf32>
    %cst_81 = arith.constant dense<0.000000e+00> : vector<8x64xf32>
    %187 = tpu.matmul %184, %186, %cst_81 {dimension_numbers = #tpu.dot_dimension_numbers<[1], [0], [0], [1], [0, 0, 1, 1], [], []>} : vector<8x32xf32>, vector<32x64xf32>, vector<8x64xf32> -> vector<8x64xf32>
    %c0_82 = arith.constant 0 : index
    %c0_83 = arith.constant 0 : index
    %c0_84 = arith.constant 0 : index
    %188 = vector.load %arg18[%c0_82, %c0_83, %c0_84] : memref<2x1x64xf32, #tpu.memory_space<vmem>>, vector<1x1x64xf32>
    %189 = vector.shape_cast %188 : vector<1x1x64xf32> to vector<1x64xf32>
    %190 = vector.broadcast %189 : vector<1x64xf32> to vector<8x64xf32>
    %191 = arith.addf %187, %190 : vector<8x64xf32>
    %192 = arith.mulf %191, %191 : vector<8x64xf32>
    %193 = arith.mulf %191, %192 : vector<8x64xf32>
    %cst_85 = arith.constant 4.471500e-02 : f32
    %194 = vector.broadcast %cst_85 : f32 to vector<8x64xf32>
    %195 = arith.mulf %194, %193 : vector<8x64xf32>
    %196 = arith.addf %191, %195 : vector<8x64xf32>
    %cst_86 = arith.constant 0.797884583 : f32
    %197 = vector.broadcast %cst_86 : f32 to vector<8x64xf32>
    %198 = arith.mulf %197, %196 : vector<8x64xf32>
    %199 = math.tanh %198 : vector<8x64xf32>
    %cst_87 = arith.constant 1.000000e+00 : f32
    %200 = vector.broadcast %cst_87 : f32 to vector<8x64xf32>
    %201 = arith.addf %200, %199 : vector<8x64xf32>
    %cst_88 = arith.constant 5.000000e-01 : f32
    %202 = vector.broadcast %cst_88 : f32 to vector<8x64xf32>
    %203 = arith.mulf %202, %201 : vector<8x64xf32>
    %204 = arith.mulf %191, %203 : vector<8x64xf32>
    %c0_89 = arith.constant 0 : index
    %c0_90 = arith.constant 0 : index
    %c0_91 = arith.constant 0 : index
    %205 = vector.load %arg19[%c0_89, %c0_90, %c0_91] : memref<2x64x32xf32, #tpu.memory_space<vmem>>, vector<1x64x32xf32>
    %206 = vector.shape_cast %205 : vector<1x64x32xf32> to vector<64x32xf32>
    %cst_92 = arith.constant dense<0.000000e+00> : vector<8x32xf32>
    %207 = tpu.matmul %204, %206, %cst_92 {dimension_numbers = #tpu.dot_dimension_numbers<[1], [0], [0], [1], [0, 0, 1, 1], [], []>} : vector<8x64xf32>, vector<64x32xf32>, vector<8x32xf32> -> vector<8x32xf32>
    %208 = arith.addf %158, %207 : vector<8x32xf32>
    %c0_93 = arith.constant 0 : index
    %c0_94 = arith.constant 0 : index
    %c0_95 = arith.constant 0 : index
    %209 = vector.load %arg20[%c0_93, %c0_94, %c0_95] : memref<2x1x32xf32, #tpu.memory_space<vmem>>, vector<1x1x32xf32>
    %210 = vector.shape_cast %209 : vector<1x1x32xf32> to vector<1x32xf32>
    %211 = vector.broadcast %210 : vector<1x32xf32> to vector<8x32xf32>
    %212 = arith.addf %208, %211 : vector<8x32xf32>
    %c1 = arith.constant 1 : index
    %c0_96 = arith.constant 0 : index
    %c0_97 = arith.constant 0 : index
    %213 = vector.load %arg9[%c1, %c0_96, %c0_97] : memref<2x1x32xf32, #tpu.memory_space<vmem>>, vector<1x1x32xf32>
    %214 = vector.shape_cast %213 : vector<1x1x32xf32> to vector<1x32xf32>
    %c1_98 = arith.constant 1 : index
    %c0_99 = arith.constant 0 : index
    %c0_100 = arith.constant 0 : index
    %215 = vector.load %arg10[%c1_98, %c0_99, %c0_100] : memref<2x1x32xf32, #tpu.memory_space<vmem>>, vector<1x1x32xf32>
    %216 = vector.shape_cast %215 : vector<1x1x32xf32> to vector<1x32xf32>
    %cst_101 = arith.constant dense<0.000000e+00> : vector<8xf32>
    %217 = vector.multi_reduction <add>, %212, %cst_101 [1] : vector<8x32xf32> to vector<8xf32>
    %218 = vector.shape_cast %217 : vector<8xf32> to vector<8x1xf32>
    %cst_102 = arith.constant 3.200000e+01 : f32
    %219 = vector.broadcast %cst_102 : f32 to vector<8x1xf32>
    %220 = arith.divf %218, %219 : vector<8x1xf32>
    %221 = vector.broadcast %220 : vector<8x1xf32> to vector<8x32xf32>
    %222 = arith.subf %212, %221 : vector<8x32xf32>
    %223 = arith.mulf %222, %222 : vector<8x32xf32>
    %cst_103 = arith.constant dense<0.000000e+00> : vector<8xf32>
    %224 = vector.multi_reduction <add>, %223, %cst_103 [1] : vector<8x32xf32> to vector<8xf32>
    %225 = vector.shape_cast %224 : vector<8xf32> to vector<8x1xf32>
    %cst_104 = arith.constant 3.200000e+01 : f32
    %226 = vector.broadcast %cst_104 : f32 to vector<8x1xf32>
    %227 = arith.divf %225, %226 : vector<8x1xf32>
    %228 = vector.broadcast %220 : vector<8x1xf32> to vector<8x32xf32>
    %229 = arith.subf %212, %228 : vector<8x32xf32>
    %cst_105 = arith.constant 9.99999974E-6 : f32
    %230 = vector.broadcast %cst_105 : f32 to vector<8x1xf32>
    %231 = arith.addf %227, %230 : vector<8x1xf32>
    %232 = math.rsqrt %231 : vector<8x1xf32>
    %233 = vector.broadcast %232 : vector<8x1xf32> to vector<8x32xf32>
    %234 = arith.mulf %229, %233 : vector<8x32xf32>
    %235 = vector.broadcast %214 : vector<1x32xf32> to vector<8x32xf32>
    %236 = arith.mulf %234, %235 : vector<8x32xf32>
    %237 = vector.broadcast %216 : vector<1x32xf32> to vector<8x32xf32>
    %238 = arith.addf %236, %237 : vector<8x32xf32>
    %c1_106 = arith.constant 1 : index
    %c0_107 = arith.constant 0 : index
    %c0_108 = arith.constant 0 : index
    %239 = vector.load %arg11[%c1_106, %c0_107, %c0_108] : memref<2x32x96xf32, #tpu.memory_space<vmem>>, vector<1x32x96xf32>
    %240 = vector.shape_cast %239 : vector<1x32x96xf32> to vector<32x96xf32>
    %cst_109 = arith.constant dense<0.000000e+00> : vector<8x96xf32>
    %241 = tpu.matmul %238, %240, %cst_109 {dimension_numbers = #tpu.dot_dimension_numbers<[1], [0], [0], [1], [0, 0, 1, 1], [], []>} : vector<8x32xf32>, vector<32x96xf32>, vector<8x96xf32> -> vector<8x96xf32>
    %c1_110 = arith.constant 1 : index
    %c0_111 = arith.constant 0 : index
    %c0_112 = arith.constant 0 : index
    %242 = vector.load %arg12[%c1_110, %c0_111, %c0_112] : memref<2x1x96xf32, #tpu.memory_space<vmem>>, vector<1x1x96xf32>
    %243 = vector.shape_cast %242 : vector<1x1x96xf32> to vector<1x96xf32>
    %244 = vector.broadcast %243 : vector<1x96xf32> to vector<8x96xf32>
    %245 = arith.addf %241, %244 : vector<8x96xf32>
    %c1_113 = arith.constant 1 : index
    %c0_114 = arith.constant 0 : index
    %c0_115 = arith.constant 0 : index
    %246 = vector.load %arg13[%c1_113, %c0_114, %c0_115] : memref<2x32x32xf32, #tpu.memory_space<vmem>>, vector<1x32x32xf32>
    %247 = vector.shape_cast %246 : vector<1x32x32xf32> to vector<32x32xf32>
    %c1_116 = arith.constant 1 : index
    %c0_117 = arith.constant 0 : index
    %c0_118 = arith.constant 0 : index
    %248 = vector.load %arg14[%c1_116, %c0_117, %c0_118] : memref<2x1x32xf32, #tpu.memory_space<vmem>>, vector<1x1x32xf32>
    %249 = vector.shape_cast %248 : vector<1x1x32xf32> to vector<1x32xf32>
    %250 = vector.extract_strided_slice %245 {offsets = [0, 0], sizes = [8, 8], strides = [1, 1]} : vector<8x96xf32> to vector<8x8xf32>
    %251 = vector.extract_strided_slice %245 {offsets = [0, 32], sizes = [8, 8], strides = [1, 1]} : vector<8x96xf32> to vector<8x8xf32>
    %252 = vector.extract_strided_slice %245 {offsets = [0, 64], sizes = [8, 8], strides = [1, 1]} : vector<8x96xf32> to vector<8x8xf32>
    %253 = tpu.transpose %251, [1, 0] : vector<8x8xf32> -> vector<8x8xf32>
    %cst_119 = arith.constant dense<0.000000e+00> : vector<8x8xf32>
    %254 = tpu.matmul %250, %253, %cst_119 {dimension_numbers = #tpu.dot_dimension_numbers<[1], [0], [0], [1], [0, 0, 1, 1], [], []>} : vector<8x8xf32>, vector<8x8xf32>, vector<8x8xf32> -> vector<8x8xf32>
    %cst_120 = arith.constant 0.353553385 : f32
    %255 = vector.broadcast %cst_120 : f32 to vector<8x8xf32>
    %256 = arith.mulf %254, %255 : vector<8x8xf32>
    %257 = vector.extract_strided_slice %13 {offsets = [0, 0], sizes = [8, 8], strides = [1, 1]} : vector<8x64xf32> to vector<8x8xf32>
    %258 = vector.extract_strided_slice %13 {offsets = [0, 32], sizes = [8, 8], strides = [1, 1]} : vector<8x64xf32> to vector<8x8xf32>
    %259 = arith.mulf %256, %258 : vector<8x8xf32>
    %260 = arith.addf %259, %257 : vector<8x8xf32>
    %cst_121 = arith.constant dense<0xFF800000> : vector<8xf32>
    %261 = vector.multi_reduction <maximumf>, %260, %cst_121 [1] : vector<8x8xf32> to vector<8xf32>
    %262 = vector.shape_cast %261 : vector<8xf32> to vector<8x1xf32>
    %263 = vector.broadcast %262 : vector<8x1xf32> to vector<8x8xf32>
    %264 = arith.subf %260, %263 : vector<8x8xf32>
    %265 = math.exp %264 : vector<8x8xf32>
    %cst_122 = arith.constant dense<0.000000e+00> : vector<8xf32>
    %266 = vector.multi_reduction <add>, %265, %cst_122 [1] : vector<8x8xf32> to vector<8xf32>
    %267 = vector.shape_cast %266 : vector<8xf32> to vector<8x1xf32>
    %268 = tpu.reciprocal %267 {approx = true} : vector<8x1xf32> -> vector<8x1xf32>
    %269 = vector.broadcast %268 : vector<8x1xf32> to vector<8x8xf32>
    %270 = arith.mulf %265, %269 : vector<8x8xf32>
    %cst_123 = arith.constant dense<0.000000e+00> : vector<8x8xf32>
    %271 = tpu.matmul %270, %252, %cst_123 {dimension_numbers = #tpu.dot_dimension_numbers<[1], [0], [0], [1], [0, 0, 1, 1], [], []>} : vector<8x8xf32>, vector<8x8xf32>, vector<8x8xf32> -> vector<8x8xf32>
    %272 = vector.extract_strided_slice %247 {offsets = [0, 0], sizes = [8, 32], strides = [1, 1]} : vector<32x32xf32> to vector<8x32xf32>
    %cst_124 = arith.constant dense<0.000000e+00> : vector<8x32xf32>
    %273 = tpu.matmul %271, %272, %cst_124 {dimension_numbers = #tpu.dot_dimension_numbers<[1], [0], [0], [1], [0, 0, 1, 1], [], []>} : vector<8x8xf32>, vector<8x32xf32>, vector<8x32xf32> -> vector<8x32xf32>
    %274 = vector.broadcast %249 : vector<1x32xf32> to vector<8x32xf32>
    %275 = arith.addf %274, %273 : vector<8x32xf32>
    %276 = vector.extract_strided_slice %245 {offsets = [0, 8], sizes = [8, 8], strides = [1, 1]} : vector<8x96xf32> to vector<8x8xf32>
    %277 = vector.extract_strided_slice %245 {offsets = [0, 40], sizes = [8, 8], strides = [1, 1]} : vector<8x96xf32> to vector<8x8xf32>
    %278 = vector.extract_strided_slice %245 {offsets = [0, 72], sizes = [8, 8], strides = [1, 1]} : vector<8x96xf32> to vector<8x8xf32>
    %279 = tpu.transpose %277, [1, 0] : vector<8x8xf32> -> vector<8x8xf32>
    %cst_125 = arith.constant dense<0.000000e+00> : vector<8x8xf32>
    %280 = tpu.matmul %276, %279, %cst_125 {dimension_numbers = #tpu.dot_dimension_numbers<[1], [0], [0], [1], [0, 0, 1, 1], [], []>} : vector<8x8xf32>, vector<8x8xf32>, vector<8x8xf32> -> vector<8x8xf32>
    %cst_126 = arith.constant 0.353553385 : f32
    %281 = vector.broadcast %cst_126 : f32 to vector<8x8xf32>
    %282 = arith.mulf %280, %281 : vector<8x8xf32>
    %283 = vector.extract_strided_slice %13 {offsets = [0, 8], sizes = [8, 8], strides = [1, 1]} : vector<8x64xf32> to vector<8x8xf32>
    %284 = vector.extract_strided_slice %13 {offsets = [0, 40], sizes = [8, 8], strides = [1, 1]} : vector<8x64xf32> to vector<8x8xf32>
    %285 = arith.mulf %282, %284 : vector<8x8xf32>
    %286 = arith.addf %285, %283 : vector<8x8xf32>
    %cst_127 = arith.constant dense<0xFF800000> : vector<8xf32>
    %287 = vector.multi_reduction <maximumf>, %286, %cst_127 [1] : vector<8x8xf32> to vector<8xf32>
    %288 = vector.shape_cast %287 : vector<8xf32> to vector<8x1xf32>
    %289 = vector.broadcast %288 : vector<8x1xf32> to vector<8x8xf32>
    %290 = arith.subf %286, %289 : vector<8x8xf32>
    %291 = math.exp %290 : vector<8x8xf32>
    %cst_128 = arith.constant dense<0.000000e+00> : vector<8xf32>
    %292 = vector.multi_reduction <add>, %291, %cst_128 [1] : vector<8x8xf32> to vector<8xf32>
    %293 = vector.shape_cast %292 : vector<8xf32> to vector<8x1xf32>
    %294 = tpu.reciprocal %293 {approx = true} : vector<8x1xf32> -> vector<8x1xf32>
    %295 = vector.broadcast %294 : vector<8x1xf32> to vector<8x8xf32>
    %296 = arith.mulf %291, %295 : vector<8x8xf32>
    %cst_129 = arith.constant dense<0.000000e+00> : vector<8x8xf32>
    %297 = tpu.matmul %296, %278, %cst_129 {dimension_numbers = #tpu.dot_dimension_numbers<[1], [0], [0], [1], [0, 0, 1, 1], [], []>} : vector<8x8xf32>, vector<8x8xf32>, vector<8x8xf32> -> vector<8x8xf32>
    %298 = vector.extract_strided_slice %247 {offsets = [8, 0], sizes = [8, 32], strides = [1, 1]} : vector<32x32xf32> to vector<8x32xf32>
    %cst_130 = arith.constant dense<0.000000e+00> : vector<8x32xf32>
    %299 = tpu.matmul %297, %298, %cst_130 {dimension_numbers = #tpu.dot_dimension_numbers<[1], [0], [0], [1], [0, 0, 1, 1], [], []>} : vector<8x8xf32>, vector<8x32xf32>, vector<8x32xf32> -> vector<8x32xf32>
    %300 = arith.addf %275, %299 : vector<8x32xf32>
    %301 = vector.extract_strided_slice %245 {offsets = [0, 16], sizes = [8, 8], strides = [1, 1]} : vector<8x96xf32> to vector<8x8xf32>
    %302 = vector.extract_strided_slice %245 {offsets = [0, 48], sizes = [8, 8], strides = [1, 1]} : vector<8x96xf32> to vector<8x8xf32>
    %303 = vector.extract_strided_slice %245 {offsets = [0, 80], sizes = [8, 8], strides = [1, 1]} : vector<8x96xf32> to vector<8x8xf32>
    %304 = tpu.transpose %302, [1, 0] : vector<8x8xf32> -> vector<8x8xf32>
    %cst_131 = arith.constant dense<0.000000e+00> : vector<8x8xf32>
    %305 = tpu.matmul %301, %304, %cst_131 {dimension_numbers = #tpu.dot_dimension_numbers<[1], [0], [0], [1], [0, 0, 1, 1], [], []>} : vector<8x8xf32>, vector<8x8xf32>, vector<8x8xf32> -> vector<8x8xf32>
    %cst_132 = arith.constant 0.353553385 : f32
    %306 = vector.broadcast %cst_132 : f32 to vector<8x8xf32>
    %307 = arith.mulf %305, %306 : vector<8x8xf32>
    %308 = vector.extract_strided_slice %13 {offsets = [0, 16], sizes = [8, 8], strides = [1, 1]} : vector<8x64xf32> to vector<8x8xf32>
    %309 = vector.extract_strided_slice %13 {offsets = [0, 48], sizes = [8, 8], strides = [1, 1]} : vector<8x64xf32> to vector<8x8xf32>
    %310 = arith.mulf %307, %309 : vector<8x8xf32>
    %311 = arith.addf %310, %308 : vector<8x8xf32>
    %cst_133 = arith.constant dense<0xFF800000> : vector<8xf32>
    %312 = vector.multi_reduction <maximumf>, %311, %cst_133 [1] : vector<8x8xf32> to vector<8xf32>
    %313 = vector.shape_cast %312 : vector<8xf32> to vector<8x1xf32>
    %314 = vector.broadcast %313 : vector<8x1xf32> to vector<8x8xf32>
    %315 = arith.subf %311, %314 : vector<8x8xf32>
    %316 = math.exp %315 : vector<8x8xf32>
    %cst_134 = arith.constant dense<0.000000e+00> : vector<8xf32>
    %317 = vector.multi_reduction <add>, %316, %cst_134 [1] : vector<8x8xf32> to vector<8xf32>
    %318 = vector.shape_cast %317 : vector<8xf32> to vector<8x1xf32>
    %319 = tpu.reciprocal %318 {approx = true} : vector<8x1xf32> -> vector<8x1xf32>
    %320 = vector.broadcast %319 : vector<8x1xf32> to vector<8x8xf32>
    %321 = arith.mulf %316, %320 : vector<8x8xf32>
    %cst_135 = arith.constant dense<0.000000e+00> : vector<8x8xf32>
    %322 = tpu.matmul %321, %303, %cst_135 {dimension_numbers = #tpu.dot_dimension_numbers<[1], [0], [0], [1], [0, 0, 1, 1], [], []>} : vector<8x8xf32>, vector<8x8xf32>, vector<8x8xf32> -> vector<8x8xf32>
    %323 = vector.extract_strided_slice %247 {offsets = [16, 0], sizes = [8, 32], strides = [1, 1]} : vector<32x32xf32> to vector<8x32xf32>
    %cst_136 = arith.constant dense<0.000000e+00> : vector<8x32xf32>
    %324 = tpu.matmul %322, %323, %cst_136 {dimension_numbers = #tpu.dot_dimension_numbers<[1], [0], [0], [1], [0, 0, 1, 1], [], []>} : vector<8x8xf32>, vector<8x32xf32>, vector<8x32xf32> -> vector<8x32xf32>
    %325 = arith.addf %300, %324 : vector<8x32xf32>
    %326 = vector.extract_strided_slice %245 {offsets = [0, 24], sizes = [8, 8], strides = [1, 1]} : vector<8x96xf32> to vector<8x8xf32>
    %327 = vector.extract_strided_slice %245 {offsets = [0, 56], sizes = [8, 8], strides = [1, 1]} : vector<8x96xf32> to vector<8x8xf32>
    %328 = vector.extract_strided_slice %245 {offsets = [0, 88], sizes = [8, 8], strides = [1, 1]} : vector<8x96xf32> to vector<8x8xf32>
    %329 = tpu.transpose %327, [1, 0] : vector<8x8xf32> -> vector<8x8xf32>
    %cst_137 = arith.constant dense<0.000000e+00> : vector<8x8xf32>
    %330 = tpu.matmul %326, %329, %cst_137 {dimension_numbers = #tpu.dot_dimension_numbers<[1], [0], [0], [1], [0, 0, 1, 1], [], []>} : vector<8x8xf32>, vector<8x8xf32>, vector<8x8xf32> -> vector<8x8xf32>
    %cst_138 = arith.constant 0.353553385 : f32
    %331 = vector.broadcast %cst_138 : f32 to vector<8x8xf32>
    %332 = arith.mulf %330, %331 : vector<8x8xf32>
    %333 = vector.extract_strided_slice %13 {offsets = [0, 24], sizes = [8, 8], strides = [1, 1]} : vector<8x64xf32> to vector<8x8xf32>
    %334 = vector.extract_strided_slice %13 {offsets = [0, 56], sizes = [8, 8], strides = [1, 1]} : vector<8x64xf32> to vector<8x8xf32>
    %335 = arith.mulf %332, %334 : vector<8x8xf32>
    %336 = arith.addf %335, %333 : vector<8x8xf32>
    %cst_139 = arith.constant dense<0xFF800000> : vector<8xf32>
    %337 = vector.multi_reduction <maximumf>, %336, %cst_139 [1] : vector<8x8xf32> to vector<8xf32>
    %338 = vector.shape_cast %337 : vector<8xf32> to vector<8x1xf32>
    %339 = vector.broadcast %338 : vector<8x1xf32> to vector<8x8xf32>
    %340 = arith.subf %336, %339 : vector<8x8xf32>
    %341 = math.exp %340 : vector<8x8xf32>
    %cst_140 = arith.constant dense<0.000000e+00> : vector<8xf32>
    %342 = vector.multi_reduction <add>, %341, %cst_140 [1] : vector<8x8xf32> to vector<8xf32>
    %343 = vector.shape_cast %342 : vector<8xf32> to vector<8x1xf32>
    %344 = tpu.reciprocal %343 {approx = true} : vector<8x1xf32> -> vector<8x1xf32>
    %345 = vector.broadcast %344 : vector<8x1xf32> to vector<8x8xf32>
    %346 = arith.mulf %341, %345 : vector<8x8xf32>
    %cst_141 = arith.constant dense<0.000000e+00> : vector<8x8xf32>
    %347 = tpu.matmul %346, %328, %cst_141 {dimension_numbers = #tpu.dot_dimension_numbers<[1], [0], [0], [1], [0, 0, 1, 1], [], []>} : vector<8x8xf32>, vector<8x8xf32>, vector<8x8xf32> -> vector<8x8xf32>
    %348 = vector.extract_strided_slice %247 {offsets = [24, 0], sizes = [8, 32], strides = [1, 1]} : vector<32x32xf32> to vector<8x32xf32>
    %cst_142 = arith.constant dense<0.000000e+00> : vector<8x32xf32>
    %349 = tpu.matmul %347, %348, %cst_142 {dimension_numbers = #tpu.dot_dimension_numbers<[1], [0], [0], [1], [0, 0, 1, 1], [], []>} : vector<8x8xf32>, vector<8x32xf32>, vector<8x32xf32> -> vector<8x32xf32>
    %350 = arith.addf %325, %349 : vector<8x32xf32>
    %351 = arith.addf %212, %350 : vector<8x32xf32>
    %c1_143 = arith.constant 1 : index
    %c0_144 = arith.constant 0 : index
    %c0_145 = arith.constant 0 : index
    %352 = vector.load %arg15[%c1_143, %c0_144, %c0_145] : memref<2x1x32xf32, #tpu.memory_space<vmem>>, vector<1x1x32xf32>
    %353 = vector.shape_cast %352 : vector<1x1x32xf32> to vector<1x32xf32>
    %c1_146 = arith.constant 1 : index
    %c0_147 = arith.constant 0 : index
    %c0_148 = arith.constant 0 : index
    %354 = vector.load %arg16[%c1_146, %c0_147, %c0_148] : memref<2x1x32xf32, #tpu.memory_space<vmem>>, vector<1x1x32xf32>
    %355 = vector.shape_cast %354 : vector<1x1x32xf32> to vector<1x32xf32>
    %cst_149 = arith.constant dense<0.000000e+00> : vector<8xf32>
    %356 = vector.multi_reduction <add>, %351, %cst_149 [1] : vector<8x32xf32> to vector<8xf32>
    %357 = vector.shape_cast %356 : vector<8xf32> to vector<8x1xf32>
    %cst_150 = arith.constant 3.200000e+01 : f32
    %358 = vector.broadcast %cst_150 : f32 to vector<8x1xf32>
    %359 = arith.divf %357, %358 : vector<8x1xf32>
    %360 = vector.broadcast %359 : vector<8x1xf32> to vector<8x32xf32>
    %361 = arith.subf %351, %360 : vector<8x32xf32>
    %362 = arith.mulf %361, %361 : vector<8x32xf32>
    %cst_151 = arith.constant dense<0.000000e+00> : vector<8xf32>
    %363 = vector.multi_reduction <add>, %362, %cst_151 [1] : vector<8x32xf32> to vector<8xf32>
    %364 = vector.shape_cast %363 : vector<8xf32> to vector<8x1xf32>
    %cst_152 = arith.constant 3.200000e+01 : f32
    %365 = vector.broadcast %cst_152 : f32 to vector<8x1xf32>
    %366 = arith.divf %364, %365 : vector<8x1xf32>
    %367 = vector.broadcast %359 : vector<8x1xf32> to vector<8x32xf32>
    %368 = arith.subf %351, %367 : vector<8x32xf32>
    %cst_153 = arith.constant 9.99999974E-6 : f32
    %369 = vector.broadcast %cst_153 : f32 to vector<8x1xf32>
    %370 = arith.addf %366, %369 : vector<8x1xf32>
    %371 = math.rsqrt %370 : vector<8x1xf32>
    %372 = vector.broadcast %371 : vector<8x1xf32> to vector<8x32xf32>
    %373 = arith.mulf %368, %372 : vector<8x32xf32>
    %374 = vector.broadcast %353 : vector<1x32xf32> to vector<8x32xf32>
    %375 = arith.mulf %373, %374 : vector<8x32xf32>
    %376 = vector.broadcast %355 : vector<1x32xf32> to vector<8x32xf32>
    %377 = arith.addf %375, %376 : vector<8x32xf32>
    %c1_154 = arith.constant 1 : index
    %c0_155 = arith.constant 0 : index
    %c0_156 = arith.constant 0 : index
    %378 = vector.load %arg17[%c1_154, %c0_155, %c0_156] : memref<2x32x64xf32, #tpu.memory_space<vmem>>, vector<1x32x64xf32>
    %379 = vector.shape_cast %378 : vector<1x32x64xf32> to vector<32x64xf32>
    %cst_157 = arith.constant dense<0.000000e+00> : vector<8x64xf32>
    %380 = tpu.matmul %377, %379, %cst_157 {dimension_numbers = #tpu.dot_dimension_numbers<[1], [0], [0], [1], [0, 0, 1, 1], [], []>} : vector<8x32xf32>, vector<32x64xf32>, vector<8x64xf32> -> vector<8x64xf32>
    %c1_158 = arith.constant 1 : index
    %c0_159 = arith.constant 0 : index
    %c0_160 = arith.constant 0 : index
    %381 = vector.load %arg18[%c1_158, %c0_159, %c0_160] : memref<2x1x64xf32, #tpu.memory_space<vmem>>, vector<1x1x64xf32>
    %382 = vector.shape_cast %381 : vector<1x1x64xf32> to vector<1x64xf32>
    %383 = vector.broadcast %382 : vector<1x64xf32> to vector<8x64xf32>
    %384 = arith.addf %380, %383 : vector<8x64xf32>
    %385 = arith.mulf %384, %384 : vector<8x64xf32>
    %386 = arith.mulf %384, %385 : vector<8x64xf32>
    %cst_161 = arith.constant 4.471500e-02 : f32
    %387 = vector.broadcast %cst_161 : f32 to vector<8x64xf32>
    %388 = arith.mulf %387, %386 : vector<8x64xf32>
    %389 = arith.addf %384, %388 : vector<8x64xf32>
    %cst_162 = arith.constant 0.797884583 : f32
    %390 = vector.broadcast %cst_162 : f32 to vector<8x64xf32>
    %391 = arith.mulf %390, %389 : vector<8x64xf32>
    %392 = math.tanh %391 : vector<8x64xf32>
    %cst_163 = arith.constant 1.000000e+00 : f32
    %393 = vector.broadcast %cst_163 : f32 to vector<8x64xf32>
    %394 = arith.addf %393, %392 : vector<8x64xf32>
    %cst_164 = arith.constant 5.000000e-01 : f32
    %395 = vector.broadcast %cst_164 : f32 to vector<8x64xf32>
    %396 = arith.mulf %395, %394 : vector<8x64xf32>
    %397 = arith.mulf %384, %396 : vector<8x64xf32>
    %c1_165 = arith.constant 1 : index
    %c0_166 = arith.constant 0 : index
    %c0_167 = arith.constant 0 : index
    %398 = vector.load %arg19[%c1_165, %c0_166, %c0_167] : memref<2x64x32xf32, #tpu.memory_space<vmem>>, vector<1x64x32xf32>
    %399 = vector.shape_cast %398 : vector<1x64x32xf32> to vector<64x32xf32>
    %cst_168 = arith.constant dense<0.000000e+00> : vector<8x32xf32>
    %400 = tpu.matmul %397, %399, %cst_168 {dimension_numbers = #tpu.dot_dimension_numbers<[1], [0], [0], [1], [0, 0, 1, 1], [], []>} : vector<8x64xf32>, vector<64x32xf32>, vector<8x32xf32> -> vector<8x32xf32>
    %401 = arith.addf %351, %400 : vector<8x32xf32>
    %c1_169 = arith.constant 1 : index
    %c0_170 = arith.constant 0 : index
    %c0_171 = arith.constant 0 : index
    %402 = vector.load %arg20[%c1_169, %c0_170, %c0_171] : memref<2x1x32xf32, #tpu.memory_space<vmem>>, vector<1x1x32xf32>
    %403 = vector.shape_cast %402 : vector<1x1x32xf32> to vector<1x32xf32>
    %404 = vector.broadcast %403 : vector<1x32xf32> to vector<8x32xf32>
    %405 = arith.addf %401, %404 : vector<8x32xf32>
    %c0_172 = arith.constant 0 : index
    %c0_173 = arith.constant 0 : index
    %406 = vector.load %arg21[%c0_172, %c0_173] : memref<32x3xf32, #tpu.memory_space<vmem>>, vector<32x3xf32>
    %cst_174 = arith.constant dense<0.000000e+00> : vector<8x3xf32>
    %407 = tpu.matmul %405, %406, %cst_174 {dimension_numbers = #tpu.dot_dimension_numbers<[1], [0], [0], [1], [0, 0, 1, 1], [], []>} : vector<8x32xf32>, vector<32x3xf32>, vector<8x3xf32> -> vector<8x3xf32>
    %c0_175 = arith.constant 0 : index
    %c0_176 = arith.constant 0 : index
    %408 = vector.load %arg22[%c0_175, %c0_176] : memref<1x3xf32, #tpu.memory_space<vmem>>, vector<1x3xf32>
    %409 = vector.broadcast %408 : vector<1x3xf32> to vector<8x3xf32>
    %410 = arith.addf %407, %409 : vector<8x3xf32>
    %c0_177 = arith.constant 0 : index
    %c0_178 = arith.constant 0 : index
    %411 = vector.load %arg23[%c0_177, %c0_178] : memref<8x3xf32, #tpu.memory_space<vmem>>, vector<8x3xf32>
    tpu.vector_store %arg23[%c0_177, %c0_178], %410 {strides = array<i32>} : memref<8x3xf32, #tpu.memory_space<vmem>>, vector<8x3xf32>,
    return
  }
  func.func @transform_0(%arg0: i32) -> (i32, i32) {
    %c0_i32 = arith.constant 0 : i32
    %c0_i32_0 = arith.constant 0 : i32
    return %arg0, %c0_i32 : i32, i32
  }
  func.func @transform_1(%arg0: i32) -> (i32, i32, i32) {
    %c0_i32 = arith.constant 0 : i32
    %c0_i32_0 = arith.constant 0 : i32
    %c0_i32_1 = arith.constant 0 : i32
    return %arg0, %c0_i32, %c0_i32_0 : i32, i32, i32
  }
  func.func @transform_2(%arg0: i32) -> (i32, i32) {
    %c0_i32 = arith.constant 0 : i32
    %c0_i32_0 = arith.constant 0 : i32
    %c0_i32_1 = arith.constant 0 : i32
    return %c0_i32, %c0_i32_0 : i32, i32
  }
  func.func @transform_3(%arg0: i32) -> (i32, i32) {
    %c0_i32 = arith.constant 0 : i32
    %c0_i32_0 = arith.constant 0 : i32
    %c0_i32_1 = arith.constant 0 : i32
    return %c0_i32, %c0_i32_0 : i32, i32
  }
  func.func @transform_4(%arg0: i32) -> (i32, i32) {
    %c0_i32 = arith.constant 0 : i32
    %c0_i32_0 = arith.constant 0 : i32
    %c0_i32_1 = arith.constant 0 : i32
    return %c0_i32, %c0_i32_0 : i32, i32
  }
  func.func @transform_5(%arg0: i32) -> (i32, i32) {
    %c0_i32 = arith.constant 0 : i32
    %c0_i32_0 = arith.constant 0 : i32
    %c0_i32_1 = arith.constant 0 : i32
    return %c0_i32, %c0_i32_0 : i32, i32
  }
  func.func @transform_6(%arg0: i32) -> (i32, i32) {
    %c0_i32 = arith.constant 0 : i32
    %c0_i32_0 = arith.constant 0 : i32
    %c0_i32_1 = arith.constant 0 : i32
    return %c0_i32, %c0_i32_0 : i32, i32
  }
  func.func @transform_7(%arg0: i32) -> (i32, i32) {
    %c0_i32 = arith.constant 0 : i32
    %c0_i32_0 = arith.constant 0 : i32
    %c0_i32_1 = arith.constant 0 : i32
    return %c0_i32, %c0_i32_0 : i32, i32
  }
  func.func @transform_8(%arg0: i32) -> (i32, i32, i32) {
    %c0_i32 = arith.constant 0 : i32
    %c0_i32_0 = arith.constant 0 : i32
    %c0_i32_1 = arith.constant 0 : i32
    %c0_i32_2 = arith.constant 0 : i32
    return %c0_i32, %c0_i32_0, %c0_i32_1 : i32, i32, i32
  }
  func.func @transform_9(%arg0: i32) -> (i32, i32, i32) {
    %c0_i32 = arith.constant 0 : i32
    %c0_i32_0 = arith.constant 0 : i32
    %c0_i32_1 = arith.constant 0 : i32
    %c0_i32_2 = arith.constant 0 : i32
    return %c0_i32, %c0_i32_0, %c0_i32_1 : i32, i32, i32
  }
  func.func @transform_10(%arg0: i32) -> (i32, i32, i32) {
    %c0_i32 = arith.constant 0 : i32
    %c0_i32_0 = arith.constant 0 : i32
    %c0_i32_1 = arith.constant 0 : i32
    %c0_i32_2 = arith.constant 0 : i32
    return %c0_i32, %c0_i32_0, %c0_i32_1 : i32, i32, i32
  }
  func.func @transform_11(%arg0: i32) -> (i32, i32, i32) {
    %c0_i32 = arith.constant 0 : i32
    %c0_i32_0 = arith.constant 0 : i32
    %c0_i32_1 = arith.constant 0 : i32
    %c0_i32_2 = arith.constant 0 : i32
    return %c0_i32, %c0_i32_0, %c0_i32_1 : i32, i32, i32
  }
  func.func @transform_12(%arg0: i32) -> (i32, i32, i32) {
    %c0_i32 = arith.constant 0 : i32
    %c0_i32_0 = arith.constant 0 : i32
    %c0_i32_1 = arith.constant 0 : i32
    %c0_i32_2 = arith.constant 0 : i32
    return %c0_i32, %c0_i32_0, %c0_i32_1 : i32, i32, i32
  }
  func.func @transform_13(%arg0: i32) -> (i32, i32, i32) {
    %c0_i32 = arith.constant 0 : i32
    %c0_i32_0 = arith.constant 0 : i32
    %c0_i32_1 = arith.constant 0 : i32
    %c0_i32_2 = arith.constant 0 : i32
    return %c0_i32, %c0_i32_0, %c0_i32_1 : i32, i32, i32
  }
  func.func @transform_14(%arg0: i32) -> (i32, i32, i32) {
    %c0_i32 = arith.constant 0 : i32
    %c0_i32_0 = arith.constant 0 : i32
    %c0_i32_1 = arith.constant 0 : i32
    %c0_i32_2 = arith.constant 0 : i32
    return %c0_i32, %c0_i32_0, %c0_i32_1 : i32, i32, i32
  }
  func.func @transform_15(%arg0: i32) -> (i32, i32, i32) {
    %c0_i32 = arith.constant 0 : i32
    %c0_i32_0 = arith.constant 0 : i32
    %c0_i32_1 = arith.constant 0 : i32
    %c0_i32_2 = arith.constant 0 : i32
    return %c0_i32, %c0_i32_0, %c0_i32_1 : i32, i32, i32
  }
  func.func @transform_16(%arg0: i32) -> (i32, i32, i32) {
    %c0_i32 = arith.constant 0 : i32
    %c0_i32_0 = arith.constant 0 : i32
    %c0_i32_1 = arith.constant 0 : i32
    %c0_i32_2 = arith.constant 0 : i32
    return %c0_i32, %c0_i32_0, %c0_i32_1 : i32, i32, i32
  }
  func.func @transform_17(%arg0: i32) -> (i32, i32, i32) {
    %c0_i32 = arith.constant 0 : i32
    %c0_i32_0 = arith.constant 0 : i32
    %c0_i32_1 = arith.constant 0 : i32
    %c0_i32_2 = arith.constant 0 : i32
    return %c0_i32, %c0_i32_0, %c0_i32_1 : i32, i32, i32
  }
  func.func @transform_18(%arg0: i32) -> (i32, i32, i32) {
    %c0_i32 = arith.constant 0 : i32
    %c0_i32_0 = arith.constant 0 : i32
    %c0_i32_1 = arith.constant 0 : i32
    %c0_i32_2 = arith.constant 0 : i32
    return %c0_i32, %c0_i32_0, %c0_i32_1 : i32, i32, i32
  }
  func.func @transform_19(%arg0: i32) -> (i32, i32, i32) {
    %c0_i32 = arith.constant 0 : i32
    %c0_i32_0 = arith.constant 0 : i32
    %c0_i32_1 = arith.constant 0 : i32
    %c0_i32_2 = arith.constant 0 : i32
    return %c0_i32, %c0_i32_0, %c0_i32_1 : i32, i32, i32
  }
  func.func @transform_20(%arg0: i32) -> (i32, i32) {
    %c0_i32 = arith.constant 0 : i32
    %c0_i32_0 = arith.constant 0 : i32
    %c0_i32_1 = arith.constant 0 : i32
    return %c0_i32, %c0_i32_0 : i32, i32
  }
  func.func @transform_21(%arg0: i32) -> (i32, i32) {
    %c0_i32 = arith.constant 0 : i32
    %c0_i32_0 = arith.constant 0 : i32
    %c0_i32_1 = arith.constant 0 : i32
    return %c0_i32, %c0_i32_0 : i32, i32
  }
  func.func @transform_22(%arg0: i32) -> (i32, i32) {
    %c0_i32 = arith.constant 0 : i32
    %c0_i32_0 = arith.constant 0 : i32
    return %arg0, %c0_i32 : i32, i32
  }
}

</mosaic_0001>

<llo_original>
// kernel: rpe_transformer_forward.1
$region0: #{rpe_transformer_forward.1}
  #allocation0 [shape = 'u32[]', space=smem, size = 0x4, offset = 0x4, fixed_abs, tag = 'smem constant byte address 0x4 - core index']
  #allocation1 [shape = 'u32[144,128]{1,0:T(1,128)}', space=vmem, size = 0x12000, scoped, tag = 'internal scratch']
  %s0 = inlined_call_operand.vmem [shape: f32[16,4], index: 0, kind: input, shape index: {}]
  %s1 = inlined_call_operand.vmem [shape: f32[2,8,24], index: 1, kind: input, shape index: {}]
  %s2 = inlined_call_operand.vmem [shape: f32[4,32], index: 2, kind: input, shape index: {}]
  %s3 = inlined_call_operand.vmem [shape: f32[1,32], index: 3, kind: input, shape index: {}]
  %s4 = inlined_call_operand.vmem [shape: f32[24,256], index: 4, kind: input, shape index: {}]
  %s5 = inlined_call_operand.vmem [shape: f32[1,256], index: 5, kind: input, shape index: {}]
  %s6 = inlined_call_operand.vmem [shape: f32[256,64], index: 6, kind: input, shape index: {}]
  %s7 = inlined_call_operand.vmem [shape: f32[1,64], index: 7, kind: input, shape index: {}]
  %s8 = inlined_call_operand.vmem [shape: f32[2,1,32], index: 8, kind: input, shape index: {}]
  %s9 = inlined_call_operand.vmem [shape: f32[2,1,32], index: 9, kind: input, shape index: {}]
  %s10 = inlined_call_operand.vmem [shape: f32[2,32,96], index: 10, kind: input, shape index: {}]
  %s11 = inlined_call_operand.vmem [shape: f32[2,1,96], index: 11, kind: input, shape index: {}]
  %s12 = inlined_call_operand.vmem [shape: f32[2,32,32], index: 12, kind: input, shape index: {}]
  %s13 = inlined_call_operand.vmem [shape: f32[2,1,32], index: 13, kind: input, shape index: {}]
  %s14 = inlined_call_operand.vmem [shape: f32[2,1,32], index: 14, kind: input, shape index: {}]
  %s15 = inlined_call_operand.vmem [shape: f32[2,1,32], index: 15, kind: input, shape index: {}]
  %s16 = inlined_call_operand.vmem [shape: f32[2,32,64], index: 16, kind: input, shape index: {}]
  %s17 = inlined_call_operand.vmem [shape: f32[2,1,64], index: 17, kind: input, shape index: {}]
  %s18 = inlined_call_operand.vmem [shape: f32[2,64,32], index: 18, kind: input, shape index: {}]
  %s19 = inlined_call_operand.vmem [shape: f32[2,1,32], index: 19, kind: input, shape index: {}]
  %s20 = inlined_call_operand.vmem [shape: f32[32,3], index: 20, kind: input, shape index: {}]
  %s21 = inlined_call_operand.vmem [shape: f32[1,3], index: 21, kind: input, shape index: {}]
  %s22 = inlined_call_operand.vmem [shape: f32[16,3], index: 22, kind: output, shape index: {}]
  %s23 = sld [smem:[#allocation0]]
  $region121: #{rpe_transformer_forward.1} parent=0
    _
  %s25 = ssub.s32 1, %s23
  %s26 = scalar_select 0, %s25, %s23
  loop: start=0, step=1, limit=4
  $region2: #{rpe_transformer_forward.1} parent=0 // loop_pre_header
    _
  $region3: #{rpe_transformer_forward.1} parent=0 // loop_header
    %s28 = sphi 0, %s32
    %p29 = scmp.ge.s32.totalorder %s28, 4
    %s38 = sphi 0, %s40
    %s41 = sphi 0, %s38
    %s42 = sphi 0, %s41
    %s58 = sphi 0, %s42
    %s64 = sphi 0, %s66
    %s67 = sphi 0, %s64
    %s68 = sphi 0, %s67
    %s84 = sphi 0, %s68
    %s88 = sphi 0, %s88
    %s90 = sphi 0, %s88
    %s91 = sphi 0, %s90
    %s105 = sphi 0, %s91
    %s109 = sphi 0, %s109
    %s111 = sphi 0, %s109
    %s112 = sphi 0, %s111
    %s126 = sphi 0, %s112
    %s130 = sphi 0, %s130
    %s132 = sphi 0, %s130
    %s133 = sphi 0, %s132
    %s147 = sphi 0, %s133
    %s151 = sphi 0, %s151
    %s153 = sphi 0, %s151
    %s154 = sphi 0, %s153
    %s168 = sphi 0, %s154
    %s172 = sphi 0, %s172
    %s174 = sphi 0, %s172
    %s175 = sphi 0, %s174
    %s189 = sphi 0, %s175
    %s193 = sphi 0, %s193
    %s195 = sphi 0, %s193
    %s196 = sphi 0, %s195
    %s210 = sphi 0, %s196
    %s214 = sphi 0, %s214
    %s216 = sphi 0, %s214
    %s217 = sphi 0, %s216
    %s231 = sphi 0, %s217
    %s235 = sphi 0, %s235
    %s237 = sphi 0, %s235
    %s238 = sphi 0, %s237
    %s252 = sphi 0, %s238
    %s256 = sphi 0, %s256
    %s258 = sphi 0, %s256
    %s259 = sphi 0, %s258
    %s273 = sphi 0, %s259
    %s277 = sphi 0, %s277
    %s279 = sphi 0, %s277
    %s280 = sphi 0, %s279
    %s294 = sphi 0, %s280
    %s298 = sphi 0, %s298
    %s300 = sphi 0, %s298
    %s301 = sphi 0, %s300
    %s315 = sphi 0, %s301
    %s319 = sphi 0, %s319
    %s321 = sphi 0, %s319
    %s322 = sphi 0, %s321
    %s336 = sphi 0, %s322
    %s340 = sphi 0, %s340
    %s342 = sphi 0, %s340
    %s343 = sphi 0, %s342
    %s357 = sphi 0, %s343
    %s361 = sphi 0, %s361
    %s363 = sphi 0, %s361
    %s364 = sphi 0, %s363
    %s378 = sphi 0, %s364
    %s382 = sphi 0, %s382
    %s384 = sphi 0, %s382
    %s385 = sphi 0, %s384
    %s399 = sphi 0, %s385
    %s403 = sphi 0, %s403
    %s405 = sphi 0, %s403
    %s406 = sphi 0, %s405
    %s420 = sphi 0, %s406
    %s424 = sphi 0, %s424
    %s426 = sphi 0, %s424
    %s427 = sphi 0, %s426
    %s441 = sphi 0, %s427
    %s445 = sphi 0, %s445
    %s447 = sphi 0, %s445
    %s448 = sphi 0, %s447
    %s462 = sphi 0, %s448
    %s466 = sphi 0, %s466
    %s468 = sphi 0, %s466
    %s469 = sphi 0, %s468
    %s483 = sphi 0, %s469
    %s487 = sphi 0, %s487
    %s489 = sphi 0, %s487
    %s490 = sphi 0, %s489
    %s504 = sphi 0, %s490
    %s510 = sphi 0, %s512
    %s513 = sphi 0, %s510
    %s514 = sphi 0, %s513
    %s530 = sphi 0, %s514
  $region4: #{rpe_transformer_forward.1} parent=0 // loop_header_branch
    %31 = sbr.rel (%p29) target = $region8
  $region5: #{rpe_transformer_forward.1} parent=0 // loop_body
    %s33 = ssub.s32 %s28, 1
    %s34 = ssub.s32 %s28, 2
    %s35 = sadd.s32 %s28, 1
    %s36 = ssub.s32 %s28, %s35
    %p37 = scmp.eq.s32.totalorder %s36, 0
    %s39 = sadd.s32 %s38, 1
    %s40 = scalar_select %p37, %s38, %s39
    %p43 = pneg %p37
    %p44 = scmp.eq.s32.totalorder %s28, 1
    %p45 = por %p43, %p44
    %p46 = scmp.ne.s32.totalorder %s38, %s41
    %p47 = scmp.eq.s32.totalorder %s28, 0
    %p48 = por %p46, %p47
    %p49 = scmp.ne.s32.totalorder %s38, %s41
    %p50 = scmp.eq.s32.totalorder %s33, 1
    %p51 = por %p49, %p50
    %p52 = scmp.ne.s32.totalorder %s41, %s42
    %p53 = scmp.eq.s32.totalorder %s33, 0
    %p54 = por %p52, %p53
    %p55 = scmp.ne.s32.totalorder %s41, %s42
    %p56 = scmp.eq.s32.totalorder %s34, 1
    %p57 = por %p55, %p56
    %p59 = scmp.ne.s32.totalorder %s42, %s58
    %p60 = scmp.eq.s32.totalorder %s34, 0
    %p61 = por %p59, %p60
    %s62 = ssub.s32 %s28, %s35
    %p63 = scmp.eq.s32.totalorder %s62, 0
    %s65 = sadd.s32 %s64, 1
    %s66 = scalar_select %p63, %s64, %s65
    %p69 = pneg %p63
    %p70 = scmp.eq.s32.totalorder %s28, 1
    %p71 = por %p69, %p70
    %p72 = scmp.ne.s32.totalorder %s64, %s67
    %p73 = scmp.eq.s32.totalorder %s28, 0
    %p74 = por %p72, %p73
    %p75 = scmp.ne.s32.totalorder %s64, %s67
    %p76 = scmp.eq.s32.totalorder %s33, 1
    %p77 = por %p75, %p76
    %p78 = scmp.ne.s32.totalorder %s67, %s68
    %p79 = scmp.eq.s32.totalorder %s33, 0
    %p80 = por %p78, %p79
    %p81 = scmp.ne.s32.totalorder %s67, %s68
    %p82 = scmp.eq.s32.totalorder %s34, 1
    %p83 = por %p81, %p82
    %p85 = scmp.ne.s32.totalorder %s68, %s84
    %p86 = scmp.eq.s32.totalorder %s34, 0
    %p87 = por %p85, %p86
    %s89 = sadd.s32 %s88, 1
    %p92 = scmp.eq.s32.totalorder %s28, 1
    %p93 = scmp.ne.s32.totalorder %s88, %s90
    %p94 = scmp.eq.s32.totalorder %s28, 0
    %p95 = por %p93, %p94
    %p96 = scmp.ne.s32.totalorder %s88, %s90
    %p97 = scmp.eq.s32.totalorder %s33, 1
    %p98 = por %p96, %p97
    %p99 = scmp.ne.s32.totalorder %s90, %s91
    %p100 = scmp.eq.s32.totalorder %s33, 0
    %p101 = por %p99, %p100
    %p102 = scmp.ne.s32.totalorder %s90, %s91
    %p103 = scmp.eq.s32.totalorder %s34, 1
    %p104 = por %p102, %p103
    %p106 = scmp.ne.s32.totalorder %s91, %s105
    %p107 = scmp.eq.s32.totalorder %s34, 0
    %p108 = por %p106, %p107
    %s110 = sadd.s32 %s109, 1
    %p113 = scmp.eq.s32.totalorder %s28, 1
    %p114 = scmp.ne.s32.totalorder %s109, %s111
    %p115 = scmp.eq.s32.totalorder %s28, 0
    %p116 = por %p114, %p115
    %p117 = scmp.ne.s32.totalorder %s109, %s111
    %p118 = scmp.eq.s32.totalorder %s33, 1
    %p119 = por %p117, %p118
    %p120 = scmp.ne.s32.totalorder %s111, %s112
    %p121 = scmp.eq.s32.totalorder %s33, 0
    %p122 = por %p120, %p121
    %p123 = scmp.ne.s32.totalorder %s111, %s112
    %p124 = scmp.eq.s32.totalorder %s34, 1
    %p125 = por %p123, %p124
    %p127 = scmp.ne.s32.totalorder %s112, %s126
    %p128 = scmp.eq.s32.totalorder %s34, 0
    %p129 = por %p127, %p128
    %s131 = sadd.s32 %s130, 1
    %p134 = scmp.eq.s32.totalorder %s28, 1
    %p135 = scmp.ne.s32.totalorder %s130, %s132
    %p136 = scmp.eq.s32.totalorder %s28, 0
    %p137 = por %p135, %p136
    %p138 = scmp.ne.s32.totalorder %s130, %s132
    %p139 = scmp.eq.s32.totalorder %s33, 1
    %p140 = por %p138, %p139
    %p141 = scmp.ne.s32.totalorder %s132, %s133
    %p142 = scmp.eq.s32.totalorder %s33, 0
    %p143 = por %p141, %p142
    %p144 = scmp.ne.s32.totalorder %s132, %s133
    %p145 = scmp.eq.s32.totalorder %s34, 1
    %p146 = por %p144, %p145
    %p148 = scmp.ne.s32.totalorder %s133, %s147
    %p149 = scmp.eq.s32.totalorder %s34, 0
    %p150 = por %p148, %p149
    %s152 = sadd.s32 %s151, 1
    %p155 = scmp.eq.s32.totalorder %s28, 1
    %p156 = scmp.ne.s32.totalorder %s151, %s153
    %p157 = scmp.eq.s32.totalorder %s28, 0
    %p158 = por %p156, %p157
    %p159 = scmp.ne.s32.totalorder %s151, %s153
    %p160 = scmp.eq.s32.totalorder %s33, 1
    %p161 = por %p159, %p160
    %p162 = scmp.ne.s32.totalorder %s153, %s154
    %p163 = scmp.eq.s32.totalorder %s33, 0
    %p164 = por %p162, %p163
    %p165 = scmp.ne.s32.totalorder %s153, %s154
    %p166 = scmp.eq.s32.totalorder %s34, 1
    %p167 = por %p165, %p166
    %p169 = scmp.ne.s32.totalorder %s154, %s168
    %p170 = scmp.eq.s32.totalorder %s34, 0
    %p171 = por %p169, %p170
    %s173 = sadd.s32 %s172, 1
    %p176 = scmp.eq.s32.totalorder %s28, 1
    %p177 = scmp.ne.s32.totalorder %s172, %s174
    %p178 = scmp.eq.s32.totalorder %s28, 0
    %p179 = por %p177, %p178
    %p180 = scmp.ne.s32.totalorder %s172, %s174
    %p181 = scmp.eq.s32.totalorder %s33, 1
    %p182 = por %p180, %p181
    %p183 = scmp.ne.s32.totalorder %s174, %s175
    %p184 = scmp.eq.s32.totalorder %s33, 0
    %p185 = por %p183, %p184
    %p186 = scmp.ne.s32.totalorder %s174, %s175
    %p187 = scmp.eq.s32.totalorder %s34, 1
    %p188 = por %p186, %p187
    %p190 = scmp.ne.s32.totalorder %s175, %s189
    %p191 = scmp.eq.s32.totalorder %s34, 0
    %p192 = por %p190, %p191
    %s194 = sadd.s32 %s193, 1
    %p197 = scmp.eq.s32.totalorder %s28, 1
    %p198 = scmp.ne.s32.totalorder %s193, %s195
    %p199 = scmp.eq.s32.totalorder %s28, 0
    %p200 = por %p198, %p199
    %p201 = scmp.ne.s32.totalorder %s193, %s195
    %p202 = scmp.eq.s32.totalorder %s33, 1
    %p203 = por %p201, %p202
    %p204 = scmp.ne.s32.totalorder %s195, %s196
    %p205 = scmp.eq.s32.totalorder %s33, 0
    %p206 = por %p204, %p205
    %p207 = scmp.ne.s32.totalorder %s195, %s196
    %p208 = scmp.eq.s32.totalorder %s34, 1
    %p209 = por %p207, %p208
    %p211 = scmp.ne.s32.totalorder %s196, %s210
    %p212 = scmp.eq.s32.totalorder %s34, 0
    %p213 = por %p211, %p212
    %s215 = sadd.s32 %s214, 1
    %p218 = scmp.eq.s32.totalorder %s28, 1
    %p219 = scmp.ne.s32.totalorder %s214, %s216
    %p220 = scmp.eq.s32.totalorder %s28, 0
    %p221 = por %p219, %p220
    %p222 = scmp.ne.s32.totalorder %s214, %s216
    %p223 = scmp.eq.s32.totalorder %s33, 1
    %p224 = por %p222, %p223
    %p225 = scmp.ne.s32.totalorder %s216, %s217
    %p226 = scmp.eq.s32.totalorder %s33, 0
    %p227 = por %p225, %p226
    %p228 = scmp.ne.s32.totalorder %s216, %s217
    %p229 = scmp.eq.s32.totalorder %s34, 1
    %p230 = por %p228, %p229
    %p232 = scmp.ne.s32.totalorder %s217, %s231
    %p233 = scmp.eq.s32.totalorder %s34, 0
    %p234 = por %p232, %p233
    %s236 = sadd.s32 %s235, 1
    %p239 = scmp.eq.s32.totalorder %s28, 1
    %p240 = scmp.ne.s32.totalorder %s235, %s237
    %p241 = scmp.eq.s32.totalorder %s28, 0
    %p242 = por %p240, %p241
    %p243 = scmp.ne.s32.totalorder %s235, %s237
    %p244 = scmp.eq.s32.totalorder %s33, 1
    %p245 = por %p243, %p244
    %p246 = scmp.ne.s32.totalorder %s237, %s238
    %p247 = scmp.eq.s32.totalorder %s33, 0
    %p248 = por %p246, %p247
    %p249 = scmp.ne.s32.totalorder %s237, %s238
    %p250 = scmp.eq.s32.totalorder %s34, 1
    %p251 = por %p249, %p250
    %p253 = scmp.ne.s32.totalorder %s238, %s252
    %p254 = scmp.eq.s32.totalorder %s34, 0
    %p255 = por %p253, %p254
    %s257 = sadd.s32 %s256, 1
    %p260 = scmp.eq.s32.totalorder %s28, 1
    %p261 = scmp.ne.s32.totalorder %s256, %s258
    %p262 = scmp.eq.s32.totalorder %s28, 0
    %p263 = por %p261, %p262
    %p264 = scmp.ne.s32.totalorder %s256, %s258
    %p265 = scmp.eq.s32.totalorder %s33, 1
    %p266 = por %p264, %p265
    %p267 = scmp.ne.s32.totalorder %s258, %s259
    %p268 = scmp.eq.s32.totalorder %s33, 0
    %p269 = por %p267, %p268
    %p270 = scmp.ne.s32.totalorder %s258, %s259
    %p271 = scmp.eq.s32.totalorder %s34, 1
    %p272 = por %p270, %p271
    %p274 = scmp.ne.s32.totalorder %s259, %s273
    %p275 = scmp.eq.s32.totalorder %s34, 0
    %p276 = por %p274, %p275
    %s278 = sadd.s32 %s277, 1
    %p281 = scmp.eq.s32.totalorder %s28, 1
    %p282 = scmp.ne.s32.totalorder %s277, %s279
    %p283 = scmp.eq.s32.totalorder %s28, 0
    %p284 = por %p282, %p283
    %p285 = scmp.ne.s32.totalorder %s277, %s279
    %p286 = scmp.eq.s32.totalorder %s33, 1
    %p287 = por %p285, %p286
    %p288 = scmp.ne.s32.totalorder %s279, %s280
    %p289 = scmp.eq.s32.totalorder %s33, 0
    %p290 = por %p288, %p289
    %p291 = scmp.ne.s32.totalorder %s279, %s280
    %p292 = scmp.eq.s32.totalorder %s34, 1
    %p293 = por %p291, %p292
    %p295 = scmp.ne.s32.totalorder %s280, %s294
    %p296 = scmp.eq.s32.totalorder %s34, 0
    %p297 = por %p295, %p296
    %s299 = sadd.s32 %s298, 1
    %p302 = scmp.eq.s32.totalorder %s28, 1
    %p303 = scmp.ne.s32.totalorder %s298, %s300
    %p304 = scmp.eq.s32.totalorder %s28, 0
    %p305 = por %p303, %p304
    %p306 = scmp.ne.s32.totalorder %s298, %s300
    %p307 = scmp.eq.s32.totalorder %s33, 1
    %p308 = por %p306, %p307
    %p309 = scmp.ne.s32.totalorder %s300, %s301
    %p310 = scmp.eq.s32.totalorder %s33, 0
    %p311 = por %p309, %p310
    %p312 = scmp.ne.s32.totalorder %s300, %s301
    %p313 = scmp.eq.s32.totalorder %s34, 1
    %p314 = por %p312, %p313
    %p316 = scmp.ne.s32.totalorder %s301, %s315
    %p317 = scmp.eq.s32.totalorder %s34, 0
    %p318 = por %p316, %p317
    %s320 = sadd.s32 %s319, 1
    %p323 = scmp.eq.s32.totalorder %s28, 1
    %p324 = scmp.ne.s32.totalorder %s319, %s321
    %p325 = scmp.eq.s32.totalorder %s28, 0
    %p326 = por %p324, %p325
    %p327 = scmp.ne.s32.totalorder %s319, %s321
    %p328 = scmp.eq.s32.totalorder %s33, 1
    %p329 = por %p327, %p328
    %p330 = scmp.ne.s32.totalorder %s321, %s322
    %p331 = scmp.eq.s32.totalorder %s33, 0
    %p332 = por %p330, %p331
    %p333 = scmp.ne.s32.totalorder %s321, %s322
    %p334 = scmp.eq.s32.totalorder %s34, 1
    %p335 = por %p333, %p334
    %p337 = scmp.ne.s32.totalorder %s322, %s336
    %p338 = scmp.eq.s32.totalorder %s34, 0
    %p339 = por %p337, %p338
    %s341 = sadd.s32 %s340, 1
    %p344 = scmp.eq.s32.totalorder %s28, 1
    %p345 = scmp.ne.s32.totalorder %s340, %s342
    %p346 = scmp.eq.s32.totalorder %s28, 0
    %p347 = por %p345, %p346
    %p348 = scmp.ne.s32.totalorder %s340, %s342
    %p349 = scmp.eq.s32.totalorder %s33, 1
    %p350 = por %p348, %p349
    %p351 = scmp.ne.s32.totalorder %s342, %s343
    %p352 = scmp.eq.s32.totalorder %s33, 0
    %p353 = por %p351, %p352
    %p354 = scmp.ne.s32.totalorder %s342, %s343
    %p355 = scmp.eq.s32.totalorder %s34, 1
    %p356 = por %p354, %p355
    %p358 = scmp.ne.s32.totalorder %s343, %s357
    %p359 = scmp.eq.s32.totalorder %s34, 0
    %p360 = por %p358, %p359
    %s362 = sadd.s32 %s361, 1
    %p365 = scmp.eq.s32.totalorder %s28, 1
    %p366 = scmp.ne.s32.totalorder %s361, %s363
    %p367 = scmp.eq.s32.totalorder %s28, 0
    %p368 = por %p366, %p367
    %p369 = scmp.ne.s32.totalorder %s361, %s363
    %p370 = scmp.eq.s32.totalorder %s33, 1
    %p371 = por %p369, %p370
    %p372 = scmp.ne.s32.totalorder %s363, %s364
    %p373 = scmp.eq.s32.totalorder %s33, 0
    %p374 = por %p372, %p373
    %p375 = scmp.ne.s32.totalorder %s363, %s364
    %p376 = scmp.eq.s32.totalorder %s34, 1
    %p377 = por %p375, %p376
    %p379 = scmp.ne.s32.totalorder %s364, %s378
    %p380 = scmp.eq.s32.totalorder %s34, 0
    %p381 = por %p379, %p380
    %s383 = sadd.s32 %s382, 1
    %p386 = scmp.eq.s32.totalorder %s28, 1
    %p387 = scmp.ne.s32.totalorder %s382, %s384
    %p388 = scmp.eq.s32.totalorder %s28, 0
    %p389 = por %p387, %p388
    %p390 = scmp.ne.s32.totalorder %s382, %s384
    %p391 = scmp.eq.s32.totalorder %s33, 1
    %p392 = por %p390, %p391
    %p393 = scmp.ne.s32.totalorder %s384, %s385
    %p394 = scmp.eq.s32.totalorder %s33, 0
    %p395 = por %p393, %p394
    %p396 = scmp.ne.s32.totalorder %s384, %s385
    %p397 = scmp.eq.s32.totalorder %s34, 1
    %p398 = por %p396, %p397
    %p400 = scmp.ne.s32.totalorder %s385, %s399
    %p401 = scmp.eq.s32.totalorder %s34, 0
    %p402 = por %p400, %p401
    %s404 = sadd.s32 %s403, 1
    %p407 = scmp.eq.s32.totalorder %s28, 1
    %p408 = scmp.ne.s32.totalorder %s403, %s405
    %p409 = scmp.eq.s32.totalorder %s28, 0
    %p410 = por %p408, %p409
    %p411 = scmp.ne.s32.totalorder %s403, %s405
    %p412 = scmp.eq.s32.totalorder %s33, 1
    %p413 = por %p411, %p412
    %p414 = scmp.ne.s32.totalorder %s405, %s406
    %p415 = scmp.eq.s32.totalorder %s33, 0
    %p416 = por %p414, %p415
    %p417 = scmp.ne.s32.totalorder %s405, %s406
    %p418 = scmp.eq.s32.totalorder %s34, 1
    %p419 = por %p417, %p418
    %p421 = scmp.ne.s32.totalorder %s406, %s420
    %p422 = scmp.eq.s32.totalorder %s34, 0
    %p423 = por %p421, %p422
    %s425 = sadd.s32 %s424, 1
    %p428 = scmp.eq.s32.totalorder %s28, 1
    %p429 = scmp.ne.s32.totalorder %s424, %s426
    %p430 = scmp.eq.s32.totalorder %s28, 0
    %p431 = por %p429, %p430
    %p432 = scmp.ne.s32.totalorder %s424, %s426
    %p433 = scmp.eq.s32.totalorder %s33, 1
    %p434 = por %p432, %p433
    %p435 = scmp.ne.s32.totalorder %s426, %s427
    %p436 = scmp.eq.s32.totalorder %s33, 0
    %p437 = por %p435, %p436
    %p438 = scmp.ne.s32.totalorder %s426, %s427
    %p439 = scmp.eq.s32.totalorder %s34, 1
    %p440 = por %p438, %p439
    %p442 = scmp.ne.s32.totalorder %s427, %s441
    %p443 = scmp.eq.s32.totalorder %s34, 0
    %p444 = por %p442, %p443
    %s446 = sadd.s32 %s445, 1
    %p449 = scmp.eq.s32.totalorder %s28, 1
    %p450 = scmp.ne.s32.totalorder %s445, %s447
    %p451 = scmp.eq.s32.totalorder %s28, 0
    %p452 = por %p450, %p451
    %p453 = scmp.ne.s32.totalorder %s445, %s447
    %p454 = scmp.eq.s32.totalorder %s33, 1
    %p455 = por %p453, %p454
    %p456 = scmp.ne.s32.totalorder %s447, %s448
    %p457 = scmp.eq.s32.totalorder %s33, 0
    %p458 = por %p456, %p457
    %p459 = scmp.ne.s32.totalorder %s447, %s448
    %p460 = scmp.eq.s32.totalorder %s34, 1
    %p461 = por %p459, %p460
    %p463 = scmp.ne.s32.totalorder %s448, %s462
    %p464 = scmp.eq.s32.totalorder %s34, 0
    %p465 = por %p463, %p464
    %s467 = sadd.s32 %s466, 1
    %p470 = scmp.eq.s32.totalorder %s28, 1
    %p471 = scmp.ne.s32.totalorder %s466, %s468
    %p472 = scmp.eq.s32.totalorder %s28, 0
    %p473 = por %p471, %p472
    %p474 = scmp.ne.s32.totalorder %s466, %s468
    %p475 = scmp.eq.s32.totalorder %s33, 1
    %p476 = por %p474, %p475
    %p477 = scmp.ne.s32.totalorder %s468, %s469
    %p478 = scmp.eq.s32.totalorder %s33, 0
    %p479 = por %p477, %p478
    %p480 = scmp.ne.s32.totalorder %s468, %s469
    %p481 = scmp.eq.s32.totalorder %s34, 1
    %p482 = por %p480, %p481
    %p484 = scmp.ne.s32.totalorder %s469, %s483
    %p485 = scmp.eq.s32.totalorder %s34, 0
    %p486 = por %p484, %p485
    %s488 = sadd.s32 %s487, 1
    %p491 = scmp.eq.s32.totalorder %s28, 1
    %p492 = scmp.ne.s32.totalorder %s487, %s489
    %p493 = scmp.eq.s32.totalorder %s28, 0
    %p494 = por %p492, %p493
    %p495 = scmp.ne.s32.totalorder %s487, %s489
    %p496 = scmp.eq.s32.totalorder %s33, 1
    %p497 = por %p495, %p496
    %p498 = scmp.ne.s32.totalorder %s489, %s490
    %p499 = scmp.eq.s32.totalorder %s33, 0
    %p500 = por %p498, %p499
    %p501 = scmp.ne.s32.totalorder %s489, %s490
    %p502 = scmp.eq.s32.totalorder %s34, 1
    %p503 = por %p501, %p502
    %p505 = scmp.ne.s32.totalorder %s490, %s504
    %p506 = scmp.eq.s32.totalorder %s34, 0
    %p507 = por %p505, %p506
    %s508 = ssub.s32 %s28, %s35
    %p509 = scmp.eq.s32.totalorder %s508, 0
    %s511 = sadd.s32 %s510, 1
    %s512 = scalar_select %p509, %s510, %s511
    %p515 = pneg %p509
    %p516 = scmp.eq.s32.totalorder %s28, 1
    %p517 = por %p515, %p516
    %p518 = scmp.ne.s32.totalorder %s510, %s513
    %p519 = scmp.eq.s32.totalorder %s28, 0
    %p520 = por %p518, %p519
    %p521 = scmp.ne.s32.totalorder %s510, %s513
    %p522 = scmp.eq.s32.totalorder %s33, 1
    %p523 = por %p521, %p522
    %p524 = scmp.ne.s32.totalorder %s513, %s514
    %p525 = scmp.eq.s32.totalorder %s33, 0
    %p526 = por %p524, %p525
    %p527 = scmp.ne.s32.totalorder %s513, %s514
    %p528 = scmp.eq.s32.totalorder %s34, 1
    %p529 = por %p527, %p528
    %p531 = scmp.ne.s32.totalorder %s514, %s530
    %p532 = scmp.eq.s32.totalorder %s34, 0
    %p533 = por %p531, %p532
    %p534 = scmp.le.s32.totalorder 1, %s28
    %p535 = scmp.lt.s32.totalorder %s28, 3
    %p536 = pnand %p534, %p535
    %p537 = pneg %p536
    // Predicated region
    $region9: #{rpe_transformer_forward.1} parent=5 // pred_check
      _
    $region10: #{rpe_transformer_forward.1} parent=5 // pred_check_branch
      %539 = sbr.rel (%p536) target = $region12
    $region11: #{rpe_transformer_forward.1} parent=5 // pred_region
      %s540 = ssub.s32 %s28, 1
      // Predicated region
      $region13: #{rpe_transformer_forward.1} parent=11 // pred_check
        %p541 = pneg %p101
      $region14: #{rpe_transformer_forward.1} parent=11 // pred_check_branch
        %543 = sbr.rel (%p541) target = $region16
      $region15: #{rpe_transformer_forward.1} parent=11 // pred_region
        _
      $region16: #{rpe_transformer_forward.1} parent=11 // pred_fallthru
        _
      // Predicated region
      $region17: #{rpe_transformer_forward.1} parent=11 // pred_check
        %p544 = pneg %p122
      $region18: #{rpe_transformer_forward.1} parent=11 // pred_check_branch
        %546 = sbr.rel (%p544) target = $region20
      $region19: #{rpe_transformer_forward.1} parent=11 // pred_region
        _
      $region20: #{rpe_transformer_forward.1} parent=11 // pred_fallthru
        _
      // Predicated region
      $region21: #{rpe_transformer_forward.1} parent=11 // pred_check
        %p547 = pneg %p143
      $region22: #{rpe_transformer_forward.1} parent=11 // pred_check_branch
        %549 = sbr.rel (%p547) target = $region24
      $region23: #{rpe_transformer_forward.1} parent=11 // pred_region
        _
      $region24: #{rpe_transformer_forward.1} parent=11 // pred_fallthru
        _
      // Predicated region
      $region25: #{rpe_transformer_forward.1} parent=11 // pred_check
        %p550 = pneg %p164
      $region26: #{rpe_transformer_forward.1} parent=11 // pred_check_branch
        %552 = sbr.rel (%p550) target = $region28
      $region27: #{rpe_transformer_forward.1} parent=11 // pred_region
        _
      $region28: #{rpe_transformer_forward.1} parent=11 // pred_fallthru
        _
      // Predicated region
      $region29: #{rpe_transformer_forward.1} parent=11 // pred_check
        %p553 = pneg %p185
      $region30: #{rpe_transformer_forward.1} parent=11 // pred_check_branch
        %555 = sbr.rel (%p553) target = $region32
      $region31: #{rpe_transformer_forward.1} parent=11 // pred_region
        _
      $region32: #{rpe_transformer_forward.1} parent=11 // pred_fallthru
        _
      // Predicated region
      $region33: #{rpe_transformer_forward.1} parent=11 // pred_check
        %p556 = pneg %p206
      $region34: #{rpe_transformer_forward.1} parent=11 // pred_check_branch
        %558 = sbr.rel (%p556) target = $region36
      $region35: #{rpe_transformer_forward.1} parent=11 // pred_region
        _
      $region36: #{rpe_transformer_forward.1} parent=11 // pred_fallthru
        _
      // Predicated region
      $region37: #{rpe_transformer_forward.1} parent=11 // pred_check
        %p559 = pneg %p227
      $region38: #{rpe_transformer_forward.1} parent=11 // pred_check_branch
        %561 = sbr.rel (%p559) target = $region40
      $region39: #{rpe_transformer_forward.1} parent=11 // pred_region
        _
      $region40: #{rpe_transformer_forward.1} parent=11 // pred_fallthru
        _
      // Predicated region
      $region41: #{rpe_transformer_forward.1} parent=11 // pred_check
        %p562 = pneg %p248
      $region42: #{rpe_transformer_forward.1} parent=11 // pred_check_branch
        %564 = sbr.rel (%p562) target = $region44
      $region43: #{rpe_transformer_forward.1} parent=11 // pred_region
        _
      $region44: #{rpe_transformer_forward.1} parent=11 // pred_fallthru
        _
      // Predicated region
      $region45: #{rpe_transformer_forward.1} parent=11 // pred_check
        %p565 = pneg %p269
      $region46: #{rpe_transformer_forward.1} parent=11 // pred_check_branch
        %567 = sbr.rel (%p565) target = $region48
      $region47: #{rpe_transformer_forward.1} parent=11 // pred_region
        _
      $region48: #{rpe_transformer_forward.1} parent=11 // pred_fallthru
        _
      // Predicated region
      $region49: #{rpe_transformer_forward.1} parent=11 // pred_check
        %p568 = pneg %p290
      $region50: #{rpe_transformer_forward.1} parent=11 // pred_check_branch
        %570 = sbr.rel (%p568) target = $region52
      $region51: #{rpe_transformer_forward.1} parent=11 // pred_region
        _
      $region52: #{rpe_transformer_forward.1} parent=11 // pred_fallthru
        _
      // Predicated region
      $region53: #{rpe_transformer_forward.1} parent=11 // pred_check
        %p571 = pneg %p311
      $region54: #{rpe_transformer_forward.1} parent=11 // pred_check_branch
        %573 = sbr.rel (%p571) target = $region56
      $region55: #{rpe_transformer_forward.1} parent=11 // pred_region
        _
      $region56: #{rpe_transformer_forward.1} parent=11 // pred_fallthru
        _
      // Predicated region
      $region57: #{rpe_transformer_forward.1} parent=11 // pred_check
        %p574 = pneg %p332
      $region58: #{rpe_transformer_forward.1} parent=11 // pred_check_branch
        %576 = sbr.rel (%p574) target = $region60
      $region59: #{rpe_transformer_forward.1} parent=11 // pred_region
        _
      $region60: #{rpe_transformer_forward.1} parent=11 // pred_fallthru
        _
      // Predicated region
      $region61: #{rpe_transformer_forward.1} parent=11 // pred_check
        %p577 = pneg %p353
      $region62: #{rpe_transformer_forward.1} parent=11 // pred_check_branch
        %579 = sbr.rel (%p577) target = $region64
      $region63: #{rpe_transformer_forward.1} parent=11 // pred_region
        _
      $region64: #{rpe_transformer_forward.1} parent=11 // pred_fallthru
        _
      // Predicated region
      $region65: #{rpe_transformer_forward.1} parent=11 // pred_check
        %p580 = pneg %p374
      $region66: #{rpe_transformer_forward.1} parent=11 // pred_check_branch
        %582 = sbr.rel (%p580) target = $region68
      $region67: #{rpe_transformer_forward.1} parent=11 // pred_region
        _
      $region68: #{rpe_transformer_forward.1} parent=11 // pred_fallthru
        _
      // Predicated region
      $region69: #{rpe_transformer_forward.1} parent=11 // pred_check
        %p583 = pneg %p395
      $region70: #{rpe_transformer_forward.1} parent=11 // pred_check_branch
        %585 = sbr.rel (%p583) target = $region72
      $region71: #{rpe_transformer_forward.1} parent=11 // pred_region
        _
      $region72: #{rpe_transformer_forward.1} parent=11 // pred_fallthru
        _
      // Predicated region
      $region73: #{rpe_transformer_forward.1} parent=11 // pred_check
        %p586 = pneg %p416
      $region74: #{rpe_transformer_forward.1} parent=11 // pred_check_branch
        %588 = sbr.rel (%p586) target = $region76
      $region75: #{rpe_transformer_forward.1} parent=11 // pred_region
        _
      $region76: #{rpe_transformer_forward.1} parent=11 // pred_fallthru
        _
      // Predicated region
      $region77: #{rpe_transformer_forward.1} parent=11 // pred_check
        %p589 = pneg %p437
      $region78: #{rpe_transformer_forward.1} parent=11 // pred_check_branch
        %591 = sbr.rel (%p589) target = $region80
      $region79: #{rpe_transformer_forward.1} parent=11 // pred_region
        _
      $region80: #{rpe_transformer_forward.1} parent=11 // pred_fallthru
        _
      // Predicated region
      $region81: #{rpe_transformer_forward.1} parent=11 // pred_check
        %p592 = pneg %p458
      $region82: #{rpe_transformer_forward.1} parent=11 // pred_check_branch
        %594 = sbr.rel (%p592) target = $region84
      $region83: #{rpe_transformer_forward.1} parent=11 // pred_region
        _
      $region84: #{rpe_transformer_forward.1} parent=11 // pred_fallthru
        _
      // Predicated region
      $region85: #{rpe_transformer_forward.1} parent=11 // pred_check
        %p595 = pneg %p479
      $region86: #{rpe_transformer_forward.1} parent=11 // pred_check_branch
        %597 = sbr.rel (%p595) target = $region88
      $region87: #{rpe_transformer_forward.1} parent=11 // pred_region
        _
      $region88: #{rpe_transformer_forward.1} parent=11 // pred_fallthru
        _
      // Predicated region
      $region89: #{rpe_transformer_forward.1} parent=11 // pred_check
        %p598 = pneg %p500
      $region90: #{rpe_transformer_forward.1} parent=11 // pred_check_branch
        %600 = sbr.rel (%p598) target = $region92
      $region91: #{rpe_transformer_forward.1} parent=11 // pred_region
        _
      $region92: #{rpe_transformer_forward.1} parent=11 // pred_fallthru
        _
    $region12: #{rpe_transformer_forward.1} parent=5 // pred_fallthru
      _
    %p601 = scmp.lt.s32.totalorder %s28, 2
    // Predicated region
    $region93: #{rpe_transformer_forward.1} parent=5 // pred_check
      %p602 = pneg %p601
    $region94: #{rpe_transformer_forward.1} parent=5 // pred_check_branch
      %604 = sbr.rel (%p602) target = $region96
    $region95: #{rpe_transformer_forward.1} parent=5 // pred_region
      // Predicated region
      $region97: #{rpe_transformer_forward.1} parent=95 // pred_check
        %p605 = pneg %p48
      $region98: #{rpe_transformer_forward.1} parent=95 // pred_check_branch
        %607 = sbr.rel (%p605) target = $region100
      $region99: #{rpe_transformer_forward.1} parent=95 // pred_region
        %p608 = scmp.lt.s32.totalorder %s28, 1
        %s609 = scalar_select %p608, %s28, 1
        %s610 = smul.addr %s609, 8
        %s611 = scalar_lea.vmem %s0, %s610
      $region100: #{rpe_transformer_forward.1} parent=95 // pred_fallthru
        _
      // Predicated region
      $region101: #{rpe_transformer_forward.1} parent=95 // pred_check
        %p612 = pneg %p74
      $region102: #{rpe_transformer_forward.1} parent=95 // pred_check_branch
        %614 = sbr.rel (%p612) target = $region104
      $region103: #{rpe_transformer_forward.1} parent=95 // pred_region
        %p615 = scmp.lt.s32.totalorder %s28, 1
        %s616 = scalar_select %p615, %s28, 1
        %s617 = smul.addr %s616, 8
        %s618 = scalar_lea.vmem %s1, %s617
      $region104: #{rpe_transformer_forward.1} parent=95 // pred_fallthru
        _
    $region96: #{rpe_transformer_forward.1} parent=5 // pred_fallthru
      _
    %p619 = scmp.le.s32.totalorder 1, %s28
    %p620 = scmp.lt.s32.totalorder %s28, 3
    %p621 = pnand %p619, %p620
    %p622 = pneg %p621
    // Predicated region
    $region105: #{rpe_transformer_forward.1} parent=5 // pred_check
      _
    $region106: #{rpe_transformer_forward.1} parent=5 // pred_check_branch
      %624 = sbr.rel (%p621) target = $region108
    $region107: #{rpe_transformer_forward.1} parent=5 // pred_region
      %s625 = ssub.s32 %s28, 1
      %p626 = scmp.lt.s32.totalorder %s33, 1
      %s627 = scalar_select %p626, %s33, 1
      %s628 = smul.addr %s627, 8
      %s629 = scalar_lea.vmem %s0, %s628
      %p630 = pneg %p54
      %p631 = pneg %p51
      %p632 = scmp.lt.s32.totalorder %s33, 1
      %s633 = scalar_select %p632, %s33, 1
      %s634 = smul.addr %s633, 8
      %s635 = scalar_lea.vmem %s1, %s634
      %p636 = pneg %p80
      %p637 = pneg %p77
      %p638 = pneg %p101
      %p639 = pneg %p98
      %p640 = pneg %p122
      %p641 = pneg %p119
      %p642 = pneg %p143
      %p643 = pneg %p140
      %p644 = pneg %p164
      %p645 = pneg %p161
      %p646 = pneg %p185
      %p647 = pneg %p182
      %p648 = pneg %p206
      %p649 = pneg %p203
      %p650 = pneg %p227
      %p651 = pneg %p224
      %p652 = pneg %p248
      %p653 = pneg %p245
      %p654 = pneg %p269
      %p655 = pneg %p266
      %p656 = pneg %p290
      %p657 = pneg %p287
      %p658 = pneg %p311
      %p659 = pneg %p308
      %p660 = pneg %p332
      %p661 = pneg %p329
      %p662 = pneg %p353
      %p663 = pneg %p350
      %p664 = pneg %p374
      %p665 = pneg %p371
      %p666 = pneg %p395
      %p667 = pneg %p392
      %p668 = pneg %p416
      %p669 = pneg %p413
      %p670 = pneg %p437
      %p671 = pneg %p434
      %p672 = pneg %p458
      %p673 = pneg %p455
      %p674 = pneg %p479
      %p675 = pneg %p476
      %p676 = pneg %p500
      %p677 = pneg %p497
      %p678 = pneg %p526
      %p679 = pneg %p523
      %p680 = scmp.lt.s32.totalorder %s33, 1
      %s681 = scalar_select %p680, %s33, 1
      %s682 = smul.addr %s681, 8
      %s683 = scalar_lea.vmem %s22, %s682
      %p684 = scmp.lt.s32.totalorder %s33, 1
      %s685 = scalar_select %p684, %s33, 1
      %s686 = smul.addr %s685, 8
      %s687 = scalar_lea.vmem %s0, %s686
      %p688 = scmp.lt.s32.totalorder %s33, 1
      %s689 = scalar_select %p688, %s33, 1
      %s690 = smul.addr %s689, 8
      %s691 = scalar_lea.vmem %s1, %s690
      %p692 = scmp.lt.s32.totalorder %s33, 1
      %s693 = scalar_select %p692, %s33, 1
      %s694 = smul.addr %s693, 8
      %s695 = scalar_lea.vmem %s22, %s694
      %v696 = vld [vmem:[%s691] sm:$0xff]
      %v697 = vld [vmem:[%s4] sm:$0xff]
      %v698 = vld [vmem:[%s4 + $0x8] sm:$0xff]
      %v699 = vld [vmem:[%s4 + $0x10] sm:$0xff]
      %v700 = vld [vmem:[%s4 + $0x18] sm:$0xff]
      %v701 = vld [vmem:[%s4 + $0x20] sm:$0xff]
      %v702 = vld [vmem:[%s4 + $0x28] sm:$0xff]
      %v703 = vld [vmem:[%s5] sm:$0x3]
      %v705 = vlaneseq
      %v706 = vshrl.u32 %v705, 7
      %v707 = vsub.s32 0, %v706
      %v708 = vrot.slane %v703, %v707
      %v709 = vlaneseq
      %v710 = vshrl.u32 %v709, 7
      %v711 = vsub.s32 1, %v710
      %v712 = vrot.slane %v703, %v711
      %vm715 = vcmask 195584
      %v717 = vsel %vm715, %v696, 0
      %719 = vmatprep.subr.mxu0 0.0
      %720 = vmatpush1.msra.mxu0 0.0
      %721 = vmatprep.subr.mxu0 0.0
      %722 = vmatpush1.msra.mxu0 0.0
      %723 = vmatprep.subr.mxu0 0.0
      %724 = vmatpush1.msra.mxu0 0.0
      %725 = vmatprep.subr.mxu0 0.0
      %726 = vmatpush1.msra.mxu0 0.0
      %727 = vmatprep.subr.mxu0 0.0
      %728 = vmatpush1.msra.mxu0 0.0
      %729 = vmatprep.subr.mxu0 0.0
      %730 = vmatpush1.msra.mxu0 0.0
      %731 = vmatprep.subr.mxu0 0.0
      %732 = vmatpush1.msra.mxu0 0.0
      %733 = vmatprep.subr.mxu0 0.0
      %734 = vmatpush1.msra.mxu0 0.0
      %735 = vmatprep.subr.mxu0 0.0
      %736 = vmatpush1.msra.mxu0 0.0
      %737 = vmatprep.subr.mxu0 0.0
      %738 = vmatpush1.msra.mxu0 0.0
      %739 = vmatprep.subr.mxu0 0.0
      %740 = vmatpush1.msra.mxu0 0.0
      %741 = vmatprep.subr.mxu0 0.0
      %742 = vmatpush1.msra.mxu0 0.0
      %743 = vmatprep.subr.mxu0 0.0
      %744 = vmatpush1.msra.mxu0 0.0
      %745 = vmatprep.subr.mxu0 %v702
      %746 = vmatpush1.msra.mxu0 %v701
      %747 = vmatprep.subr.mxu0 %v700
      %748 = vmatpush1.msra.mxu0 %v699
      %749 = vmatprep.subr.mxu0 %v698
      %750 = vmatpush1.msra.mxu0 %v697
      %751 = vmatprep.subr.mxu0 0.0
      %752 = vmatpush2.msra.mxu0 0.0
      %753 = vmatprep.subr.mxu0 0.0
      %754 = vmatpush2.msra.mxu0 0.0
      %755 = vmatprep.subr.mxu0 0.0
      %756 = vmatpush2.msra.mxu0 0.0
      %757 = vmatprep.subr.mxu0 0.0
      %758 = vmatpush2.msra.mxu0 0.0
      %759 = vmatprep.subr.mxu0 0.0
      %760 = vmatpush2.msra.mxu0 0.0
      %761 = vmatprep.subr.mxu0 0.0
      %762 = vmatpush2.msra.mxu0 0.0
      %763 = vmatprep.subr.mxu0 0.0
      %764 = vmatpush2.msra.mxu0 0.0
      %765 = vmatprep.subr.mxu0 0.0
      %766 = vmatpush2.msra.mxu0 0.0
      %767 = vmatprep.subr.mxu0 0.0
      %768 = vmatpush2.msra.mxu0 0.0
      %769 = vmatprep.subr.mxu0 0.0
      %770 = vmatpush2.msra.mxu0 0.0
      %771 = vmatprep.subr.mxu0 0.0
      %772 = vmatpush2.msra.mxu0 0.0
      %773 = vmatprep.subr.mxu0 0.0
      %774 = vmatpush2.msra.mxu0 0.0
      %775 = vmatprep.subr.mxu0 0.0
      %776 = vmatpush2.msra.mxu0 0.0
      %777 = vmatprep.subr.mxu0 0.0
      %778 = vmatpush2.msra.mxu0 0.0
      %779 = vmatprep.subr.mxu0 0.0
      %780 = vmatpush2.msra.mxu0 0.0
      %781 = vmatprep.subr.mxu0 0.0
      %782 = vmatpush2.msra.mxu0 0.0
      %783 = vmatprep.mubr.f32.mxu0 0.0
      %784 = vmatmul.mubr.f32.gmra.mxu0 %v717
      %v785 = vpop.f32.mrf.mxu0
      %v786 = vadd.f32 %v708, %v785
      %v787 = vpop.f32.mrf.mxu0
      %v788 = vadd.f32 %v712, %v787
      %789 = vdwg.mxu0
      %v790 = vmax.f32 %v786, 0.0
      %v791 = vmax.f32 %v788, 0.0
      %v792 = vld [vmem:[%s6] sm:$0xff]
      %v793 = vld [vmem:[%s6 + $0x8] sm:$0xff]
      %v794 = vld [vmem:[%s6 + $0x10] sm:$0xff]
      %v795 = vld [vmem:[%s6 + $0x18] sm:$0xff]
      %v796 = vld [vmem:[%s6 + $0x20] sm:$0xff]
      %v797 = vld [vmem:[%s6 + $0x28] sm:$0xff]
      %v798 = vld [vmem:[%s6 + $0x30] sm:$0xff]
      %v799 = vld [vmem:[%s6 + $0x38] sm:$0xff]
      %v800 = vld [vmem:[%s6 + $0x40] sm:$0xff]
      %v801 = vld [vmem:[%s6 + $0x48] sm:$0xff]
      %v802 = vld [vmem:[%s6 + $0x50] sm:$0xff]
      %v803 = vld [vmem:[%s6 + $0x58] sm:$0xff]
      %v804 = vld [vmem:[%s6 + $0x60] sm:$0xff]
      %v805 = vld [vmem:[%s6 + $0x68] sm:$0xff]
      %v806 = vld [vmem:[%s6 + $0x70] sm:$0xff]
      %v807 = vld [vmem:[%s6 + $0x78] sm:$0xff]
      %v808 = vld [vmem:[%s6 + $0x80] sm:$0xff]
      %v809 = vld [vmem:[%s6 + $0x88] sm:$0xff]
      %v810 = vld [vmem:[%s6 + $0x90] sm:$0xff]
      %v811 = vld [vmem:[%s6 + $0x98] sm:$0xff]
      %v812 = vld [vmem:[%s6 + $0xa0] sm:$0xff]
      %v813 = vld [vmem:[%s6 + $0xa8] sm:$0xff]
      %v814 = vld [vmem:[%s6 + $0xb0] sm:$0xff]
      %v815 = vld [vmem:[%s6 + $0xb8] sm:$0xff]
      %v816 = vld [vmem:[%s6 + $0xc0] sm:$0xff]
      %v817 = vld [vmem:[%s6 + $0xc8] sm:$0xff]
      %v818 = vld [vmem:[%s6 + $0xd0] sm:$0xff]
      %v819 = vld [vmem:[%s6 + $0xd8] sm:$0xff]
      %v820 = vld [vmem:[%s6 + $0xe0] sm:$0xff]
      %v821 = vld [vmem:[%s6 + $0xe8] sm:$0xff]
      %v822 = vld [vmem:[%s6 + $0xf0] sm:$0xff]
      %v823 = vld [vmem:[%s6 + $0xf8] sm:$0xff]
      %v824 = vld [vmem:[%s7] sm:$0x1]
      %v826 = vlaneseq
      %v827 = vshrl.u32 %v826, 7
      %v828 = vsub.s32 0, %v827
      %v829 = vrot.slane %v824, %v828
      %831 = vmatprep.subr.mxu0 0.0
      %832 = vmatpush1.msra.mxu0 %v807
      %833 = vmatprep.subr.mxu0 0.0
      %834 = vmatpush1.msra.mxu0 %v806
      %835 = vmatprep.subr.mxu0 0.0
      %836 = vmatpush1.msra.mxu0 %v805
      %837 = vmatprep.subr.mxu0 0.0
      %838 = vmatpush1.msra.mxu0 %v804
      %839 = vmatprep.subr.mxu0 0.0
      %840 = vmatpush1.msra.mxu0 %v803
      %841 = vmatprep.subr.mxu0 0.0
      %842 = vmatpush1.msra.mxu0 %v802
      %843 = vmatprep.subr.mxu0 0.0
      %844 = vmatpush1.msra.mxu0 %v801
      %845 = vmatprep.subr.mxu0 0.0
      %846 = vmatpush1.msra.mxu0 %v800
      %847 = vmatprep.subr.mxu0 0.0
      %848 = vmatpush1.msra.mxu0 %v799
      %849 = vmatprep.subr.mxu0 0.0
      %850 = vmatpush1.msra.mxu0 %v798
      %851 = vmatprep.subr.mxu0 0.0
      %852 = vmatpush1.msra.mxu0 %v797
      %853 = vmatprep.subr.mxu0 0.0
      %854 = vmatpush1.msra.mxu0 %v796
      %855 = vmatprep.subr.mxu0 0.0
      %856 = vmatpush1.msra.mxu0 %v795
      %857 = vmatprep.subr.mxu0 0.0
      %858 = vmatpush1.msra.mxu0 %v794
      %859 = vmatprep.subr.mxu0 0.0
      %860 = vmatpush1.msra.mxu0 %v793
      %861 = vmatprep.subr.mxu0 0.0
      %862 = vmatpush1.msra.mxu0 %v792
      %863 = vmatprep.subr.mxu0 0.0
      %864 = vmatpush2.msra.mxu0 %v823
      %865 = vmatprep.subr.mxu0 0.0
      %866 = vmatpush2.msra.mxu0 %v822
      %867 = vmatprep.subr.mxu0 0.0
      %868 = vmatpush2.msra.mxu0 %v821
      %869 = vmatprep.subr.mxu0 0.0
      %870 = vmatpush2.msra.mxu0 %v820
      %871 = vmatprep.subr.mxu0 0.0
      %872 = vmatpush2.msra.mxu0 %v819
      %873 = vmatprep.subr.mxu0 0.0
      %874 = vmatpush2.msra.mxu0 %v818
      %875 = vmatprep.subr.mxu0 0.0
      %876 = vmatpush2.msra.mxu0 %v817
      %877 = vmatprep.subr.mxu0 0.0
      %878 = vmatpush2.msra.mxu0 %v816
      %879 = vmatprep.subr.mxu0 0.0
      %880 = vmatpush2.msra.mxu0 %v815
      %881 = vmatprep.subr.mxu0 0.0
      %882 = vmatpush2.msra.mxu0 %v814
      %883 = vmatprep.subr.mxu0 0.0
      %884 = vmatpush2.msra.mxu0 %v813
      %885 = vmatprep.subr.mxu0 0.0
      %886 = vmatpush2.msra.mxu0 %v812
      %887 = vmatprep.subr.mxu0 0.0
      %888 = vmatpush2.msra.mxu0 %v811
      %889 = vmatprep.subr.mxu0 0.0
      %890 = vmatpush2.msra.mxu0 %v810
      %891 = vmatprep.subr.mxu0 0.0
      %892 = vmatpush2.msra.mxu0 %v809
      %893 = vmatprep.subr.mxu0 0.0
      %894 = vmatpush2.msra.mxu0 %v808
      %895 = vmatprep.mubr.f32.mxu0 %v791
      %896 = vmatmul.mubr.f32.gmra.mxu0 %v790
      %v897 = vpop.f32.mrf.mxu0
      %v898 = vadd.f32 %v829, %v897
      %v899 = vpop.f32.mrf.mxu0
      %900 = vdwg.mxu0
      %v901 = vld [vmem:[%s687] sm:$0xff]
      %v902 = vld [vmem:[%s2] sm:$0xf]
      %v903 = vld [vmem:[%s3] sm:$0x1]
      %v905 = vlaneseq
      %v906 = vshrl.u32 %v905, 7
      %v907 = vsub.s32 0, %v906
      %v908 = vrot.slane %v903, %v907
      %vm910 = vcmask 31744
      %v912 = vsel %vm910, %v901, 0
      %vm914 = vcmask 1043456
      %v916 = vsel %vm914, %v902, 0
      %918 = vmatprep.subr.mxu0 0.0
      %919 = vmatpush1.msra.mxu0 0.0
      %920 = vmatprep.subr.mxu0 0.0
      %921 = vmatpush1.msra.mxu0 0.0
      %922 = vmatprep.subr.mxu0 0.0
      %923 = vmatpush1.msra.mxu0 0.0
      %924 = vmatprep.subr.mxu0 0.0
      %925 = vmatpush1.msra.mxu0 0.0
      %926 = vmatprep.subr.mxu0 0.0
      %927 = vmatpush1.msra.mxu0 0.0
      %928 = vmatprep.subr.mxu0 0.0
      %929 = vmatpush1.msra.mxu0 0.0
      %930 = vmatprep.subr.mxu0 0.0
      %931 = vmatpush1.msra.mxu0 0.0
      %932 = vmatprep.subr.mxu0 0.0
      %933 = vmatpush1.msra.mxu0 0.0
      %934 = vmatprep.subr.mxu0 0.0
      %935 = vmatpush1.msra.mxu0 0.0
      %936 = vmatprep.subr.mxu0 0.0
      %937 = vmatpush1.msra.mxu0 0.0
      %938 = vmatprep.subr.mxu0 0.0
      %939 = vmatpush1.msra.mxu0 0.0
      %940 = vmatprep.subr.mxu0 0.0
      %941 = vmatpush1.msra.mxu0 0.0
      %942 = vmatprep.subr.mxu0 0.0
      %943 = vmatpush1.msra.mxu0 0.0
      %944 = vmatprep.subr.mxu0 0.0
      %945 = vmatpush1.msra.mxu0 0.0
      %946 = vmatprep.subr.mxu0 0.0
      %947 = vmatpush1.msra.mxu0 0.0
      %948 = vmatprep.subr.mxu0 0.0
      %949 = vmatpush1.msra.mxu0 %v916
      %950 = vmatprep.subr.mxu0 0.0
      %951 = vmatpush2.msra.mxu0 0.0
      %952 = vmatprep.subr.mxu0 0.0
      %953 = vmatpush2.msra.mxu0 0.0
      %954 = vmatprep.subr.mxu0 0.0
      %955 = vmatpush2.msra.mxu0 0.0
      %956 = vmatprep.subr.mxu0 0.0
      %957 = vmatpush2.msra.mxu0 0.0
      %958 = vmatprep.subr.mxu0 0.0
      %959 = vmatpush2.msra.mxu0 0.0
      %960 = vmatprep.subr.mxu0 0.0
      %961 = vmatpush2.msra.mxu0 0.0
      %962 = vmatprep.subr.mxu0 0.0
      %963 = vmatpush2.msra.mxu0 0.0
      %964 = vmatprep.subr.mxu0 0.0
      %965 = vmatpush2.msra.mxu0 0.0
      %966 = vmatprep.subr.mxu0 0.0
      %967 = vmatpush2.msra.mxu0 0.0
      %968 = vmatprep.subr.mxu0 0.0
      %969 = vmatpush2.msra.mxu0 0.0
      %970 = vmatprep.subr.mxu0 0.0
      %971 = vmatpush2.msra.mxu0 0.0
      %972 = vmatprep.subr.mxu0 0.0
      %973 = vmatpush2.msra.mxu0 0.0
      %974 = vmatprep.subr.mxu0 0.0
      %975 = vmatpush2.msra.mxu0 0.0
      %976 = vmatprep.subr.mxu0 0.0
      %977 = vmatpush2.msra.mxu0 0.0
      %978 = vmatprep.subr.mxu0 0.0
      %979 = vmatpush2.msra.mxu0 0.0
      %980 = vmatprep.subr.mxu0 0.0
      %981 = vmatpush2.msra.mxu0 0.0
      %982 = vmatprep.mubr.f32.mxu0 0.0
      %983 = vmatmul.mubr.f32.gmra.mxu0 %v912
      %v984 = vpop.f32.mrf.mxu0
      %v985 = vadd.f32 %v908, %v984
      %v986 = vpop.f32.mrf.mxu0
      %987 = vdwg.mxu0
      %v988 = vld [vmem:[%s8] sm:$0x1]
      %v989 = vld [vmem:[%s9] sm:$0x1]
      %vm990 = vcmask 261120
      %v991 = vsel %vm990, %v985, 0.0
      %992 = vadd.xlane.f32.xlu0 %v991
      %v993 = vpop.xlane.xlu0 %992
      %v994 = vrcp.pop 32.0
      %v995 = vmul.f32 %v993, %v994
      %v996 = vsub.f32 %v985, %v995
      %v997 = vmul.f32 %v996, %v996
      %v998 = vsel %vm990, %v997, 0.0
      %999 = vadd.xlane.f32.xlu0 %v998
      %v1000 = vpop.xlane.xlu0 %999
      %v1001 = vmul.f32 %v1000, %v994
      %v1002 = vadd.f32 %v1001, 1e-05
      %v1003 = vrsqrt.pop %v1002
      %v1004 = vmul.f32 %v996, %v1003
      %v1006 = vlaneseq
      %v1007 = vshrl.u32 %v1006, 7
      %v1008 = vsub.s32 0, %v1007
      %v1009 = vrot.slane %v988, %v1008
      %v1011 = vmul.f32 %v1004, %v1009
      %v1013 = vlaneseq
      %v1014 = vshrl.u32 %v1013, 7
      %v1015 = vsub.s32 0, %v1014
      %v1016 = vrot.slane %v989, %v1015
      %v1018 = vadd.f32 %v1011, %v1016
      %v1019 = vld [vmem:[%s10] sm:$0xff]
      %v1020 = vld [vmem:[%s10 + $0x8] sm:$0xff]
      %v1021 = vld [vmem:[%s10 + $0x10] sm:$0xff]
      %v1022 = vld [vmem:[%s10 + $0x18] sm:$0xff]
      %v1023 = vld [vmem:[%s11] sm:$0x1]
      %v1025 = vlaneseq
      %v1026 = vshrl.u32 %v1025, 7
      %v1027 = vsub.s32 0, %v1026
      %v1028 = vrot.slane %v1023, %v1027
      %v1031 = vsel %vm990, %v1018, 0
      %1033 = vmatprep.subr.mxu0 0.0
      %1034 = vmatpush1.msra.mxu0 0.0
      %1035 = vmatprep.subr.mxu0 0.0
      %1036 = vmatpush1.msra.mxu0 0.0
      %1037 = vmatprep.subr.mxu0 0.0
      %1038 = vmatpush1.msra.mxu0 0.0
      %1039 = vmatprep.subr.mxu0 0.0
      %1040 = vmatpush1.msra.mxu0 0.0
      %1041 = vmatprep.subr.mxu0 0.0
      %1042 = vmatpush1.msra.mxu0 0.0
      %1043 = vmatprep.subr.mxu0 0.0
      %1044 = vmatpush1.msra.mxu0 0.0
      %1045 = vmatprep.subr.mxu0 0.0
      %1046 = vmatpush1.msra.mxu0 0.0
      %1047 = vmatprep.subr.mxu0 0.0
      %1048 = vmatpush1.msra.mxu0 0.0
      %1049 = vmatprep.subr.mxu0 0.0
      %1050 = vmatpush1.msra.mxu0 0.0
      %1051 = vmatprep.subr.mxu0 0.0
      %1052 = vmatpush1.msra.mxu0 0.0
      %1053 = vmatprep.subr.mxu0 0.0
      %1054 = vmatpush1.msra.mxu0 0.0
      %1055 = vmatprep.subr.mxu0 0.0
      %1056 = vmatpush1.msra.mxu0 0.0
      %1057 = vmatprep.subr.mxu0 0.0
      %1058 = vmatpush1.msra.mxu0 %v1022
      %1059 = vmatprep.subr.mxu0 0.0
      %1060 = vmatpush1.msra.mxu0 %v1021
      %1061 = vmatprep.subr.mxu0 0.0
      %1062 = vmatpush1.msra.mxu0 %v1020
      %1063 = vmatprep.subr.mxu0 0.0
      %1064 = vmatpush1.msra.mxu0 %v1019
      %1065 = vmatprep.subr.mxu0 0.0
      %1066 = vmatpush2.msra.mxu0 0.0
      %1067 = vmatprep.subr.mxu0 0.0
      %1068 = vmatpush2.msra.mxu0 0.0
      %1069 = vmatprep.subr.mxu0 0.0
      %1070 = vmatpush2.msra.mxu0 0.0
      %1071 = vmatprep.subr.mxu0 0.0
      %1072 = vmatpush2.msra.mxu0 0.0
      %1073 = vmatprep.subr.mxu0 0.0
      %1074 = vmatpush2.msra.mxu0 0.0
      %1075 = vmatprep.subr.mxu0 0.0
      %1076 = vmatpush2.msra.mxu0 0.0
      %1077 = vmatprep.subr.mxu0 0.0
      %1078 = vmatpush2.msra.mxu0 0.0
      %1079 = vmatprep.subr.mxu0 0.0
      %1080 = vmatpush2.msra.mxu0 0.0
      %1081 = vmatprep.subr.mxu0 0.0
      %1082 = vmatpush2.msra.mxu0 0.0
      %1083 = vmatprep.subr.mxu0 0.0
      %1084 = vmatpush2.msra.mxu0 0.0
      %1085 = vmatprep.subr.mxu0 0.0
      %1086 = vmatpush2.msra.mxu0 0.0
      %1087 = vmatprep.subr.mxu0 0.0
      %1088 = vmatpush2.msra.mxu0 0.0
      %1089 = vmatprep.subr.mxu0 0.0
      %1090 = vmatpush2.msra.mxu0 0.0
      %1091 = vmatprep.subr.mxu0 0.0
      %1092 = vmatpush2.msra.mxu0 0.0
      %1093 = vmatprep.subr.mxu0 0.0
      %1094 = vmatpush2.msra.mxu0 0.0
      %1095 = vmatprep.subr.mxu0 0.0
      %1096 = vmatpush2.msra.mxu0 0.0
      %1097 = vmatprep.mubr.f32.mxu0 0.0
      %1098 = vmatmul.mubr.f32.gmra.mxu0 %v1031
      %v1099 = vpop.f32.mrf.mxu0
      %v1100 = vadd.f32 %v1028, %v1099
      %v1101 = vpop.f32.mrf.mxu0
      %1102 = vdwg.mxu0
      %v1103 = vld [vmem:[%s12] sm:$0xff]
      %v1104 = vld [vmem:[%s12 + $0x8] sm:$0xff]
      %v1105 = vld [vmem:[%s12 + $0x10] sm:$0xff]
      %v1106 = vld [vmem:[%s12 + $0x18] sm:$0xff]
      %v1107 = vld [vmem:[%s13] sm:$0x1]
      %1109 = vrot.lane.b32.xlu0 %v1100, 96
      %v1110 = vpop.permute.xlu0 %1109
      %vm1111 = vcmask 64512
      %v1112 = vsel %vm1111, %v1100, 0
      %v1114 = vsel %vm1111, %v1110, 0
      %1116 = vmatprep.subr.mxu0 0.0
      %1117 = vmatpush1.xpose.msra.mxu0 0.0
      %1118 = vmatprep.subr.mxu0 0.0
      %1119 = vmatpush1.xpose.msra.mxu0 0.0
      %1120 = vmatprep.subr.mxu0 0.0
      %1121 = vmatpush1.xpose.msra.mxu0 0.0
      %1122 = vmatprep.subr.mxu0 0.0
      %1123 = vmatpush1.xpose.msra.mxu0 0.0
      %1124 = vmatprep.subr.mxu0 0.0
      %1125 = vmatpush1.xpose.msra.mxu0 0.0
      %1126 = vmatprep.subr.mxu0 0.0
      %1127 = vmatpush1.xpose.msra.mxu0 0.0
      %1128 = vmatprep.subr.mxu0 0.0
      %1129 = vmatpush1.xpose.msra.mxu0 0.0
      %1130 = vmatprep.subr.mxu0 0.0
      %1131 = vmatpush1.xpose.msra.mxu0 0.0
      %1132 = vmatprep.subr.mxu0 0.0
      %1133 = vmatpush1.xpose.msra.mxu0 0.0
      %1134 = vmatprep.subr.mxu0 0.0
      %1135 = vmatpush1.xpose.msra.mxu0 0.0
      %1136 = vmatprep.subr.mxu0 0.0
      %1137 = vmatpush1.xpose.msra.mxu0 0.0
      %1138 = vmatprep.subr.mxu0 0.0
      %1139 = vmatpush1.xpose.msra.mxu0 0.0
      %1140 = vmatprep.subr.mxu0 0.0
      %1141 = vmatpush1.xpose.msra.mxu0 0.0
      %1142 = vmatprep.subr.mxu0 0.0
      %1143 = vmatpush1.xpose.msra.mxu0 0.0
      %1144 = vmatprep.subr.mxu0 0.0
      %1145 = vmatpush1.xpose.msra.mxu0 0.0
      %1146 = vmatprep.subr.mxu0 0.0
      %1147 = vmatpush1.xpose.msra.mxu0 %v1114
      %1148 = vmatprep.subr.mxu0 0.0
      %1149 = vmatpush2.xpose.msra.mxu0 0.0
      %1150 = vmatprep.subr.mxu0 0.0
      %1151 = vmatpush2.xpose.msra.mxu0 0.0
      %1152 = vmatprep.subr.mxu0 0.0
      %1153 = vmatpush2.xpose.msra.mxu0 0.0
      %1154 = vmatprep.subr.mxu0 0.0
      %1155 = vmatpush2.xpose.msra.mxu0 0.0
      %1156 = vmatprep.subr.mxu0 0.0
      %1157 = vmatpush2.xpose.msra.mxu0 0.0
      %1158 = vmatprep.subr.mxu0 0.0
      %1159 = vmatpush2.xpose.msra.mxu0 0.0
      %1160 = vmatprep.subr.mxu0 0.0
      %1161 = vmatpush2.xpose.msra.mxu0 0.0
      %1162 = vmatprep.subr.mxu0 0.0
      %1163 = vmatpush2.xpose.msra.mxu0 0.0
      %1164 = vmatprep.subr.mxu0 0.0
      %1165 = vmatpush2.xpose.msra.mxu0 0.0
      %1166 = vmatprep.subr.mxu0 0.0
      %1167 = vmatpush2.xpose.msra.mxu0 0.0
      %1168 = vmatprep.subr.mxu0 0.0
      %1169 = vmatpush2.xpose.msra.mxu0 0.0
      %1170 = vmatprep.subr.mxu0 0.0
      %1171 = vmatpush2.xpose.msra.mxu0 0.0
      %1172 = vmatprep.subr.mxu0 0.0
      %1173 = vmatpush2.xpose.msra.mxu0 0.0
      %1174 = vmatprep.subr.mxu0 0.0
      %1175 = vmatpush2.xpose.msra.mxu0 0.0
      %1176 = vmatprep.subr.mxu0 0.0
      %1177 = vmatpush2.xpose.msra.mxu0 0.0
      %1178 = vmatprep.subr.mxu0 0.0
      %1179 = vmatpush2.xpose.msra.mxu0 0.0
      %1180 = vmatprep.mubr.f32.mxu0 0.0
      %1181 = vmatmul.mubr.f32.gmra.mxu0 %v1112
      %v1182 = vpop.f32.mrf.mxu0
      %v1183 = vadd.f32 0.0, %v1182
      %v1184 = vpop.f32.mrf.mxu0
      %1185 = vdwg.mxu0
      %v1186 = vmul.f32 %v1183, 0.35355338
      %1188 = vrot.lane.b32.xlu0 %v898, 96
      %v1189 = vpop.permute.xlu0 %1188
      %v1191 = vmul.f32 %v1186, %v1189
      %v1192 = vadd.f32 %v1191, %v898
      %v1193 = vsel %vm1111, %v1192, -inf
      %1194 = vmax.xlane.f32.xlu0 %v1193
      %v1195 = vpop.xlane.xlu0 %1194
      %v1196 = vsub.f32 %v1192, %v1195
      %v1197 = vmul.f32 %v1196, 1.442695
      %v1198 = vpow.pop %v1197
      %v1199 = vsel %vm1111, %v1198, 0.0
      %1200 = vadd.xlane.f32.xlu0 %v1199
      %v1201 = vpop.xlane.xlu0 %1200
      %v1202 = vrcp.pop %v1201
      %v1203 = vmul.f32 %v1198, %v1202
      %1204 = vrot.lane.b32.xlu0 %v1100, 64
      %v1205 = vpop.permute.xlu0 %1204
      %v1208 = vsel %vm1111, %v1203, 0
      %1210 = vmatprep.subr.mxu0 0.0
      %1211 = vmatpush1.msra.mxu0 0.0
      %1212 = vmatprep.subr.mxu0 0.0
      %1213 = vmatpush1.msra.mxu0 0.0
      %1214 = vmatprep.subr.mxu0 0.0
      %1215 = vmatpush1.msra.mxu0 0.0
      %1216 = vmatprep.subr.mxu0 0.0
      %1217 = vmatpush1.msra.mxu0 0.0
      %1218 = vmatprep.subr.mxu0 0.0
      %1219 = vmatpush1.msra.mxu0 0.0
      %1220 = vmatprep.subr.mxu0 0.0
      %1221 = vmatpush1.msra.mxu0 0.0
      %1222 = vmatprep.subr.mxu0 0.0
      %1223 = vmatpush1.msra.mxu0 0.0
      %1224 = vmatprep.subr.mxu0 0.0
      %1225 = vmatpush1.msra.mxu0 0.0
      %1226 = vmatprep.subr.mxu0 0.0
      %1227 = vmatpush1.msra.mxu0 0.0
      %1228 = vmatprep.subr.mxu0 0.0
      %1229 = vmatpush1.msra.mxu0 0.0
      %1230 = vmatprep.subr.mxu0 0.0
      %1231 = vmatpush1.msra.mxu0 0.0
      %1232 = vmatprep.subr.mxu0 0.0
      %1233 = vmatpush1.msra.mxu0 0.0
      %1234 = vmatprep.subr.mxu0 0.0
      %1235 = vmatpush1.msra.mxu0 0.0
      %1236 = vmatprep.subr.mxu0 0.0
      %1237 = vmatpush1.msra.mxu0 0.0
      %1238 = vmatprep.subr.mxu0 0.0
      %1239 = vmatpush1.msra.mxu0 0.0
      %1240 = vmatprep.subr.mxu0 0.0
      %1241 = vmatpush1.msra.mxu0 %v1205
      %1242 = vmatprep.subr.mxu0 0.0
      %1243 = vmatpush2.msra.mxu0 0.0
      %1244 = vmatprep.subr.mxu0 0.0
      %1245 = vmatpush2.msra.mxu0 0.0
      %1246 = vmatprep.subr.mxu0 0.0
      %1247 = vmatpush2.msra.mxu0 0.0
      %1248 = vmatprep.subr.mxu0 0.0
      %1249 = vmatpush2.msra.mxu0 0.0
      %1250 = vmatprep.subr.mxu0 0.0
      %1251 = vmatpush2.msra.mxu0 0.0
      %1252 = vmatprep.subr.mxu0 0.0
      %1253 = vmatpush2.msra.mxu0 0.0
      %1254 = vmatprep.subr.mxu0 0.0
      %1255 = vmatpush2.msra.mxu0 0.0
      %1256 = vmatprep.subr.mxu0 0.0
      %1257 = vmatpush2.msra.mxu0 0.0
      %1258 = vmatprep.subr.mxu0 0.0
      %1259 = vmatpush2.msra.mxu0 0.0
      %1260 = vmatprep.subr.mxu0 0.0
      %1261 = vmatpush2.msra.mxu0 0.0
      %1262 = vmatprep.subr.mxu0 0.0
      %1263 = vmatpush2.msra.mxu0 0.0
      %1264 = vmatprep.subr.mxu0 0.0
      %1265 = vmatpush2.msra.mxu0 0.0
      %1266 = vmatprep.subr.mxu0 0.0
      %1267 = vmatpush2.msra.mxu0 0.0
      %1268 = vmatprep.subr.mxu0 0.0
      %1269 = vmatpush2.msra.mxu0 0.0
      %1270 = vmatprep.subr.mxu0 0.0
      %1271 = vmatpush2.msra.mxu0 0.0
      %1272 = vmatprep.subr.mxu0 0.0
      %1273 = vmatpush2.msra.mxu0 0.0
      %1274 = vmatprep.mubr.f32.mxu0 0.0
      %1275 = vmatmul.mubr.f32.gmra.mxu0 %v1208
      %v1276 = vpop.f32.mrf.mxu0
      %v1277 = vadd.f32 0.0, %v1276
      %v1278 = vpop.f32.mrf.mxu0
      %1279 = vdwg.mxu0
      %v1281 = vsel %vm1111, %v1277, 0
      %1283 = vmatprep.subr.mxu0 0.0
      %1284 = vmatpush1.msra.mxu0 0.0
      %1285 = vmatprep.subr.mxu0 0.0
      %1286 = vmatpush1.msra.mxu0 0.0
      %1287 = vmatprep.subr.mxu0 0.0
      %1288 = vmatpush1.msra.mxu0 0.0
      %1289 = vmatprep.subr.mxu0 0.0
      %1290 = vmatpush1.msra.mxu0 0.0
      %1291 = vmatprep.subr.mxu0 0.0
      %1292 = vmatpush1.msra.mxu0 0.0
      %1293 = vmatprep.subr.mxu0 0.0
      %1294 = vmatpush1.msra.mxu0 0.0
      %1295 = vmatprep.subr.mxu0 0.0
      %1296 = vmatpush1.msra.mxu0 0.0
      %1297 = vmatprep.subr.mxu0 0.0
      %1298 = vmatpush1.msra.mxu0 0.0
      %1299 = vmatprep.subr.mxu0 0.0
      %1300 = vmatpush1.msra.mxu0 0.0
      %1301 = vmatprep.subr.mxu0 0.0
      %1302 = vmatpush1.msra.mxu0 0.0
      %1303 = vmatprep.subr.mxu0 0.0
      %1304 = vmatpush1.msra.mxu0 0.0
      %1305 = vmatprep.subr.mxu0 0.0
      %1306 = vmatpush1.msra.mxu0 0.0
      %1307 = vmatprep.subr.mxu0 0.0
      %1308 = vmatpush1.msra.mxu0 0.0
      %1309 = vmatprep.subr.mxu0 0.0
      %1310 = vmatpush1.msra.mxu0 0.0
      %1311 = vmatprep.subr.mxu0 0.0
      %1312 = vmatpush1.msra.mxu0 0.0
      %1313 = vmatprep.subr.mxu0 0.0
      %1314 = vmatpush1.msra.mxu0 %v1103
      %1315 = vmatprep.subr.mxu0 0.0
      %1316 = vmatpush2.msra.mxu0 0.0
      %1317 = vmatprep.subr.mxu0 0.0
      %1318 = vmatpush2.msra.mxu0 0.0
      %1319 = vmatprep.subr.mxu0 0.0
      %1320 = vmatpush2.msra.mxu0 0.0
      %1321 = vmatprep.subr.mxu0 0.0
      %1322 = vmatpush2.msra.mxu0 0.0
      %1323 = vmatprep.subr.mxu0 0.0
      %1324 = vmatpush2.msra.mxu0 0.0
      %1325 = vmatprep.subr.mxu0 0.0
      %1326 = vmatpush2.msra.mxu0 0.0
      %1327 = vmatprep.subr.mxu0 0.0
      %1328 = vmatpush2.msra.mxu0 0.0
      %1329 = vmatprep.subr.mxu0 0.0
      %1330 = vmatpush2.msra.mxu0 0.0
      %1331 = vmatprep.subr.mxu0 0.0
      %1332 = vmatpush2.msra.mxu0 0.0
      %1333 = vmatprep.subr.mxu0 0.0
      %1334 = vmatpush2.msra.mxu0 0.0
      %1335 = vmatprep.subr.mxu0 0.0
      %1336 = vmatpush2.msra.mxu0 0.0
      %1337 = vmatprep.subr.mxu0 0.0
      %1338 = vmatpush2.msra.mxu0 0.0
      %1339 = vmatprep.subr.mxu0 0.0
      %1340 = vmatpush2.msra.mxu0 0.0
      %1341 = vmatprep.subr.mxu0 0.0
      %1342 = vmatpush2.msra.mxu0 0.0
      %1343 = vmatprep.subr.mxu0 0.0
      %1344 = vmatpush2.msra.mxu0 0.0
      %1345 = vmatprep.subr.mxu0 0.0
      %1346 = vmatpush2.msra.mxu0 0.0
      %1347 = vmatprep.mubr.f32.mxu0 0.0
      %1348 = vmatmul.mubr.f32.gmra.mxu0 %v1281
      %v1349 = vpop.f32.mrf.mxu0
      %v1350 = vadd.f32 0.0, %v1349
      %v1351 = vpop.f32.mrf.mxu0
      %1352 = vdwg.mxu0
      %v1354 = vlaneseq
      %v1355 = vshrl.u32 %v1354, 7
      %v1356 = vsub.s32 0, %v1355
      %v1357 = vrot.slane %v1107, %v1356
      %v1359 = vadd.f32 %v1357, %v1350
      %1360 = vrot.lane.b32.xlu0 %v1100, 120
      %v1361 = vpop.permute.xlu0 %1360
      %1362 = vrot.lane.b32.xlu0 %v1100, 88
      %v1363 = vpop.permute.xlu0 %1362
      %v1364 = vsel %vm1111, %v1361, 0
      %v1366 = vsel %vm1111, %v1363, 0
      %1368 = vmatprep.subr.mxu0 0.0
      %1369 = vmatpush1.xpose.msra.mxu0 0.0
      %1370 = vmatprep.subr.mxu0 0.0
      %1371 = vmatpush1.xpose.msra.mxu0 0.0
      %1372 = vmatprep.subr.mxu0 0.0
      %1373 = vmatpush1.xpose.msra.mxu0 0.0
      %1374 = vmatprep.subr.mxu0 0.0
      %1375 = vmatpush1.xpose.msra.mxu0 0.0
      %1376 = vmatprep.subr.mxu0 0.0
      %1377 = vmatpush1.xpose.msra.mxu0 0.0
      %1378 = vmatprep.subr.mxu0 0.0
      %1379 = vmatpush1.xpose.msra.mxu0 0.0
      %1380 = vmatprep.subr.mxu0 0.0
      %1381 = vmatpush1.xpose.msra.mxu0 0.0
      %1382 = vmatprep.subr.mxu0 0.0
      %1383 = vmatpush1.xpose.msra.mxu0 0.0
      %1384 = vmatprep.subr.mxu0 0.0
      %1385 = vmatpush1.xpose.msra.mxu0 0.0
      %1386 = vmatprep.subr.mxu0 0.0
      %1387 = vmatpush1.xpose.msra.mxu0 0.0
      %1388 = vmatprep.subr.mxu0 0.0
      %1389 = vmatpush1.xpose.msra.mxu0 0.0
      %1390 = vmatprep.subr.mxu0 0.0
      %1391 = vmatpush1.xpose.msra.mxu0 0.0
      %1392 = vmatprep.subr.mxu0 0.0
      %1393 = vmatpush1.xpose.msra.mxu0 0.0
      %1394 = vmatprep.subr.mxu0 0.0
      %1395 = vmatpush1.xpose.msra.mxu0 0.0
      %1396 = vmatprep.subr.mxu0 0.0
      %1397 = vmatpush1.xpose.msra.mxu0 0.0
      %1398 = vmatprep.subr.mxu0 0.0
      %1399 = vmatpush1.xpose.msra.mxu0 %v1366
      %1400 = vmatprep.subr.mxu0 0.0
      %1401 = vmatpush2.xpose.msra.mxu0 0.0
      %1402 = vmatprep.subr.mxu0 0.0
      %1403 = vmatpush2.xpose.msra.mxu0 0.0
      %1404 = vmatprep.subr.mxu0 0.0
      %1405 = vmatpush2.xpose.msra.mxu0 0.0
      %1406 = vmatprep.subr.mxu0 0.0
      %1407 = vmatpush2.xpose.msra.mxu0 0.0
      %1408 = vmatprep.subr.mxu0 0.0
      %1409 = vmatpush2.xpose.msra.mxu0 0.0
      %1410 = vmatprep.subr.mxu0 0.0
      %1411 = vmatpush2.xpose.msra.mxu0 0.0
      %1412 = vmatprep.subr.mxu0 0.0
      %1413 = vmatpush2.xpose.msra.mxu0 0.0
      %1414 = vmatprep.subr.mxu0 0.0
      %1415 = vmatpush2.xpose.msra.mxu0 0.0
      %1416 = vmatprep.subr.mxu0 0.0
      %1417 = vmatpush2.xpose.msra.mxu0 0.0
      %1418 = vmatprep.subr.mxu0 0.0
      %1419 = vmatpush2.xpose.msra.mxu0 0.0
      %1420 = vmatprep.subr.mxu0 0.0
      %1421 = vmatpush2.xpose.msra.mxu0 0.0
      %1422 = vmatprep.subr.mxu0 0.0
      %1423 = vmatpush2.xpose.msra.mxu0 0.0
      %1424 = vmatprep.subr.mxu0 0.0
      %1425 = vmatpush2.xpose.msra.mxu0 0.0
      %1426 = vmatprep.subr.mxu0 0.0
      %1427 = vmatpush2.xpose.msra.mxu0 0.0
      %1428 = vmatprep.subr.mxu0 0.0
      %1429 = vmatpush2.xpose.msra.mxu0 0.0
      %1430 = vmatprep.subr.mxu0 0.0
      %1431 = vmatpush2.xpose.msra.mxu0 0.0
      %1432 = vmatprep.mubr.f32.mxu0 0.0
      %1433 = vmatmul.mubr.f32.gmra.mxu0 %v1364
      %v1434 = vpop.f32.mrf.mxu0
      %v1435 = vadd.f32 0.0, %v1434
      %v1436 = vpop.f32.mrf.mxu0
      %1437 = vdwg.mxu0
      %v1438 = vmul.f32 %v1435, 0.35355338
      %1439 = vrot.lane.b32.xlu0 %v898, 88
      %v1440 = vpop.permute.xlu0 %1439
      %v1442 = vmul.f32 %v1438, %v1440
      %1443 = vrot.lane.b32.xlu0 %v898, 120
      %v1444 = vpop.permute.xlu0 %1443
      %v1446 = vadd.f32 %v1442, %v1444
      %v1447 = vsel %vm1111, %v1446, -inf
      %1448 = vmax.xlane.f32.xlu0 %v1447
      %v1449 = vpop.xlane.xlu0 %1448
      %v1450 = vsub.f32 %v1446, %v1449
      %v1451 = vmul.f32 %v1450, 1.442695
      %v1452 = vpow.pop %v1451
      %v1453 = vsel %vm1111, %v1452, 0.0
      %1454 = vadd.xlane.f32.xlu0 %v1453
      %v1455 = vpop.xlane.xlu0 %1454
      %v1456 = vrcp.pop %v1455
      %v1457 = vmul.f32 %v1452, %v1456
      %1458 = vrot.lane.b32.xlu0 %v1100, 56
      %v1459 = vpop.permute.xlu0 %1458
      %v1462 = vsel %vm1111, %v1457, 0
      %1464 = vmatprep.subr.mxu0 0.0
      %1465 = vmatpush1.msra.mxu0 0.0
      %1466 = vmatprep.subr.mxu0 0.0
      %1467 = vmatpush1.msra.mxu0 0.0
      %1468 = vmatprep.subr.mxu0 0.0
      %1469 = vmatpush1.msra.mxu0 0.0
      %1470 = vmatprep.subr.mxu0 0.0
      %1471 = vmatpush1.msra.mxu0 0.0
      %1472 = vmatprep.subr.mxu0 0.0
      %1473 = vmatpush1.msra.mxu0 0.0
      %1474 = vmatprep.subr.mxu0 0.0
      %1475 = vmatpush1.msra.mxu0 0.0
      %1476 = vmatprep.subr.mxu0 0.0
      %1477 = vmatpush1.msra.mxu0 0.0
      %1478 = vmatprep.subr.mxu0 0.0
      %1479 = vmatpush1.msra.mxu0 0.0
      %1480 = vmatprep.subr.mxu0 0.0
      %1481 = vmatpush1.msra.mxu0 0.0
      %1482 = vmatprep.subr.mxu0 0.0
      %1483 = vmatpush1.msra.mxu0 0.0
      %1484 = vmatprep.subr.mxu0 0.0
      %1485 = vmatpush1.msra.mxu0 0.0
      %1486 = vmatprep.subr.mxu0 0.0
      %1487 = vmatpush1.msra.mxu0 0.0
      %1488 = vmatprep.subr.mxu0 0.0
      %1489 = vmatpush1.msra.mxu0 0.0
      %1490 = vmatprep.subr.mxu0 0.0
      %1491 = vmatpush1.msra.mxu0 0.0
      %1492 = vmatprep.subr.mxu0 0.0
      %1493 = vmatpush1.msra.mxu0 0.0
      %1494 = vmatprep.subr.mxu0 0.0
      %1495 = vmatpush1.msra.mxu0 %v1459
      %1496 = vmatprep.subr.mxu0 0.0
      %1497 = vmatpush2.msra.mxu0 0.0
      %1498 = vmatprep.subr.mxu0 0.0
      %1499 = vmatpush2.msra.mxu0 0.0
      %1500 = vmatprep.subr.mxu0 0.0
      %1501 = vmatpush2.msra.mxu0 0.0
      %1502 = vmatprep.subr.mxu0 0.0
      %1503 = vmatpush2.msra.mxu0 0.0
      %1504 = vmatprep.subr.mxu0 0.0
      %1505 = vmatpush2.msra.mxu0 0.0
      %1506 = vmatprep.subr.mxu0 0.0
      %1507 = vmatpush2.msra.mxu0 0.0
      %1508 = vmatprep.subr.mxu0 0.0
      %1509 = vmatpush2.msra.mxu0 0.0
      %1510 = vmatprep.subr.mxu0 0.0
      %1511 = vmatpush2.msra.mxu0 0.0
      %1512 = vmatprep.subr.mxu0 0.0
      %1513 = vmatpush2.msra.mxu0 0.0
      %1514 = vmatprep.subr.mxu0 0.0
      %1515 = vmatpush2.msra.mxu0 0.0
      %1516 = vmatprep.subr.mxu0 0.0
      %1517 = vmatpush2.msra.mxu0 0.0
      %1518 = vmatprep.subr.mxu0 0.0
      %1519 = vmatpush2.msra.mxu0 0.0
      %1520 = vmatprep.subr.mxu0 0.0
      %1521 = vmatpush2.msra.mxu0 0.0
      %1522 = vmatprep.subr.mxu0 0.0
      %1523 = vmatpush2.msra.mxu0 0.0
      %1524 = vmatprep.subr.mxu0 0.0
      %1525 = vmatpush2.msra.mxu0 0.0
      %1526 = vmatprep.subr.mxu0 0.0
      %1527 = vmatpush2.msra.mxu0 0.0
      %1528 = vmatprep.mubr.f32.mxu0 0.0
      %1529 = vmatmul.mubr.f32.gmra.mxu0 %v1462
      %v1530 = vpop.f32.mrf.mxu0
      %v1531 = vadd.f32 0.0, %v1530
      %v1532 = vpop.f32.mrf.mxu0
      %1533 = vdwg.mxu0
      %v1535 = vsel %vm1111, %v1531, 0
      %1537 = vmatprep.subr.mxu0 0.0
      %1538 = vmatpush1.msra.mxu0 0.0
      %1539 = vmatprep.subr.mxu0 0.0
      %1540 = vmatpush1.msra.mxu0 0.0
      %1541 = vmatprep.subr.mxu0 0.0
      %1542 = vmatpush1.msra.mxu0 0.0
      %1543 = vmatprep.subr.mxu0 0.0
      %1544 = vmatpush1.msra.mxu0 0.0
      %1545 = vmatprep.subr.mxu0 0.0
      %1546 = vmatpush1.msra.mxu0 0.0
      %1547 = vmatprep.subr.mxu0 0.0
      %1548 = vmatpush1.msra.mxu0 0.0
      %1549 = vmatprep.subr.mxu0 0.0
      %1550 = vmatpush1.msra.mxu0 0.0
      %1551 = vmatprep.subr.mxu0 0.0
      %1552 = vmatpush1.msra.mxu0 0.0
      %1553 = vmatprep.subr.mxu0 0.0
      %1554 = vmatpush1.msra.mxu0 0.0
      %1555 = vmatprep.subr.mxu0 0.0
      %1556 = vmatpush1.msra.mxu0 0.0
      %1557 = vmatprep.subr.mxu0 0.0
      %1558 = vmatpush1.msra.mxu0 0.0
      %1559 = vmatprep.subr.mxu0 0.0
      %1560 = vmatpush1.msra.mxu0 0.0
      %1561 = vmatprep.subr.mxu0 0.0
      %1562 = vmatpush1.msra.mxu0 0.0
      %1563 = vmatprep.subr.mxu0 0.0
      %1564 = vmatpush1.msra.mxu0 0.0
      %1565 = vmatprep.subr.mxu0 0.0
      %1566 = vmatpush1.msra.mxu0 0.0
      %1567 = vmatprep.subr.mxu0 0.0
      %1568 = vmatpush1.msra.mxu0 %v1104
      %1569 = vmatprep.subr.mxu0 0.0
      %1570 = vmatpush2.msra.mxu0 0.0
      %1571 = vmatprep.subr.mxu0 0.0
      %1572 = vmatpush2.msra.mxu0 0.0
      %1573 = vmatprep.subr.mxu0 0.0
      %1574 = vmatpush2.msra.mxu0 0.0
      %1575 = vmatprep.subr.mxu0 0.0
      %1576 = vmatpush2.msra.mxu0 0.0
      %1577 = vmatprep.subr.mxu0 0.0
      %1578 = vmatpush2.msra.mxu0 0.0
      %1579 = vmatprep.subr.mxu0 0.0
      %1580 = vmatpush2.msra.mxu0 0.0
      %1581 = vmatprep.subr.mxu0 0.0
      %1582 = vmatpush2.msra.mxu0 0.0
      %1583 = vmatprep.subr.mxu0 0.0
      %1584 = vmatpush2.msra.mxu0 0.0
      %1585 = vmatprep.subr.mxu0 0.0
      %1586 = vmatpush2.msra.mxu0 0.0
      %1587 = vmatprep.subr.mxu0 0.0
      %1588 = vmatpush2.msra.mxu0 0.0
      %1589 = vmatprep.subr.mxu0 0.0
      %1590 = vmatpush2.msra.mxu0 0.0
      %1591 = vmatprep.subr.mxu0 0.0
      %1592 = vmatpush2.msra.mxu0 0.0
      %1593 = vmatprep.subr.mxu0 0.0
      %1594 = vmatpush2.msra.mxu0 0.0
      %1595 = vmatprep.subr.mxu0 0.0
      %1596 = vmatpush2.msra.mxu0 0.0
      %1597 = vmatprep.subr.mxu0 0.0
      %1598 = vmatpush2.msra.mxu0 0.0
      %1599 = vmatprep.subr.mxu0 0.0
      %1600 = vmatpush2.msra.mxu0 0.0
      %1601 = vmatprep.mubr.f32.mxu0 0.0
      %1602 = vmatmul.mubr.f32.gmra.mxu0 %v1535
      %v1603 = vpop.f32.mrf.mxu0
      %v1604 = vadd.f32 0.0, %v1603
      %v1605 = vpop.f32.mrf.mxu0
      %1606 = vdwg.mxu0
      %v1607 = vadd.f32 %v1359, %v1604
      %1608 = vrot.lane.b32.xlu0 %v1100, 112
      %v1609 = vpop.permute.xlu0 %1608
      %1610 = vrot.lane.b32.xlu0 %v1100, 80
      %v1611 = vpop.permute.xlu0 %1610
      %v1612 = vsel %vm1111, %v1609, 0
      %v1614 = vsel %vm1111, %v1611, 0
      %1616 = vmatprep.subr.mxu0 0.0
      %1617 = vmatpush1.xpose.msra.mxu0 0.0
      %1618 = vmatprep.subr.mxu0 0.0
      %1619 = vmatpush1.xpose.msra.mxu0 0.0
      %1620 = vmatprep.subr.mxu0 0.0
      %1621 = vmatpush1.xpose.msra.mxu0 0.0
      %1622 = vmatprep.subr.mxu0 0.0
      %1623 = vmatpush1.xpose.msra.mxu0 0.0
      %1624 = vmatprep.subr.mxu0 0.0
      %1625 = vmatpush1.xpose.msra.mxu0 0.0
      %1626 = vmatprep.subr.mxu0 0.0
      %1627 = vmatpush1.xpose.msra.mxu0 0.0
      %1628 = vmatprep.subr.mxu0 0.0
      %1629 = vmatpush1.xpose.msra.mxu0 0.0
      %1630 = vmatprep.subr.mxu0 0.0
      %1631 = vmatpush1.xpose.msra.mxu0 0.0
      %1632 = vmatprep.subr.mxu0 0.0
      %1633 = vmatpush1.xpose.msra.mxu0 0.0
      %1634 = vmatprep.subr.mxu0 0.0
      %1635 = vmatpush1.xpose.msra.mxu0 0.0
      %1636 = vmatprep.subr.mxu0 0.0
      %1637 = vmatpush1.xpose.msra.mxu0 0.0
      %1638 = vmatprep.subr.mxu0 0.0
      %1639 = vmatpush1.xpose.msra.mxu0 0.0
      %1640 = vmatprep.subr.mxu0 0.0
      %1641 = vmatpush1.xpose.msra.mxu0 0.0
      %1642 = vmatprep.subr.mxu0 0.0
      %1643 = vmatpush1.xpose.msra.mxu0 0.0
      %1644 = vmatprep.subr.mxu0 0.0
      %1645 = vmatpush1.xpose.msra.mxu0 0.0
      %1646 = vmatprep.subr.mxu0 0.0
      %1647 = vmatpush1.xpose.msra.mxu0 %v1614
      %1648 = vmatprep.subr.mxu0 0.0
      %1649 = vmatpush2.xpose.msra.mxu0 0.0
      %1650 = vmatprep.subr.mxu0 0.0
      %1651 = vmatpush2.xpose.msra.mxu0 0.0
      %1652 = vmatprep.subr.mxu0 0.0
      %1653 = vmatpush2.xpose.msra.mxu0 0.0
      %1654 = vmatprep.subr.mxu0 0.0
      %1655 = vmatpush2.xpose.msra.mxu0 0.0
      %1656 = vmatprep.subr.mxu0 0.0
      %1657 = vmatpush2.xpose.msra.mxu0 0.0
      %1658 = vmatprep.subr.mxu0 0.0
      %1659 = vmatpush2.xpose.msra.mxu0 0.0
      %1660 = vmatprep.subr.mxu0 0.0
      %1661 = vmatpush2.xpose.msra.mxu0 0.0
      %1662 = vmatprep.subr.mxu0 0.0
      %1663 = vmatpush2.xpose.msra.mxu0 0.0
      %1664 = vmatprep.subr.mxu0 0.0
      %1665 = vmatpush2.xpose.msra.mxu0 0.0
      %1666 = vmatprep.subr.mxu0 0.0
      %1667 = vmatpush2.xpose.msra.mxu0 0.0
      %1668 = vmatprep.subr.mxu0 0.0
      %1669 = vmatpush2.xpose.msra.mxu0 0.0
      %1670 = vmatprep.subr.mxu0 0.0
      %1671 = vmatpush2.xpose.msra.mxu0 0.0
      %1672 = vmatprep.subr.mxu0 0.0
      %1673 = vmatpush2.xpose.msra.mxu0 0.0
      %1674 = vmatprep.subr.mxu0 0.0
      %1675 = vmatpush2.xpose.msra.mxu0 0.0
      %1676 = vmatprep.subr.mxu0 0.0
      %1677 = vmatpush2.xpose.msra.mxu0 0.0
      %1678 = vmatprep.subr.mxu0 0.0
      %1679 = vmatpush2.xpose.msra.mxu0 0.0
      %1680 = vmatprep.mubr.f32.mxu0 0.0
      %1681 = vmatmul.mubr.f32.gmra.mxu0 %v1612
      %v1682 = vpop.f32.mrf.mxu0
      %v1683 = vadd.f32 0.0, %v1682
      %v1684 = vpop.f32.mrf.mxu0
      %1685 = vdwg.mxu0
      %v1686 = vmul.f32 %v1683, 0.35355338
      %1687 = vrot.lane.b32.xlu0 %v898, 80
      %v1688 = vpop.permute.xlu0 %1687
      %v1690 = vmul.f32 %v1686, %v1688
      %1691 = vrot.lane.b32.xlu0 %v898, 112
      %v1692 = vpop.permute.xlu0 %1691
      %v1694 = vadd.f32 %v1690, %v1692
      %v1695 = vsel %vm1111, %v1694, -inf
      %1696 = vmax.xlane.f32.xlu0 %v1695
      %v1697 = vpop.xlane.xlu0 %1696
      %v1698 = vsub.f32 %v1694, %v1697
      %v1699 = vmul.f32 %v1698, 1.442695
      %v1700 = vpow.pop %v1699
      %v1701 = vsel %vm1111, %v1700, 0.0
      %1702 = vadd.xlane.f32.xlu0 %v1701
      %v1703 = vpop.xlane.xlu0 %1702
      %v1704 = vrcp.pop %v1703
      %v1705 = vmul.f32 %v1700, %v1704
      %1706 = vrot.lane.b32.xlu0 %v1100, 48
      %v1707 = vpop.permute.xlu0 %1706
      %v1710 = vsel %vm1111, %v1705, 0
      %1712 = vmatprep.subr.mxu0 0.0
      %1713 = vmatpush1.msra.mxu0 0.0
      %1714 = vmatprep.subr.mxu0 0.0
      %1715 = vmatpush1.msra.mxu0 0.0
      %1716 = vmatprep.subr.mxu0 0.0
      %1717 = vmatpush1.msra.mxu0 0.0
      %1718 = vmatprep.subr.mxu0 0.0
      %1719 = vmatpush1.msra.mxu0 0.0
      %1720 = vmatprep.subr.mxu0 0.0
      %1721 = vmatpush1.msra.mxu0 0.0
      %1722 = vmatprep.subr.mxu0 0.0
      %1723 = vmatpush1.msra.mxu0 0.0
      %1724 = vmatprep.subr.mxu0 0.0
      %1725 = vmatpush1.msra.mxu0 0.0
      %1726 = vmatprep.subr.mxu0 0.0
      %1727 = vmatpush1.msra.mxu0 0.0
      %1728 = vmatprep.subr.mxu0 0.0
      %1729 = vmatpush1.msra.mxu0 0.0
      %1730 = vmatprep.subr.mxu0 0.0
      %1731 = vmatpush1.msra.mxu0 0.0
      %1732 = vmatprep.subr.mxu0 0.0
      %1733 = vmatpush1.msra.mxu0 0.0
      %1734 = vmatprep.subr.mxu0 0.0
      %1735 = vmatpush1.msra.mxu0 0.0
      %1736 = vmatprep.subr.mxu0 0.0
      %1737 = vmatpush1.msra.mxu0 0.0
      %1738 = vmatprep.subr.mxu0 0.0
      %1739 = vmatpush1.msra.mxu0 0.0
      %1740 = vmatprep.subr.mxu0 0.0
      %1741 = vmatpush1.msra.mxu0 0.0
      %1742 = vmatprep.subr.mxu0 0.0
      %1743 = vmatpush1.msra.mxu0 %v1707
      %1744 = vmatprep.subr.mxu0 0.0
      %1745 = vmatpush2.msra.mxu0 0.0
      %1746 = vmatprep.subr.mxu0 0.0
      %1747 = vmatpush2.msra.mxu0 0.0
      %1748 = vmatprep.subr.mxu0 0.0
      %1749 = vmatpush2.msra.mxu0 0.0
      %1750 = vmatprep.subr.mxu0 0.0
      %1751 = vmatpush2.msra.mxu0 0.0
      %1752 = vmatprep.subr.mxu0 0.0
      %1753 = vmatpush2.msra.mxu0 0.0
      %1754 = vmatprep.subr.mxu0 0.0
      %1755 = vmatpush2.msra.mxu0 0.0
      %1756 = vmatprep.subr.mxu0 0.0
      %1757 = vmatpush2.msra.mxu0 0.0
      %1758 = vmatprep.subr.mxu0 0.0
      %1759 = vmatpush2.msra.mxu0 0.0
      %1760 = vmatprep.subr.mxu0 0.0
      %1761 = vmatpush2.msra.mxu0 0.0
      %1762 = vmatprep.subr.mxu0 0.0
      %1763 = vmatpush2.msra.mxu0 0.0
      %1764 = vmatprep.subr.mxu0 0.0
      %1765 = vmatpush2.msra.mxu0 0.0
      %1766 = vmatprep.subr.mxu0 0.0
      %1767 = vmatpush2.msra.mxu0 0.0
      %1768 = vmatprep.subr.mxu0 0.0
      %1769 = vmatpush2.msra.mxu0 0.0
      %1770 = vmatprep.subr.mxu0 0.0
      %1771 = vmatpush2.msra.mxu0 0.0
      %1772 = vmatprep.subr.mxu0 0.0
      %1773 = vmatpush2.msra.mxu0 0.0
      %1774 = vmatprep.subr.mxu0 0.0
      %1775 = vmatpush2.msra.mxu0 0.0
      %1776 = vmatprep.mubr.f32.mxu0 0.0
      %1777 = vmatmul.mubr.f32.gmra.mxu0 %v1710
      %v1778 = vpop.f32.mrf.mxu0
      %v1779 = vadd.f32 0.0, %v1778
      %v1780 = vpop.f32.mrf.mxu0
      %1781 = vdwg.mxu0
      %v1783 = vsel %vm1111, %v1779, 0
      %1785 = vmatprep.subr.mxu0 0.0
      %1786 = vmatpush1.msra.mxu0 0.0
      %1787 = vmatprep.subr.mxu0 0.0
      %1788 = vmatpush1.msra.mxu0 0.0
      %1789 = vmatprep.subr.mxu0 0.0
      %1790 = vmatpush1.msra.mxu0 0.0
      %1791 = vmatprep.subr.mxu0 0.0
      %1792 = vmatpush1.msra.mxu0 0.0
      %1793 = vmatprep.subr.mxu0 0.0
      %1794 = vmatpush1.msra.mxu0 0.0
      %1795 = vmatprep.subr.mxu0 0.0
      %1796 = vmatpush1.msra.mxu0 0.0
      %1797 = vmatprep.subr.mxu0 0.0
      %1798 = vmatpush1.msra.mxu0 0.0
      %1799 = vmatprep.subr.mxu0 0.0
      %1800 = vmatpush1.msra.mxu0 0.0
      %1801 = vmatprep.subr.mxu0 0.0
      %1802 = vmatpush1.msra.mxu0 0.0
      %1803 = vmatprep.subr.mxu0 0.0
      %1804 = vmatpush1.msra.mxu0 0.0
      %1805 = vmatprep.subr.mxu0 0.0
      %1806 = vmatpush1.msra.mxu0 0.0
      %1807 = vmatprep.subr.mxu0 0.0
      %1808 = vmatpush1.msra.mxu0 0.0
      %1809 = vmatprep.subr.mxu0 0.0
      %1810 = vmatpush1.msra.mxu0 0.0
      %1811 = vmatprep.subr.mxu0 0.0
      %1812 = vmatpush1.msra.mxu0 0.0
      %1813 = vmatprep.subr.mxu0 0.0
      %1814 = vmatpush1.msra.mxu0 0.0
      %1815 = vmatprep.subr.mxu0 0.0
      %1816 = vmatpush1.msra.mxu0 %v1105
      %1817 = vmatprep.subr.mxu0 0.0
      %1818 = vmatpush2.msra.mxu0 0.0
      %1819 = vmatprep.subr.mxu0 0.0
      %1820 = vmatpush2.msra.mxu0 0.0
      %1821 = vmatprep.subr.mxu0 0.0
      %1822 = vmatpush2.msra.mxu0 0.0
      %1823 = vmatprep.subr.mxu0 0.0
      %1824 = vmatpush2.msra.mxu0 0.0
      %1825 = vmatprep.subr.mxu0 0.0
      %1826 = vmatpush2.msra.mxu0 0.0
      %1827 = vmatprep.subr.mxu0 0.0
      %1828 = vmatpush2.msra.mxu0 0.0
      %1829 = vmatprep.subr.mxu0 0.0
      %1830 = vmatpush2.msra.mxu0 0.0
      %1831 = vmatprep.subr.mxu0 0.0
      %1832 = vmatpush2.msra.mxu0 0.0
      %1833 = vmatprep.subr.mxu0 0.0
      %1834 = vmatpush2.msra.mxu0 0.0
      %1835 = vmatprep.subr.mxu0 0.0
      %1836 = vmatpush2.msra.mxu0 0.0
      %1837 = vmatprep.subr.mxu0 0.0
      %1838 = vmatpush2.msra.mxu0 0.0
      %1839 = vmatprep.subr.mxu0 0.0
      %1840 = vmatpush2.msra.mxu0 0.0
      %1841 = vmatprep.subr.mxu0 0.0
      %1842 = vmatpush2.msra.mxu0 0.0
      %1843 = vmatprep.subr.mxu0 0.0
      %1844 = vmatpush2.msra.mxu0 0.0
      %1845 = vmatprep.subr.mxu0 0.0
      %1846 = vmatpush2.msra.mxu0 0.0
      %1847 = vmatprep.subr.mxu0 0.0
      %1848 = vmatpush2.msra.mxu0 0.0
      %1849 = vmatprep.mubr.f32.mxu0 0.0
      %1850 = vmatmul.mubr.f32.gmra.mxu0 %v1783
      %v1851 = vpop.f32.mrf.mxu0
      %v1852 = vadd.f32 0.0, %v1851
      %v1853 = vpop.f32.mrf.mxu0
      %1854 = vdwg.mxu0
      %v1855 = vadd.f32 %v1607, %v1852
      %1856 = vrot.lane.b32.xlu0 %v1100, 104
      %v1857 = vpop.permute.xlu0 %1856
      %1858 = vrot.lane.b32.xlu0 %v1100, 72
      %v1859 = vpop.permute.xlu0 %1858
      %v1860 = vsel %vm1111, %v1857, 0
      %v1862 = vsel %vm1111, %v1859, 0
      %1864 = vmatprep.subr.mxu0 0.0
      %1865 = vmatpush1.xpose.msra.mxu0 0.0
      %1866 = vmatprep.subr.mxu0 0.0
      %1867 = vmatpush1.xpose.msra.mxu0 0.0
      %1868 = vmatprep.subr.mxu0 0.0
      %1869 = vmatpush1.xpose.msra.mxu0 0.0
      %1870 = vmatprep.subr.mxu0 0.0
      %1871 = vmatpush1.xpose.msra.mxu0 0.0
      %1872 = vmatprep.subr.mxu0 0.0
      %1873 = vmatpush1.xpose.msra.mxu0 0.0
      %1874 = vmatprep.subr.mxu0 0.0
      %1875 = vmatpush1.xpose.msra.mxu0 0.0
      %1876 = vmatprep.subr.mxu0 0.0
      %1877 = vmatpush1.xpose.msra.mxu0 0.0
      %1878 = vmatprep.subr.mxu0 0.0
      %1879 = vmatpush1.xpose.msra.mxu0 0.0
      %1880 = vmatprep.subr.mxu0 0.0
      %1881 = vmatpush1.xpose.msra.mxu0 0.0
      %1882 = vmatprep.subr.mxu0 0.0
      %1883 = vmatpush1.xpose.msra.mxu0 0.0
      %1884 = vmatprep.subr.mxu0 0.0
      %1885 = vmatpush1.xpose.msra.mxu0 0.0
      %1886 = vmatprep.subr.mxu0 0.0
      %1887 = vmatpush1.xpose.msra.mxu0 0.0
      %1888 = vmatprep.subr.mxu0 0.0
      %1889 = vmatpush1.xpose.msra.mxu0 0.0
      %1890 = vmatprep.subr.mxu0 0.0
      %1891 = vmatpush1.xpose.msra.mxu0 0.0
      %1892 = vmatprep.subr.mxu0 0.0
      %1893 = vmatpush1.xpose.msra.mxu0 0.0
      %1894 = vmatprep.subr.mxu0 0.0
      %1895 = vmatpush1.xpose.msra.mxu0 %v1862
      %1896 = vmatprep.subr.mxu0 0.0
      %1897 = vmatpush2.xpose.msra.mxu0 0.0
      %1898 = vmatprep.subr.mxu0 0.0
      %1899 = vmatpush2.xpose.msra.mxu0 0.0
      %1900 = vmatprep.subr.mxu0 0.0
      %1901 = vmatpush2.xpose.msra.mxu0 0.0
      %1902 = vmatprep.subr.mxu0 0.0
      %1903 = vmatpush2.xpose.msra.mxu0 0.0
      %1904 = vmatprep.subr.mxu0 0.0
      %1905 = vmatpush2.xpose.msra.mxu0 0.0
      %1906 = vmatprep.subr.mxu0 0.0
      %1907 = vmatpush2.xpose.msra.mxu0 0.0
      %1908 = vmatprep.subr.mxu0 0.0
      %1909 = vmatpush2.xpose.msra.mxu0 0.0
      %1910 = vmatprep.subr.mxu0 0.0
      %1911 = vmatpush2.xpose.msra.mxu0 0.0
      %1912 = vmatprep.subr.mxu0 0.0
      %1913 = vmatpush2.xpose.msra.mxu0 0.0
      %1914 = vmatprep.subr.mxu0 0.0
      %1915 = vmatpush2.xpose.msra.mxu0 0.0
      %1916 = vmatprep.subr.mxu0 0.0
      %1917 = vmatpush2.xpose.msra.mxu0 0.0
      %1918 = vmatprep.subr.mxu0 0.0
      %1919 = vmatpush2.xpose.msra.mxu0 0.0
      %1920 = vmatprep.subr.mxu0 0.0
      %1921 = vmatpush2.xpose.msra.mxu0 0.0
      %1922 = vmatprep.subr.mxu0 0.0
      %1923 = vmatpush2.xpose.msra.mxu0 0.0
      %1924 = vmatprep.subr.mxu0 0.0
      %1925 = vmatpush2.xpose.msra.mxu0 0.0
      %1926 = vmatprep.subr.mxu0 0.0
      %1927 = vmatpush2.xpose.msra.mxu0 0.0
      %1928 = vmatprep.mubr.f32.mxu0 0.0
      %1929 = vmatmul.mubr.f32.gmra.mxu0 %v1860
      %v1930 = vpop.f32.mrf.mxu0
      %v1931 = vadd.f32 0.0, %v1930
      %v1932 = vpop.f32.mrf.mxu0
      %1933 = vdwg.mxu0
      %v1934 = vmul.f32 %v1931, 0.35355338
      %1935 = vrot.lane.b32.xlu0 %v898, 72
      %v1936 = vpop.permute.xlu0 %1935
      %v1938 = vmul.f32 %v1934, %v1936
      %1939 = vrot.lane.b32.xlu0 %v898, 104
      %v1940 = vpop.permute.xlu0 %1939
      %v1942 = vadd.f32 %v1938, %v1940
      %v1943 = vsel %vm1111, %v1942, -inf
      %1944 = vmax.xlane.f32.xlu0 %v1943
      %v1945 = vpop.xlane.xlu0 %1944
      %v1946 = vsub.f32 %v1942, %v1945
      %v1947 = vmul.f32 %v1946, 1.442695
      %v1948 = vpow.pop %v1947
      %v1949 = vsel %vm1111, %v1948, 0.0
      %1950 = vadd.xlane.f32.xlu0 %v1949
      %v1951 = vpop.xlane.xlu0 %1950
      %v1952 = vrcp.pop %v1951
      %v1953 = vmul.f32 %v1948, %v1952
      %1954 = vrot.lane.b32.xlu0 %v1100, 40
      %v1955 = vpop.permute.xlu0 %1954
      %v1958 = vsel %vm1111, %v1953, 0
      %1960 = vmatprep.subr.mxu0 0.0
      %1961 = vmatpush1.msra.mxu0 0.0
      %1962 = vmatprep.subr.mxu0 0.0
      %1963 = vmatpush1.msra.mxu0 0.0
      %1964 = vmatprep.subr.mxu0 0.0
      %1965 = vmatpush1.msra.mxu0 0.0
      %1966 = vmatprep.subr.mxu0 0.0
      %1967 = vmatpush1.msra.mxu0 0.0
      %1968 = vmatprep.subr.mxu0 0.0
      %1969 = vmatpush1.msra.mxu0 0.0
      %1970 = vmatprep.subr.mxu0 0.0
      %1971 = vmatpush1.msra.mxu0 0.0
      %1972 = vmatprep.subr.mxu0 0.0
      %1973 = vmatpush1.msra.mxu0 0.0
      %1974 = vmatprep.subr.mxu0 0.0
      %1975 = vmatpush1.msra.mxu0 0.0
      %1976 = vmatprep.subr.mxu0 0.0
      %1977 = vmatpush1.msra.mxu0 0.0
      %1978 = vmatprep.subr.mxu0 0.0
      %1979 = vmatpush1.msra.mxu0 0.0
      %1980 = vmatprep.subr.mxu0 0.0
      %1981 = vmatpush1.msra.mxu0 0.0
      %1982 = vmatprep.subr.mxu0 0.0
      %1983 = vmatpush1.msra.mxu0 0.0
      %1984 = vmatprep.subr.mxu0 0.0
      %1985 = vmatpush1.msra.mxu0 0.0
      %1986 = vmatprep.subr.mxu0 0.0
      %1987 = vmatpush1.msra.mxu0 0.0
      %1988 = vmatprep.subr.mxu0 0.0
      %1989 = vmatpush1.msra.mxu0 0.0
      %1990 = vmatprep.subr.mxu0 0.0
      %1991 = vmatpush1.msra.mxu0 %v1955
      %1992 = vmatprep.subr.mxu0 0.0
      %1993 = vmatpush2.msra.mxu0 0.0
      %1994 = vmatprep.subr.mxu0 0.0
      %1995 = vmatpush2.msra.mxu0 0.0
      %1996 = vmatprep.subr.mxu0 0.0
      %1997 = vmatpush2.msra.mxu0 0.0
      %1998 = vmatprep.subr.mxu0 0.0
      %1999 = vmatpush2.msra.mxu0 0.0
      %2000 = vmatprep.subr.mxu0 0.0
      %2001 = vmatpush2.msra.mxu0 0.0
      %2002 = vmatprep.subr.mxu0 0.0
      %2003 = vmatpush2.msra.mxu0 0.0
      %2004 = vmatprep.subr.mxu0 0.0
      %2005 = vmatpush2.msra.mxu0 0.0
      %2006 = vmatprep.subr.mxu0 0.0
      %2007 = vmatpush2.msra.mxu0 0.0
      %2008 = vmatprep.subr.mxu0 0.0
      %2009 = vmatpush2.msra.mxu0 0.0
      %2010 = vmatprep.subr.mxu0 0.0
      %2011 = vmatpush2.msra.mxu0 0.0
      %2012 = vmatprep.subr.mxu0 0.0
      %2013 = vmatpush2.msra.mxu0 0.0
      %2014 = vmatprep.subr.mxu0 0.0
      %2015 = vmatpush2.msra.mxu0 0.0
      %2016 = vmatprep.subr.mxu0 0.0
      %2017 = vmatpush2.msra.mxu0 0.0
      %2018 = vmatprep.subr.mxu0 0.0
      %2019 = vmatpush2.msra.mxu0 0.0
      %2020 = vmatprep.subr.mxu0 0.0
      %2021 = vmatpush2.msra.mxu0 0.0
      %2022 = vmatprep.subr.mxu0 0.0
      %2023 = vmatpush2.msra.mxu0 0.0
      %2024 = vmatprep.mubr.f32.mxu0 0.0
      %2025 = vmatmul.mubr.f32.gmra.mxu0 %v1958
      %v2026 = vpop.f32.mrf.mxu0
      %v2027 = vadd.f32 0.0, %v2026
      %v2028 = vpop.f32.mrf.mxu0
      %2029 = vdwg.mxu0
      %v2031 = vsel %vm1111, %v2027, 0
      %2033 = vmatprep.subr.mxu0 0.0
      %2034 = vmatpush1.msra.mxu0 0.0
      %2035 = vmatprep.subr.mxu0 0.0
      %2036 = vmatpush1.msra.mxu0 0.0
      %2037 = vmatprep.subr.mxu0 0.0
      %2038 = vmatpush1.msra.mxu0 0.0
      %2039 = vmatprep.subr.mxu0 0.0
      %2040 = vmatpush1.msra.mxu0 0.0
      %2041 = vmatprep.subr.mxu0 0.0
      %2042 = vmatpush1.msra.mxu0 0.0
      %2043 = vmatprep.subr.mxu0 0.0
      %2044 = vmatpush1.msra.mxu0 0.0
      %2045 = vmatprep.subr.mxu0 0.0
      %2046 = vmatpush1.msra.mxu0 0.0
      %2047 = vmatprep.subr.mxu0 0.0
      %2048 = vmatpush1.msra.mxu0 0.0
      %2049 = vmatprep.subr.mxu0 0.0
      %2050 = vmatpush1.msra.mxu0 0.0
      %2051 = vmatprep.subr.mxu0 0.0
      %2052 = vmatpush1.msra.mxu0 0.0
      %2053 = vmatprep.subr.mxu0 0.0
      %2054 = vmatpush1.msra.mxu0 0.0
      %2055 = vmatprep.subr.mxu0 0.0
      %2056 = vmatpush1.msra.mxu0 0.0
      %2057 = vmatprep.subr.mxu0 0.0
      %2058 = vmatpush1.msra.mxu0 0.0
      %2059 = vmatprep.subr.mxu0 0.0
      %2060 = vmatpush1.msra.mxu0 0.0
      %2061 = vmatprep.subr.mxu0 0.0
      %2062 = vmatpush1.msra.mxu0 0.0
      %2063 = vmatprep.subr.mxu0 0.0
      %2064 = vmatpush1.msra.mxu0 %v1106
      %2065 = vmatprep.subr.mxu0 0.0
      %2066 = vmatpush2.msra.mxu0 0.0
      %2067 = vmatprep.subr.mxu0 0.0
      %2068 = vmatpush2.msra.mxu0 0.0
      %2069 = vmatprep.subr.mxu0 0.0
      %2070 = vmatpush2.msra.mxu0 0.0
      %2071 = vmatprep.subr.mxu0 0.0
      %2072 = vmatpush2.msra.mxu0 0.0
      %2073 = vmatprep.subr.mxu0 0.0
      %2074 = vmatpush2.msra.mxu0 0.0
      %2075 = vmatprep.subr.mxu0 0.0
      %2076 = vmatpush2.msra.mxu0 0.0
      %2077 = vmatprep.subr.mxu0 0.0
      %2078 = vmatpush2.msra.mxu0 0.0
      %2079 = vmatprep.subr.mxu0 0.0
      %2080 = vmatpush2.msra.mxu0 0.0
      %2081 = vmatprep.subr.mxu0 0.0
      %2082 = vmatpush2.msra.mxu0 0.0
      %2083 = vmatprep.subr.mxu0 0.0
      %2084 = vmatpush2.msra.mxu0 0.0
      %2085 = vmatprep.subr.mxu0 0.0
      %2086 = vmatpush2.msra.mxu0 0.0
      %2087 = vmatprep.subr.mxu0 0.0
      %2088 = vmatpush2.msra.mxu0 0.0
      %2089 = vmatprep.subr.mxu0 0.0
      %2090 = vmatpush2.msra.mxu0 0.0
      %2091 = vmatprep.subr.mxu0 0.0
      %2092 = vmatpush2.msra.mxu0 0.0
      %2093 = vmatprep.subr.mxu0 0.0
      %2094 = vmatpush2.msra.mxu0 0.0
      %2095 = vmatprep.subr.mxu0 0.0
      %2096 = vmatpush2.msra.mxu0 0.0
      %2097 = vmatprep.mubr.f32.mxu0 0.0
      %2098 = vmatmul.mubr.f32.gmra.mxu0 %v2031
      %v2099 = vpop.f32.mrf.mxu0
      %v2100 = vadd.f32 0.0, %v2099
      %v2101 = vpop.f32.mrf.mxu0
      %2102 = vdwg.mxu0
      %v2103 = vadd.f32 %v1855, %v2100
      %v2104 = vadd.f32 %v985, %v2103
      %v2105 = vld [vmem:[%s14] sm:$0x1]
      %v2106 = vld [vmem:[%s15] sm:$0x1]
      %v2107 = vsel %vm990, %v2104, 0.0
      %2108 = vadd.xlane.f32.xlu0 %v2107
      %v2109 = vpop.xlane.xlu0 %2108
      %v2110 = vmul.f32 %v2109, %v994
      %v2111 = vsub.f32 %v2104, %v2110
      %v2112 = vmul.f32 %v2111, %v2111
      %v2113 = vsel %vm990, %v2112, 0.0
      %2114 = vadd.xlane.f32.xlu0 %v2113
      %v2115 = vpop.xlane.xlu0 %2114
      %v2116 = vmul.f32 %v2115, %v994
      %v2117 = vadd.f32 %v2116, 1e-05
      %v2118 = vrsqrt.pop %v2117
      %v2119 = vmul.f32 %v2111, %v2118
      %v2121 = vlaneseq
      %v2122 = vshrl.u32 %v2121, 7
      %v2123 = vsub.s32 0, %v2122
      %v2124 = vrot.slane %v2105, %v2123
      %v2126 = vmul.f32 %v2119, %v2124
      %v2128 = vlaneseq
      %v2129 = vshrl.u32 %v2128, 7
      %v2130 = vsub.s32 0, %v2129
      %v2131 = vrot.slane %v2106, %v2130
      %v2133 = vadd.f32 %v2126, %v2131
      %v2134 = vld [vmem:[%s16] sm:$0xff]
      %v2135 = vld [vmem:[%s16 + $0x8] sm:$0xff]
      %v2136 = vld [vmem:[%s16 + $0x10] sm:$0xff]
      %v2137 = vld [vmem:[%s16 + $0x18] sm:$0xff]
      %v2138 = vld [vmem:[%s17] sm:$0x1]
      %v2140 = vlaneseq
      %v2141 = vshrl.u32 %v2140, 7
      %v2142 = vsub.s32 0, %v2141
      %v2143 = vrot.slane %v2138, %v2142
      %v2146 = vsel %vm990, %v2133, 0
      %2148 = vmatprep.subr.mxu0 0.0
      %2149 = vmatpush1.msra.mxu0 0.0
      %2150 = vmatprep.subr.mxu0 0.0
      %2151 = vmatpush1.msra.mxu0 0.0
      %2152 = vmatprep.subr.mxu0 0.0
      %2153 = vmatpush1.msra.mxu0 0.0
      %2154 = vmatprep.subr.mxu0 0.0
      %2155 = vmatpush1.msra.mxu0 0.0
      %2156 = vmatprep.subr.mxu0 0.0
      %2157 = vmatpush1.msra.mxu0 0.0
      %2158 = vmatprep.subr.mxu0 0.0
      %2159 = vmatpush1.msra.mxu0 0.0
      %2160 = vmatprep.subr.mxu0 0.0
      %2161 = vmatpush1.msra.mxu0 0.0
      %2162 = vmatprep.subr.mxu0 0.0
      %2163 = vmatpush1.msra.mxu0 0.0
      %2164 = vmatprep.subr.mxu0 0.0
      %2165 = vmatpush1.msra.mxu0 0.0
      %2166 = vmatprep.subr.mxu0 0.0
      %2167 = vmatpush1.msra.mxu0 0.0
      %2168 = vmatprep.subr.mxu0 0.0
      %2169 = vmatpush1.msra.mxu0 0.0
      %2170 = vmatprep.subr.mxu0 0.0
      %2171 = vmatpush1.msra.mxu0 0.0
      %2172 = vmatprep.subr.mxu0 0.0
      %2173 = vmatpush1.msra.mxu0 %v2137
      %2174 = vmatprep.subr.mxu0 0.0
      %2175 = vmatpush1.msra.mxu0 %v2136
      %2176 = vmatprep.subr.mxu0 0.0
      %2177 = vmatpush1.msra.mxu0 %v2135
      %2178 = vmatprep.subr.mxu0 0.0
      %2179 = vmatpush1.msra.mxu0 %v2134
      %2180 = vmatprep.subr.mxu0 0.0
      %2181 = vmatpush2.msra.mxu0 0.0
      %2182 = vmatprep.subr.mxu0 0.0
      %2183 = vmatpush2.msra.mxu0 0.0
      %2184 = vmatprep.subr.mxu0 0.0
      %2185 = vmatpush2.msra.mxu0 0.0
      %2186 = vmatprep.subr.mxu0 0.0
      %2187 = vmatpush2.msra.mxu0 0.0
      %2188 = vmatprep.subr.mxu0 0.0
      %2189 = vmatpush2.msra.mxu0 0.0
      %2190 = vmatprep.subr.mxu0 0.0
      %2191 = vmatpush2.msra.mxu0 0.0
      %2192 = vmatprep.subr.mxu0 0.0
      %2193 = vmatpush2.msra.mxu0 0.0
      %2194 = vmatprep.subr.mxu0 0.0
      %2195 = vmatpush2.msra.mxu0 0.0
      %2196 = vmatprep.subr.mxu0 0.0
      %2197 = vmatpush2.msra.mxu0 0.0
      %2198 = vmatprep.subr.mxu0 0.0
      %2199 = vmatpush2.msra.mxu0 0.0
      %2200 = vmatprep.subr.mxu0 0.0
      %2201 = vmatpush2.msra.mxu0 0.0
      %2202 = vmatprep.subr.mxu0 0.0
      %2203 = vmatpush2.msra.mxu0 0.0
      %2204 = vmatprep.subr.mxu0 0.0
      %2205 = vmatpush2.msra.mxu0 0.0
      %2206 = vmatprep.subr.mxu0 0.0
      %2207 = vmatpush2.msra.mxu0 0.0
      %2208 = vmatprep.subr.mxu0 0.0
      %2209 = vmatpush2.msra.mxu0 0.0
      %2210 = vmatprep.subr.mxu0 0.0
      %2211 = vmatpush2.msra.mxu0 0.0
      %2212 = vmatprep.mubr.f32.mxu0 0.0
      %2213 = vmatmul.mubr.f32.gmra.mxu0 %v2146
      %v2214 = vpop.f32.mrf.mxu0
      %v2215 = vadd.f32 %v2143, %v2214
      %v2216 = vpop.f32.mrf.mxu0
      %2217 = vdwg.mxu0
      %v2218 = vmul.f32 %v2215, %v2215
      %v2219 = vmul.f32 %v2215, %v2218
      %v2220 = vmul.f32 %v2219, 0.044715
      %v2221 = vadd.f32 %v2215, %v2220
      %v2222 = vmul.f32 %v2221, 0.7978846
      %v2223 = vtanh.pop %v2222
      %v2224 = vadd.f32 %v2223, 1.0
      %v2225 = vmul.f32 %v2224, 0.5
      %v2226 = vmul.f32 %v2215, %v2225
      %v2227 = vld [vmem:[%s18] sm:$0xff]
      %v2228 = vld [vmem:[%s18 + $0x8] sm:$0xff]
      %v2229 = vld [vmem:[%s18 + $0x10] sm:$0xff]
      %v2230 = vld [vmem:[%s18 + $0x18] sm:$0xff]
      %v2231 = vld [vmem:[%s18 + $0x20] sm:$0xff]
      %v2232 = vld [vmem:[%s18 + $0x28] sm:$0xff]
      %v2233 = vld [vmem:[%s18 + $0x30] sm:$0xff]
      %v2234 = vld [vmem:[%s18 + $0x38] sm:$0xff]
      %vm2235 = vcmask 523264
      %v2237 = vsel %vm2235, %v2226, 0
      %2239 = vmatprep.subr.mxu0 0.0
      %2240 = vmatpush1.msra.mxu0 0.0
      %2241 = vmatprep.subr.mxu0 0.0
      %2242 = vmatpush1.msra.mxu0 0.0
      %2243 = vmatprep.subr.mxu0 0.0
      %2244 = vmatpush1.msra.mxu0 0.0
      %2245 = vmatprep.subr.mxu0 0.0
      %2246 = vmatpush1.msra.mxu0 0.0
      %2247 = vmatprep.subr.mxu0 0.0
      %2248 = vmatpush1.msra.mxu0 0.0
      %2249 = vmatprep.subr.mxu0 0.0
      %2250 = vmatpush1.msra.mxu0 0.0
      %2251 = vmatprep.subr.mxu0 0.0
      %2252 = vmatpush1.msra.mxu0 0.0
      %2253 = vmatprep.subr.mxu0 0.0
      %2254 = vmatpush1.msra.mxu0 0.0
      %2255 = vmatprep.subr.mxu0 0.0
      %2256 = vmatpush1.msra.mxu0 %v2234
      %2257 = vmatprep.subr.mxu0 0.0
      %2258 = vmatpush1.msra.mxu0 %v2233
      %2259 = vmatprep.subr.mxu0 0.0
      %2260 = vmatpush1.msra.mxu0 %v2232
      %2261 = vmatprep.subr.mxu0 0.0
      %2262 = vmatpush1.msra.mxu0 %v2231
      %2263 = vmatprep.subr.mxu0 0.0
      %2264 = vmatpush1.msra.mxu0 %v2230
      %2265 = vmatprep.subr.mxu0 0.0
      %2266 = vmatpush1.msra.mxu0 %v2229
      %2267 = vmatprep.subr.mxu0 0.0
      %2268 = vmatpush1.msra.mxu0 %v2228
      %2269 = vmatprep.subr.mxu0 0.0
      %2270 = vmatpush1.msra.mxu0 %v2227
      %2271 = vmatprep.subr.mxu0 0.0
      %2272 = vmatpush2.msra.mxu0 0.0
      %2273 = vmatprep.subr.mxu0 0.0
      %2274 = vmatpush2.msra.mxu0 0.0
      %2275 = vmatprep.subr.mxu0 0.0
      %2276 = vmatpush2.msra.mxu0 0.0
      %2277 = vmatprep.subr.mxu0 0.0
      %2278 = vmatpush2.msra.mxu0 0.0
      %2279 = vmatprep.subr.mxu0 0.0
      %2280 = vmatpush2.msra.mxu0 0.0
      %2281 = vmatprep.subr.mxu0 0.0
      %2282 = vmatpush2.msra.mxu0 0.0
      %2283 = vmatprep.subr.mxu0 0.0
      %2284 = vmatpush2.msra.mxu0 0.0
      %2285 = vmatprep.subr.mxu0 0.0
      %2286 = vmatpush2.msra.mxu0 0.0
      %2287 = vmatprep.subr.mxu0 0.0
      %2288 = vmatpush2.msra.mxu0 0.0
      %2289 = vmatprep.subr.mxu0 0.0
      %2290 = vmatpush2.msra.mxu0 0.0
      %2291 = vmatprep.subr.mxu0 0.0
      %2292 = vmatpush2.msra.mxu0 0.0
      %2293 = vmatprep.subr.mxu0 0.0
      %2294 = vmatpush2.msra.mxu0 0.0
      %2295 = vmatprep.subr.mxu0 0.0
      %2296 = vmatpush2.msra.mxu0 0.0
      %2297 = vmatprep.subr.mxu0 0.0
      %2298 = vmatpush2.msra.mxu0 0.0
      %2299 = vmatprep.subr.mxu0 0.0
      %2300 = vmatpush2.msra.mxu0 0.0
      %2301 = vmatprep.subr.mxu0 0.0
      %2302 = vmatpush2.msra.mxu0 0.0
      %2303 = vmatprep.mubr.f32.mxu0 0.0
      %2304 = vmatmul.mubr.f32.gmra.mxu0 %v2237
      %v2305 = vpop.f32.mrf.mxu0
      %v2306 = vadd.f32 0.0, %v2305
      %v2307 = vpop.f32.mrf.mxu0
      %2308 = vdwg.mxu0
      %v2309 = vadd.f32 %v2104, %v2306
      %v2310 = vld [vmem:[%s19] sm:$0x1]
      %v2312 = vlaneseq
      %v2313 = vshrl.u32 %v2312, 7
      %v2314 = vsub.s32 0, %v2313
      %v2315 = vrot.slane %v2310, %v2314
      %v2317 = vadd.f32 %v2309, %v2315
      %s2318 = scalar_lea.vmem %s8, 1
      %v2319 = vld [vmem:[%s2318] sm:$0x1]
      %s2320 = scalar_lea.vmem %s9, 1
      %v2321 = vld [vmem:[%s2320] sm:$0x1]
      %v2322 = vsel %vm990, %v2317, 0.0
      %2323 = vadd.xlane.f32.xlu0 %v2322
      %v2324 = vpop.xlane.xlu0 %2323
      %v2325 = vmul.f32 %v2324, %v994
      %v2326 = vsub.f32 %v2317, %v2325
      %v2327 = vmul.f32 %v2326, %v2326
      %v2328 = vsel %vm990, %v2327, 0.0
      %2329 = vadd.xlane.f32.xlu0 %v2328
      %v2330 = vpop.xlane.xlu0 %2329
      %v2331 = vmul.f32 %v2330, %v994
      %v2332 = vadd.f32 %v2331, 1e-05
      %v2333 = vrsqrt.pop %v2332
      %v2334 = vmul.f32 %v2326, %v2333
      %v2336 = vlaneseq
      %v2337 = vshrl.u32 %v2336, 7
      %v2338 = vsub.s32 0, %v2337
      %v2339 = vrot.slane %v2319, %v2338
      %v2341 = vmul.f32 %v2334, %v2339
      %v2343 = vlaneseq
      %v2344 = vshrl.u32 %v2343, 7
      %v2345 = vsub.s32 0, %v2344
      %v2346 = vrot.slane %v2321, %v2345
      %v2348 = vadd.f32 %v2341, %v2346
      %s2349 = scalar_lea.vmem %s10, 32
      %v2350 = vld [vmem:[%s2349] sm:$0xff]
      %v2351 = vld [vmem:[%s2349 + $0x8] sm:$0xff]
      %v2352 = vld [vmem:[%s2349 + $0x10] sm:$0xff]
      %v2353 = vld [vmem:[%s2349 + $0x18] sm:$0xff]
      %s2354 = scalar_lea.vmem %s11, 1
      %v2355 = vld [vmem:[%s2354] sm:$0x1]
      %v2357 = vlaneseq
      %v2358 = vshrl.u32 %v2357, 7
      %v2359 = vsub.s32 0, %v2358
      %v2360 = vrot.slane %v2355, %v2359
      %v2363 = vsel %vm990, %v2348, 0
      %2365 = vmatprep.subr.mxu0 0.0
      %2366 = vmatpush1.msra.mxu0 0.0
      %2367 = vmatprep.subr.mxu0 0.0
      %2368 = vmatpush1.msra.mxu0 0.0
      %2369 = vmatprep.subr.mxu0 0.0
      %2370 = vmatpush1.msra.mxu0 0.0
      %2371 = vmatprep.subr.mxu0 0.0
      %2372 = vmatpush1.msra.mxu0 0.0
      %2373 = vmatprep.subr.mxu0 0.0
      %2374 = vmatpush1.msra.mxu0 0.0
      %2375 = vmatprep.subr.mxu0 0.0
      %2376 = vmatpush1.msra.mxu0 0.0
      %2377 = vmatprep.subr.mxu0 0.0
      %2378 = vmatpush1.msra.mxu0 0.0
      %2379 = vmatprep.subr.mxu0 0.0
      %2380 = vmatpush1.msra.mxu0 0.0
      %2381 = vmatprep.subr.mxu0 0.0
      %2382 = vmatpush1.msra.mxu0 0.0
      %2383 = vmatprep.subr.mxu0 0.0
      %2384 = vmatpush1.msra.mxu0 0.0
      %2385 = vmatprep.subr.mxu0 0.0
      %2386 = vmatpush1.msra.mxu0 0.0
      %2387 = vmatprep.subr.mxu0 0.0
      %2388 = vmatpush1.msra.mxu0 0.0
      %2389 = vmatprep.subr.mxu0 0.0
      %2390 = vmatpush1.msra.mxu0 %v2353
      %2391 = vmatprep.subr.mxu0 0.0
      %2392 = vmatpush1.msra.mxu0 %v2352
      %2393 = vmatprep.subr.mxu0 0.0
      %2394 = vmatpush1.msra.mxu0 %v2351
      %2395 = vmatprep.subr.mxu0 0.0
      %2396 = vmatpush1.msra.mxu0 %v2350
      %2397 = vmatprep.subr.mxu0 0.0
      %2398 = vmatpush2.msra.mxu0 0.0
      %2399 = vmatprep.subr.mxu0 0.0
      %2400 = vmatpush2.msra.mxu0 0.0
      %2401 = vmatprep.subr.mxu0 0.0
      %2402 = vmatpush2.msra.mxu0 0.0
      %2403 = vmatprep.subr.mxu0 0.0
      %2404 = vmatpush2.msra.mxu0 0.0
      %2405 = vmatprep.subr.mxu0 0.0
      %2406 = vmatpush2.msra.mxu0 0.0
      %2407 = vmatprep.subr.mxu0 0.0
      %2408 = vmatpush2.msra.mxu0 0.0
      %2409 = vmatprep.subr.mxu0 0.0
      %2410 = vmatpush2.msra.mxu0 0.0
      %2411 = vmatprep.subr.mxu0 0.0
      %2412 = vmatpush2.msra.mxu0 0.0
      %2413 = vmatprep.subr.mxu0 0.0
      %2414 = vmatpush2.msra.mxu0 0.0
      %2415 = vmatprep.subr.mxu0 0.0
      %2416 = vmatpush2.msra.mxu0 0.0
      %2417 = vmatprep.subr.mxu0 0.0
      %2418 = vmatpush2.msra.mxu0 0.0
      %2419 = vmatprep.subr.mxu0 0.0
      %2420 = vmatpush2.msra.mxu0 0.0
      %2421 = vmatprep.subr.mxu0 0.0
      %2422 = vmatpush2.msra.mxu0 0.0
      %2423 = vmatprep.subr.mxu0 0.0
      %2424 = vmatpush2.msra.mxu0 0.0
      %2425 = vmatprep.subr.mxu0 0.0
      %2426 = vmatpush2.msra.mxu0 0.0
      %2427 = vmatprep.subr.mxu0 0.0
      %2428 = vmatpush2.msra.mxu0 0.0
      %2429 = vmatprep.mubr.f32.mxu0 0.0
      %2430 = vmatmul.mubr.f32.gmra.mxu0 %v2363
      %v2431 = vpop.f32.mrf.mxu0
      %v2432 = vadd.f32 %v2360, %v2431
      %v2433 = vpop.f32.mrf.mxu0
      %2434 = vdwg.mxu0
      %s2435 = scalar_lea.vmem %s12, 32
      %v2436 = vld [vmem:[%s2435] sm:$0xff]
      %v2437 = vld [vmem:[%s2435 + $0x8] sm:$0xff]
      %v2438 = vld [vmem:[%s2435 + $0x10] sm:$0xff]
      %v2439 = vld [vmem:[%s2435 + $0x18] sm:$0xff]
      %s2440 = scalar_lea.vmem %s13, 1
      %v2441 = vld [vmem:[%s2440] sm:$0x1]
      %2443 = vrot.lane.b32.xlu0 %v2432, 96
      %v2444 = vpop.permute.xlu0 %2443
      %v2445 = vsel %vm1111, %v2432, 0
      %v2447 = vsel %vm1111, %v2444, 0
      %2449 = vmatprep.subr.mxu0 0.0
      %2450 = vmatpush1.xpose.msra.mxu0 0.0
      %2451 = vmatprep.subr.mxu0 0.0
      %2452 = vmatpush1.xpose.msra.mxu0 0.0
      %2453 = vmatprep.subr.mxu0 0.0
      %2454 = vmatpush1.xpose.msra.mxu0 0.0
      %2455 = vmatprep.subr.mxu0 0.0
      %2456 = vmatpush1.xpose.msra.mxu0 0.0
      %2457 = vmatprep.subr.mxu0 0.0
      %2458 = vmatpush1.xpose.msra.mxu0 0.0
      %2459 = vmatprep.subr.mxu0 0.0
      %2460 = vmatpush1.xpose.msra.mxu0 0.0
      %2461 = vmatprep.subr.mxu0 0.0
      %2462 = vmatpush1.xpose.msra.mxu0 0.0
      %2463 = vmatprep.subr.mxu0 0.0
      %2464 = vmatpush1.xpose.msra.mxu0 0.0
      %2465 = vmatprep.subr.mxu0 0.0
      %2466 = vmatpush1.xpose.msra.mxu0 0.0
      %2467 = vmatprep.subr.mxu0 0.0
      %2468 = vmatpush1.xpose.msra.mxu0 0.0
      %2469 = vmatprep.subr.mxu0 0.0
      %2470 = vmatpush1.xpose.msra.mxu0 0.0
      %2471 = vmatprep.subr.mxu0 0.0
      %2472 = vmatpush1.xpose.msra.mxu0 0.0
      %2473 = vmatprep.subr.mxu0 0.0
      %2474 = vmatpush1.xpose.msra.mxu0 0.0
      %2475 = vmatprep.subr.mxu0 0.0
      %2476 = vmatpush1.xpose.msra.mxu0 0.0
      %2477 = vmatprep.subr.mxu0 0.0
      %2478 = vmatpush1.xpose.msra.mxu0 0.0
      %2479 = vmatprep.subr.mxu0 0.0
      %2480 = vmatpush1.xpose.msra.mxu0 %v2447
      %2481 = vmatprep.subr.mxu0 0.0
      %2482 = vmatpush2.xpose.msra.mxu0 0.0
      %2483 = vmatprep.subr.mxu0 0.0
      %2484 = vmatpush2.xpose.msra.mxu0 0.0
      %2485 = vmatprep.subr.mxu0 0.0
      %2486 = vmatpush2.xpose.msra.mxu0 0.0
      %2487 = vmatprep.subr.mxu0 0.0
      %2488 = vmatpush2.xpose.msra.mxu0 0.0
      %2489 = vmatprep.subr.mxu0 0.0
      %2490 = vmatpush2.xpose.msra.mxu0 0.0
      %2491 = vmatprep.subr.mxu0 0.0
      %2492 = vmatpush2.xpose.msra.mxu0 0.0
      %2493 = vmatprep.subr.mxu0 0.0
      %2494 = vmatpush2.xpose.msra.mxu0 0.0
      %2495 = vmatprep.subr.mxu0 0.0
      %2496 = vmatpush2.xpose.msra.mxu0 0.0
      %2497 = vmatprep.subr.mxu0 0.0
      %2498 = vmatpush2.xpose.msra.mxu0 0.0
      %2499 = vmatprep.subr.mxu0 0.0
      %2500 = vmatpush2.xpose.msra.mxu0 0.0
      %2501 = vmatprep.subr.mxu0 0.0
      %2502 = vmatpush2.xpose.msra.mxu0 0.0
      %2503 = vmatprep.subr.mxu0 0.0
      %2504 = vmatpush2.xpose.msra.mxu0 0.0
      %2505 = vmatprep.subr.mxu0 0.0
      %2506 = vmatpush2.xpose.msra.mxu0 0.0
      %2507 = vmatprep.subr.mxu0 0.0
      %2508 = vmatpush2.xpose.msra.mxu0 0.0
      %2509 = vmatprep.subr.mxu0 0.0
      %2510 = vmatpush2.xpose.msra.mxu0 0.0
      %2511 = vmatprep.subr.mxu0 0.0
      %2512 = vmatpush2.xpose.msra.mxu0 0.0
      %2513 = vmatprep.mubr.f32.mxu0 0.0
      %2514 = vmatmul.mubr.f32.gmra.mxu0 %v2445
      %v2515 = vpop.f32.mrf.mxu0
      %v2516 = vadd.f32 0.0, %v2515
      %v2517 = vpop.f32.mrf.mxu0
      %2518 = vdwg.mxu0
      %v2519 = vmul.f32 %v2516, 0.35355338
      %v2520 = vmul.f32 %v2519, %v1189
      %v2521 = vadd.f32 %v2520, %v898
      %v2522 = vsel %vm1111, %v2521, -inf
      %2523 = vmax.xlane.f32.xlu0 %v2522
      %v2524 = vpop.xlane.xlu0 %2523
      %v2525 = vsub.f32 %v2521, %v2524
      %v2526 = vmul.f32 %v2525, 1.442695
      %v2527 = vpow.pop %v2526
      %v2528 = vsel %vm1111, %v2527, 0.0
      %2529 = vadd.xlane.f32.xlu0 %v2528
      %v2530 = vpop.xlane.xlu0 %2529
      %v2531 = vrcp.pop %v2530
      %v2532 = vmul.f32 %v2527, %v2531
      %2533 = vrot.lane.b32.xlu0 %v2432, 64
      %v2534 = vpop.permute.xlu0 %2533
      %v2537 = vsel %vm1111, %v2532, 0
      %2539 = vmatprep.subr.mxu0 0.0
      %2540 = vmatpush1.msra.mxu0 0.0
      %2541 = vmatprep.subr.mxu0 0.0
      %2542 = vmatpush1.msra.mxu0 0.0
      %2543 = vmatprep.subr.mxu0 0.0
      %2544 = vmatpush1.msra.mxu0 0.0
      %2545 = vmatprep.subr.mxu0 0.0
      %2546 = vmatpush1.msra.mxu0 0.0
      %2547 = vmatprep.subr.mxu0 0.0
      %2548 = vmatpush1.msra.mxu0 0.0
      %2549 = vmatprep.subr.mxu0 0.0
      %2550 = vmatpush1.msra.mxu0 0.0
      %2551 = vmatprep.subr.mxu0 0.0
      %2552 = vmatpush1.msra.mxu0 0.0
      %2553 = vmatprep.subr.mxu0 0.0
      %2554 = vmatpush1.msra.mxu0 0.0
      %2555 = vmatprep.subr.mxu0 0.0
      %2556 = vmatpush1.msra.mxu0 0.0
      %2557 = vmatprep.subr.mxu0 0.0
      %2558 = vmatpush1.msra.mxu0 0.0
      %2559 = vmatprep.subr.mxu0 0.0
      %2560 = vmatpush1.msra.mxu0 0.0
      %2561 = vmatprep.subr.mxu0 0.0
      %2562 = vmatpush1.msra.mxu0 0.0
      %2563 = vmatprep.subr.mxu0 0.0
      %2564 = vmatpush1.msra.mxu0 0.0
      %2565 = vmatprep.subr.mxu0 0.0
      %2566 = vmatpush1.msra.mxu0 0.0
      %2567 = vmatprep.subr.mxu0 0.0
      %2568 = vmatpush1.msra.mxu0 0.0
      %2569 = vmatprep.subr.mxu0 0.0
      %2570 = vmatpush1.msra.mxu0 %v2534
      %2571 = vmatprep.subr.mxu0 0.0
      %2572 = vmatpush2.msra.mxu0 0.0
      %2573 = vmatprep.subr.mxu0 0.0
      %2574 = vmatpush2.msra.mxu0 0.0
      %2575 = vmatprep.subr.mxu0 0.0
      %2576 = vmatpush2.msra.mxu0 0.0
      %2577 = vmatprep.subr.mxu0 0.0
      %2578 = vmatpush2.msra.mxu0 0.0
      %2579 = vmatprep.subr.mxu0 0.0
      %2580 = vmatpush2.msra.mxu0 0.0
      %2581 = vmatprep.subr.mxu0 0.0
      %2582 = vmatpush2.msra.mxu0 0.0
      %2583 = vmatprep.subr.mxu0 0.0
      %2584 = vmatpush2.msra.mxu0 0.0
      %2585 = vmatprep.subr.mxu0 0.0
      %2586 = vmatpush2.msra.mxu0 0.0
      %2587 = vmatprep.subr.mxu0 0.0
      %2588 = vmatpush2.msra.mxu0 0.0
      %2589 = vmatprep.subr.mxu0 0.0
      %2590 = vmatpush2.msra.mxu0 0.0
      %2591 = vmatprep.subr.mxu0 0.0
      %2592 = vmatpush2.msra.mxu0 0.0
      %2593 = vmatprep.subr.mxu0 0.0
      %2594 = vmatpush2.msra.mxu0 0.0
      %2595 = vmatprep.subr.mxu0 0.0
      %2596 = vmatpush2.msra.mxu0 0.0
      %2597 = vmatprep.subr.mxu0 0.0
      %2598 = vmatpush2.msra.mxu0 0.0
      %2599 = vmatprep.subr.mxu0 0.0
      %2600 = vmatpush2.msra.mxu0 0.0
      %2601 = vmatprep.subr.mxu0 0.0
      %2602 = vmatpush2.msra.mxu0 0.0
      %2603 = vmatprep.mubr.f32.mxu0 0.0
      %2604 = vmatmul.mubr.f32.gmra.mxu0 %v2537
      %v2605 = vpop.f32.mrf.mxu0
      %v2606 = vadd.f32 0.0, %v2605
      %v2607 = vpop.f32.mrf.mxu0
      %2608 = vdwg.mxu0
      %v2610 = vsel %vm1111, %v2606, 0
      %2612 = vmatprep.subr.mxu0 0.0
      %2613 = vmatpush1.msra.mxu0 0.0
      %2614 = vmatprep.subr.mxu0 0.0
      %2615 = vmatpush1.msra.mxu0 0.0
      %2616 = vmatprep.subr.mxu0 0.0
      %2617 = vmatpush1.msra.mxu0 0.0
      %2618 = vmatprep.subr.mxu0 0.0
      %2619 = vmatpush1.msra.mxu0 0.0
      %2620 = vmatprep.subr.mxu0 0.0
      %2621 = vmatpush1.msra.mxu0 0.0
      %2622 = vmatprep.subr.mxu0 0.0
      %2623 = vmatpush1.msra.mxu0 0.0
      %2624 = vmatprep.subr.mxu0 0.0
      %2625 = vmatpush1.msra.mxu0 0.0
      %2626 = vmatprep.subr.mxu0 0.0
      %2627 = vmatpush1.msra.mxu0 0.0
      %2628 = vmatprep.subr.mxu0 0.0
      %2629 = vmatpush1.msra.mxu0 0.0
      %2630 = vmatprep.subr.mxu0 0.0
      %2631 = vmatpush1.msra.mxu0 0.0
      %2632 = vmatprep.subr.mxu0 0.0
      %2633 = vmatpush1.msra.mxu0 0.0
      %2634 = vmatprep.subr.mxu0 0.0
      %2635 = vmatpush1.msra.mxu0 0.0
      %2636 = vmatprep.subr.mxu0 0.0
      %2637 = vmatpush1.msra.mxu0 0.0
      %2638 = vmatprep.subr.mxu0 0.0
      %2639 = vmatpush1.msra.mxu0 0.0
      %2640 = vmatprep.subr.mxu0 0.0
      %2641 = vmatpush1.msra.mxu0 0.0
      %2642 = vmatprep.subr.mxu0 0.0
      %2643 = vmatpush1.msra.mxu0 %v2436
      %2644 = vmatprep.subr.mxu0 0.0
      %2645 = vmatpush2.msra.mxu0 0.0
      %2646 = vmatprep.subr.mxu0 0.0
      %2647 = vmatpush2.msra.mxu0 0.0
      %2648 = vmatprep.subr.mxu0 0.0
      %2649 = vmatpush2.msra.mxu0 0.0
      %2650 = vmatprep.subr.mxu0 0.0
      %2651 = vmatpush2.msra.mxu0 0.0
      %2652 = vmatprep.subr.mxu0 0.0
      %2653 = vmatpush2.msra.mxu0 0.0
      %2654 = vmatprep.subr.mxu0 0.0
      %2655 = vmatpush2.msra.mxu0 0.0
      %2656 = vmatprep.subr.mxu0 0.0
      %2657 = vmatpush2.msra.mxu0 0.0
      %2658 = vmatprep.subr.mxu0 0.0
      %2659 = vmatpush2.msra.mxu0 0.0
      %2660 = vmatprep.subr.mxu0 0.0
      %2661 = vmatpush2.msra.mxu0 0.0
      %2662 = vmatprep.subr.mxu0 0.0
      %2663 = vmatpush2.msra.mxu0 0.0
      %2664 = vmatprep.subr.mxu0 0.0
      %2665 = vmatpush2.msra.mxu0 0.0
      %2666 = vmatprep.subr.mxu0 0.0
      %2667 = vmatpush2.msra.mxu0 0.0
      %2668 = vmatprep.subr.mxu0 0.0
      %2669 = vmatpush2.msra.mxu0 0.0
      %2670 = vmatprep.subr.mxu0 0.0
      %2671 = vmatpush2.msra.mxu0 0.0
      %2672 = vmatprep.subr.mxu0 0.0
      %2673 = vmatpush2.msra.mxu0 0.0
      %2674 = vmatprep.subr.mxu0 0.0
      %2675 = vmatpush2.msra.mxu0 0.0
      %2676 = vmatprep.mubr.f32.mxu0 0.0
      %2677 = vmatmul.mubr.f32.gmra.mxu0 %v2610
      %v2678 = vpop.f32.mrf.mxu0
      %v2679 = vadd.f32 0.0, %v2678
      %v2680 = vpop.f32.mrf.mxu0
      %2681 = vdwg.mxu0
      %v2683 = vlaneseq
      %v2684 = vshrl.u32 %v2683, 7
      %v2685 = vsub.s32 0, %v2684
      %v2686 = vrot.slane %v2441, %v2685
      %v2688 = vadd.f32 %v2686, %v2679
      %2689 = vrot.lane.b32.xlu0 %v2432, 120
      %v2690 = vpop.permute.xlu0 %2689
      %2691 = vrot.lane.b32.xlu0 %v2432, 88
      %v2692 = vpop.permute.xlu0 %2691
      %v2693 = vsel %vm1111, %v2690, 0
      %v2695 = vsel %vm1111, %v2692, 0
      %2697 = vmatprep.subr.mxu0 0.0
      %2698 = vmatpush1.xpose.msra.mxu0 0.0
      %2699 = vmatprep.subr.mxu0 0.0
      %2700 = vmatpush1.xpose.msra.mxu0 0.0
      %2701 = vmatprep.subr.mxu0 0.0
      %2702 = vmatpush1.xpose.msra.mxu0 0.0
      %2703 = vmatprep.subr.mxu0 0.0
      %2704 = vmatpush1.xpose.msra.mxu0 0.0
      %2705 = vmatprep.subr.mxu0 0.0
      %2706 = vmatpush1.xpose.msra.mxu0 0.0
      %2707 = vmatprep.subr.mxu0 0.0
      %2708 = vmatpush1.xpose.msra.mxu0 0.0
      %2709 = vmatprep.subr.mxu0 0.0
      %2710 = vmatpush1.xpose.msra.mxu0 0.0
      %2711 = vmatprep.subr.mxu0 0.0
      %2712 = vmatpush1.xpose.msra.mxu0 0.0
      %2713 = vmatprep.subr.mxu0 0.0
      %2714 = vmatpush1.xpose.msra.mxu0 0.0
      %2715 = vmatprep.subr.mxu0 0.0
      %2716 = vmatpush1.xpose.msra.mxu0 0.0
      %2717 = vmatprep.subr.mxu0 0.0
      %2718 = vmatpush1.xpose.msra.mxu0 0.0
      %2719 = vmatprep.subr.mxu0 0.0
      %2720 = vmatpush1.xpose.msra.mxu0 0.0
      %2721 = vmatprep.subr.mxu0 0.0
      %2722 = vmatpush1.xpose.msra.mxu0 0.0
      %2723 = vmatprep.subr.mxu0 0.0
      %2724 = vmatpush1.xpose.msra.mxu0 0.0
      %2725 = vmatprep.subr.mxu0 0.0
      %2726 = vmatpush1.xpose.msra.mxu0 0.0
      %2727 = vmatprep.subr.mxu0 0.0
      %2728 = vmatpush1.xpose.msra.mxu0 %v2695
      %2729 = vmatprep.subr.mxu0 0.0
      %2730 = vmatpush2.xpose.msra.mxu0 0.0
      %2731 = vmatprep.subr.mxu0 0.0
      %2732 = vmatpush2.xpose.msra.mxu0 0.0
      %2733 = vmatprep.subr.mxu0 0.0
      %2734 = vmatpush2.xpose.msra.mxu0 0.0
      %2735 = vmatprep.subr.mxu0 0.0
      %2736 = vmatpush2.xpose.msra.mxu0 0.0
      %2737 = vmatprep.subr.mxu0 0.0
      %2738 = vmatpush2.xpose.msra.mxu0 0.0
      %2739 = vmatprep.subr.mxu0 0.0
      %2740 = vmatpush2.xpose.msra.mxu0 0.0
      %2741 = vmatprep.subr.mxu0 0.0
      %2742 = vmatpush2.xpose.msra.mxu0 0.0
      %2743 = vmatprep.subr.mxu0 0.0
      %2744 = vmatpush2.xpose.msra.mxu0 0.0
      %2745 = vmatprep.subr.mxu0 0.0
      %2746 = vmatpush2.xpose.msra.mxu0 0.0
      %2747 = vmatprep.subr.mxu0 0.0
      %2748 = vmatpush2.xpose.msra.mxu0 0.0
      %2749 = vmatprep.subr.mxu0 0.0
      %2750 = vmatpush2.xpose.msra.mxu0 0.0
      %2751 = vmatprep.subr.mxu0 0.0
      %2752 = vmatpush2.xpose.msra.mxu0 0.0
      %2753 = vmatprep.subr.mxu0 0.0
      %2754 = vmatpush2.xpose.msra.mxu0 0.0
      %2755 = vmatprep.subr.mxu0 0.0
      %2756 = vmatpush2.xpose.msra.mxu0 0.0
      %2757 = vmatprep.subr.mxu0 0.0
      %2758 = vmatpush2.xpose.msra.mxu0 0.0
      %2759 = vmatprep.subr.mxu0 0.0
      %2760 = vmatpush2.xpose.msra.mxu0 0.0
      %2761 = vmatprep.mubr.f32.mxu0 0.0
      %2762 = vmatmul.mubr.f32.gmra.mxu0 %v2693
      %v2763 = vpop.f32.mrf.mxu0
      %v2764 = vadd.f32 0.0, %v2763
      %v2765 = vpop.f32.mrf.mxu0
      %2766 = vdwg.mxu0
      %v2767 = vmul.f32 %v2764, 0.35355338
      %v2768 = vmul.f32 %v2767, %v1440
      %v2769 = vadd.f32 %v2768, %v1444
      %v2770 = vsel %vm1111, %v2769, -inf
      %2771 = vmax.xlane.f32.xlu0 %v2770
      %v2772 = vpop.xlane.xlu0 %2771
      %v2773 = vsub.f32 %v2769, %v2772
      %v2774 = vmul.f32 %v2773, 1.442695
      %v2775 = vpow.pop %v2774
      %v2776 = vsel %vm1111, %v2775, 0.0
      %2777 = vadd.xlane.f32.xlu0 %v2776
      %v2778 = vpop.xlane.xlu0 %2777
      %v2779 = vrcp.pop %v2778
      %v2780 = vmul.f32 %v2775, %v2779
      %2781 = vrot.lane.b32.xlu0 %v2432, 56
      %v2782 = vpop.permute.xlu0 %2781
      %v2785 = vsel %vm1111, %v2780, 0
      %2787 = vmatprep.subr.mxu0 0.0
      %2788 = vmatpush1.msra.mxu0 0.0
      %2789 = vmatprep.subr.mxu0 0.0
      %2790 = vmatpush1.msra.mxu0 0.0
      %2791 = vmatprep.subr.mxu0 0.0
      %2792 = vmatpush1.msra.mxu0 0.0
      %2793 = vmatprep.subr.mxu0 0.0
      %2794 = vmatpush1.msra.mxu0 0.0
      %2795 = vmatprep.subr.mxu0 0.0
      %2796 = vmatpush1.msra.mxu0 0.0
      %2797 = vmatprep.subr.mxu0 0.0
      %2798 = vmatpush1.msra.mxu0 0.0
      %2799 = vmatprep.subr.mxu0 0.0
      %2800 = vmatpush1.msra.mxu0 0.0
      %2801 = vmatprep.subr.mxu0 0.0
      %2802 = vmatpush1.msra.mxu0 0.0
      %2803 = vmatprep.subr.mxu0 0.0
      %2804 = vmatpush1.msra.mxu0 0.0
      %2805 = vmatprep.subr.mxu0 0.0
      %2806 = vmatpush1.msra.mxu0 0.0
      %2807 = vmatprep.subr.mxu0 0.0
      %2808 = vmatpush1.msra.mxu0 0.0
      %2809 = vmatprep.subr.mxu0 0.0
      %2810 = vmatpush1.msra.mxu0 0.0
      %2811 = vmatprep.subr.mxu0 0.0
      %2812 = vmatpush1.msra.mxu0 0.0
      %2813 = vmatprep.subr.mxu0 0.0
      %2814 = vmatpush1.msra.mxu0 0.0
      %2815 = vmatprep.subr.mxu0 0.0
      %2816 = vmatpush1.msra.mxu0 0.0
      %2817 = vmatprep.subr.mxu0 0.0
      %2818 = vmatpush1.msra.mxu0 %v2782
      %2819 = vmatprep.subr.mxu0 0.0
      %2820 = vmatpush2.msra.mxu0 0.0
      %2821 = vmatprep.subr.mxu0 0.0
      %2822 = vmatpush2.msra.mxu0 0.0
      %2823 = vmatprep.subr.mxu0 0.0
      %2824 = vmatpush2.msra.mxu0 0.0
      %2825 = vmatprep.subr.mxu0 0.0
      %2826 = vmatpush2.msra.mxu0 0.0
      %2827 = vmatprep.subr.mxu0 0.0
      %2828 = vmatpush2.msra.mxu0 0.0
      %2829 = vmatprep.subr.mxu0 0.0
      %2830 = vmatpush2.msra.mxu0 0.0
      %2831 = vmatprep.subr.mxu0 0.0
      %2832 = vmatpush2.msra.mxu0 0.0
      %2833 = vmatprep.subr.mxu0 0.0
      %2834 = vmatpush2.msra.mxu0 0.0
      %2835 = vmatprep.subr.mxu0 0.0
      %2836 = vmatpush2.msra.mxu0 0.0
      %2837 = vmatprep.subr.mxu0 0.0
      %2838 = vmatpush2.msra.mxu0 0.0
      %2839 = vmatprep.subr.mxu0 0.0
      %2840 = vmatpush2.msra.mxu0 0.0
      %2841 = vmatprep.subr.mxu0 0.0
      %2842 = vmatpush2.msra.mxu0 0.0
      %2843 = vmatprep.subr.mxu0 0.0
      %2844 = vmatpush2.msra.mxu0 0.0
      %2845 = vmatprep.subr.mxu0 0.0
      %2846 = vmatpush2.msra.mxu0 0.0
      %2847 = vmatprep.subr.mxu0 0.0
      %2848 = vmatpush2.msra.mxu0 0.0
      %2849 = vmatprep.subr.mxu0 0.0
      %2850 = vmatpush2.msra.mxu0 0.0
      %2851 = vmatprep.mubr.f32.mxu0 0.0
      %2852 = vmatmul.mubr.f32.gmra.mxu0 %v2785
      %v2853 = vpop.f32.mrf.mxu0
      %v2854 = vadd.f32 0.0, %v2853
      %v2855 = vpop.f32.mrf.mxu0
      %2856 = vdwg.mxu0
      %v2858 = vsel %vm1111, %v2854, 0
      %2860 = vmatprep.subr.mxu0 0.0
      %2861 = vmatpush1.msra.mxu0 0.0
      %2862 = vmatprep.subr.mxu0 0.0
      %2863 = vmatpush1.msra.mxu0 0.0
      %2864 = vmatprep.subr.mxu0 0.0
      %2865 = vmatpush1.msra.mxu0 0.0
      %2866 = vmatprep.subr.mxu0 0.0
      %2867 = vmatpush1.msra.mxu0 0.0
      %2868 = vmatprep.subr.mxu0 0.0
      %2869 = vmatpush1.msra.mxu0 0.0
      %2870 = vmatprep.subr.mxu0 0.0
      %2871 = vmatpush1.msra.mxu0 0.0
      %2872 = vmatprep.subr.mxu0 0.0
      %2873 = vmatpush1.msra.mxu0 0.0
      %2874 = vmatprep.subr.mxu0 0.0
      %2875 = vmatpush1.msra.mxu0 0.0
      %2876 = vmatprep.subr.mxu0 0.0
      %2877 = vmatpush1.msra.mxu0 0.0
      %2878 = vmatprep.subr.mxu0 0.0
      %2879 = vmatpush1.msra.mxu0 0.0
      %2880 = vmatprep.subr.mxu0 0.0
      %2881 = vmatpush1.msra.mxu0 0.0
      %2882 = vmatprep.subr.mxu0 0.0
      %2883 = vmatpush1.msra.mxu0 0.0
      %2884 = vmatprep.subr.mxu0 0.0
      %2885 = vmatpush1.msra.mxu0 0.0
      %2886 = vmatprep.subr.mxu0 0.0
      %2887 = vmatpush1.msra.mxu0 0.0
      %2888 = vmatprep.subr.mxu0 0.0
      %2889 = vmatpush1.msra.mxu0 0.0
      %2890 = vmatprep.subr.mxu0 0.0
      %2891 = vmatpush1.msra.mxu0 %v2437
      %2892 = vmatprep.subr.mxu0 0.0
      %2893 = vmatpush2.msra.mxu0 0.0
      %2894 = vmatprep.subr.mxu0 0.0
      %2895 = vmatpush2.msra.mxu0 0.0
      %2896 = vmatprep.subr.mxu0 0.0
      %2897 = vmatpush2.msra.mxu0 0.0
      %2898 = vmatprep.subr.mxu0 0.0
      %2899 = vmatpush2.msra.mxu0 0.0
      %2900 = vmatprep.subr.mxu0 0.0
      %2901 = vmatpush2.msra.mxu0 0.0
      %2902 = vmatprep.subr.mxu0 0.0
      %2903 = vmatpush2.msra.mxu0 0.0
      %2904 = vmatprep.subr.mxu0 0.0
      %2905 = vmatpush2.msra.mxu0 0.0
      %2906 = vmatprep.subr.mxu0 0.0
      %2907 = vmatpush2.msra.mxu0 0.0
      %2908 = vmatprep.subr.mxu0 0.0
      %2909 = vmatpush2.msra.mxu0 0.0
      %2910 = vmatprep.subr.mxu0 0.0
      %2911 = vmatpush2.msra.mxu0 0.0
      %2912 = vmatprep.subr.mxu0 0.0
      %2913 = vmatpush2.msra.mxu0 0.0
      %2914 = vmatprep.subr.mxu0 0.0
      %2915 = vmatpush2.msra.mxu0 0.0
      %2916 = vmatprep.subr.mxu0 0.0
      %2917 = vmatpush2.msra.mxu0 0.0
      %2918 = vmatprep.subr.mxu0 0.0
      %2919 = vmatpush2.msra.mxu0 0.0
      %2920 = vmatprep.subr.mxu0 0.0
      %2921 = vmatpush2.msra.mxu0 0.0
      %2922 = vmatprep.subr.mxu0 0.0
      %2923 = vmatpush2.msra.mxu0 0.0
      %2924 = vmatprep.mubr.f32.mxu0 0.0
      %2925 = vmatmul.mubr.f32.gmra.mxu0 %v2858
      %v2926 = vpop.f32.mrf.mxu0
      %v2927 = vadd.f32 0.0, %v2926
      %v2928 = vpop.f32.mrf.mxu0
      %2929 = vdwg.mxu0
      %v2930 = vadd.f32 %v2688, %v2927
      %2931 = vrot.lane.b32.xlu0 %v2432, 112
      %v2932 = vpop.permute.xlu0 %2931
      %2933 = vrot.lane.b32.xlu0 %v2432, 80
      %v2934 = vpop.permute.xlu0 %2933
      %v2935 = vsel %vm1111, %v2932, 0
      %v2937 = vsel %vm1111, %v2934, 0
      %2939 = vmatprep.subr.mxu0 0.0
      %2940 = vmatpush1.xpose.msra.mxu0 0.0
      %2941 = vmatprep.subr.mxu0 0.0
      %2942 = vmatpush1.xpose.msra.mxu0 0.0
      %2943 = vmatprep.subr.mxu0 0.0
      %2944 = vmatpush1.xpose.msra.mxu0 0.0
      %2945 = vmatprep.subr.mxu0 0.0
      %2946 = vmatpush1.xpose.msra.mxu0 0.0
      %2947 = vmatprep.subr.mxu0 0.0
      %2948 = vmatpush1.xpose.msra.mxu0 0.0
      %2949 = vmatprep.subr.mxu0 0.0
      %2950 = vmatpush1.xpose.msra.mxu0 0.0
      %2951 = vmatprep.subr.mxu0 0.0
      %2952 = vmatpush1.xpose.msra.mxu0 0.0
      %2953 = vmatprep.subr.mxu0 0.0
      %2954 = vmatpush1.xpose.msra.mxu0 0.0
      %2955 = vmatprep.subr.mxu0 0.0
      %2956 = vmatpush1.xpose.msra.mxu0 0.0
      %2957 = vmatprep.subr.mxu0 0.0
      %2958 = vmatpush1.xpose.msra.mxu0 0.0
      %2959 = vmatprep.subr.mxu0 0.0
      %2960 = vmatpush1.xpose.msra.mxu0 0.0
      %2961 = vmatprep.subr.mxu0 0.0
      %2962 = vmatpush1.xpose.msra.mxu0 0.0
      %2963 = vmatprep.subr.mxu0 0.0
      %2964 = vmatpush1.xpose.msra.mxu0 0.0
      %2965 = vmatprep.subr.mxu0 0.0
      %2966 = vmatpush1.xpose.msra.mxu0 0.0
      %2967 = vmatprep.subr.mxu0 0.0
      %2968 = vmatpush1.xpose.msra.mxu0 0.0
      %2969 = vmatprep.subr.mxu0 0.0
      %2970 = vmatpush1.xpose.msra.mxu0 %v2937
      %2971 = vmatprep.subr.mxu0 0.0
      %2972 = vmatpush2.xpose.msra.mxu0 0.0
      %2973 = vmatprep.subr.mxu0 0.0
      %2974 = vmatpush2.xpose.msra.mxu0 0.0
      %2975 = vmatprep.subr.mxu0 0.0
      %2976 = vmatpush2.xpose.msra.mxu0 0.0
      %2977 = vmatprep.subr.mxu0 0.0
      %2978 = vmatpush2.xpose.msra.mxu0 0.0
      %2979 = vmatprep.subr.mxu0 0.0
      %2980 = vmatpush2.xpose.msra.mxu0 0.0
      %2981 = vmatprep.subr.mxu0 0.0
      %2982 = vmatpush2.xpose.msra.mxu0 0.0
      %2983 = vmatprep.subr.mxu0 0.0
      %2984 = vmatpush2.xpose.msra.mxu0 0.0
      %2985 = vmatprep.subr.mxu0 0.0
      %2986 = vmatpush2.xpose.msra.mxu0 0.0
      %2987 = vmatprep.subr.mxu0 0.0
      %2988 = vmatpush2.xpose.msra.mxu0 0.0
      %2989 = vmatprep.subr.mxu0 0.0
      %2990 = vmatpush2.xpose.msra.mxu0 0.0
      %2991 = vmatprep.subr.mxu0 0.0
      %2992 = vmatpush2.xpose.msra.mxu0 0.0
      %2993 = vmatprep.subr.mxu0 0.0
      %2994 = vmatpush2.xpose.msra.mxu0 0.0
      %2995 = vmatprep.subr.mxu0 0.0
      %2996 = vmatpush2.xpose.msra.mxu0 0.0
      %2997 = vmatprep.subr.mxu0 0.0
      %2998 = vmatpush2.xpose.msra.mxu0 0.0
      %2999 = vmatprep.subr.mxu0 0.0
      %3000 = vmatpush2.xpose.msra.mxu0 0.0
      %3001 = vmatprep.subr.mxu0 0.0
      %3002 = vmatpush2.xpose.msra.mxu0 0.0
      %3003 = vmatprep.mubr.f32.mxu0 0.0
      %3004 = vmatmul.mubr.f32.gmra.mxu0 %v2935
      %v3005 = vpop.f32.mrf.mxu0
      %v3006 = vadd.f32 0.0, %v3005
      %v3007 = vpop.f32.mrf.mxu0
      %3008 = vdwg.mxu0
      %v3009 = vmul.f32 %v3006, 0.35355338
      %v3010 = vmul.f32 %v3009, %v1688
      %v3011 = vadd.f32 %v3010, %v1692
      %v3012 = vsel %vm1111, %v3011, -inf
      %3013 = vmax.xlane.f32.xlu0 %v3012
      %v3014 = vpop.xlane.xlu0 %3013
      %v3015 = vsub.f32 %v3011, %v3014
      %v3016 = vmul.f32 %v3015, 1.442695
      %v3017 = vpow.pop %v3016
      %v3018 = vsel %vm1111, %v3017, 0.0
      %3019 = vadd.xlane.f32.xlu0 %v3018
      %v3020 = vpop.xlane.xlu0 %3019
      %v3021 = vrcp.pop %v3020
      %v3022 = vmul.f32 %v3017, %v3021
      %3023 = vrot.lane.b32.xlu0 %v2432, 48
      %v3024 = vpop.permute.xlu0 %3023
      %v3027 = vsel %vm1111, %v3022, 0
      %3029 = vmatprep.subr.mxu0 0.0
      %3030 = vmatpush1.msra.mxu0 0.0
      %3031 = vmatprep.subr.mxu0 0.0
      %3032 = vmatpush1.msra.mxu0 0.0
      %3033 = vmatprep.subr.mxu0 0.0
      %3034 = vmatpush1.msra.mxu0 0.0
      %3035 = vmatprep.subr.mxu0 0.0
      %3036 = vmatpush1.msra.mxu0 0.0
      %3037 = vmatprep.subr.mxu0 0.0
      %3038 = vmatpush1.msra.mxu0 0.0
      %3039 = vmatprep.subr.mxu0 0.0
      %3040 = vmatpush1.msra.mxu0 0.0
      %3041 = vmatprep.subr.mxu0 0.0
      %3042 = vmatpush1.msra.mxu0 0.0
      %3043 = vmatprep.subr.mxu0 0.0
      %3044 = vmatpush1.msra.mxu0 0.0
      %3045 = vmatprep.subr.mxu0 0.0
      %3046 = vmatpush1.msra.mxu0 0.0
      %3047 = vmatprep.subr.mxu0 0.0
      %3048 = vmatpush1.msra.mxu0 0.0
      %3049 = vmatprep.subr.mxu0 0.0
      %3050 = vmatpush1.msra.mxu0 0.0
      %3051 = vmatprep.subr.mxu0 0.0
      %3052 = vmatpush1.msra.mxu0 0.0
      %3053 = vmatprep.subr.mxu0 0.0
      %3054 = vmatpush1.msra.mxu0 0.0
      %3055 = vmatprep.subr.mxu0 0.0
      %3056 = vmatpush1.msra.mxu0 0.0
      %3057 = vmatprep.subr.mxu0 0.0
      %3058 = vmatpush1.msra.mxu0 0.0
      %3059 = vmatprep.subr.mxu0 0.0
      %3060 = vmatpush1.msra.mxu0 %v3024
      %3061 = vmatprep.subr.mxu0 0.0
      %3062 = vmatpush2.msra.mxu0 0.0
      %3063 = vmatprep.subr.mxu0 0.0
      %3064 = vmatpush2.msra.mxu0 0.0
      %3065 = vmatprep.subr.mxu0 0.0
      %3066 = vmatpush2.msra.mxu0 0.0
      %3067 = vmatprep.subr.mxu0 0.0
      %3068 = vmatpush2.msra.mxu0 0.0
      %3069 = vmatprep.subr.mxu0 0.0
      %3070 = vmatpush2.msra.mxu0 0.0
      %3071 = vmatprep.subr.mxu0 0.0
      %3072 = vmatpush2.msra.mxu0 0.0
      %3073 = vmatprep.subr.mxu0 0.0
      %3074 = vmatpush2.msra.mxu0 0.0
      %3075 = vmatprep.subr.mxu0 0.0
      %3076 = vmatpush2.msra.mxu0 0.0
      %3077 = vmatprep.subr.mxu0 0.0
      %3078 = vmatpush2.msra.mxu0 0.0
      %3079 = vmatprep.subr.mxu0 0.0
      %3080 = vmatpush2.msra.mxu0 0.0
      %3081 = vmatprep.subr.mxu0 0.0
      %3082 = vmatpush2.msra.mxu0 0.0
      %3083 = vmatprep.subr.mxu0 0.0
      %3084 = vmatpush2.msra.mxu0 0.0
      %3085 = vmatprep.subr.mxu0 0.0
      %3086 = vmatpush2.msra.mxu0 0.0
      %3087 = vmatprep.subr.mxu0 0.0
      %3088 = vmatpush2.msra.mxu0 0.0
      %3089 = vmatprep.subr.mxu0 0.0
      %3090 = vmatpush2.msra.mxu0 0.0
      %3091 = vmatprep.subr.mxu0 0.0
      %3092 = vmatpush2.msra.mxu0 0.0
      %3093 = vmatprep.mubr.f32.mxu0 0.0
      %3094 = vmatmul.mubr.f32.gmra.mxu0 %v3027
      %v3095 = vpop.f32.mrf.mxu0
      %v3096 = vadd.f32 0.0, %v3095
      %v3097 = vpop.f32.mrf.mxu0
      %3098 = vdwg.mxu0
      %v3100 = vsel %vm1111, %v3096, 0
      %3102 = vmatprep.subr.mxu0 0.0
      %3103 = vmatpush1.msra.mxu0 0.0
      %3104 = vmatprep.subr.mxu0 0.0
      %3105 = vmatpush1.msra.mxu0 0.0
      %3106 = vmatprep.subr.mxu0 0.0
      %3107 = vmatpush1.msra.mxu0 0.0
      %3108 = vmatprep.subr.mxu0 0.0
      %3109 = vmatpush1.msra.mxu0 0.0
      %3110 = vmatprep.subr.mxu0 0.0
      %3111 = vmatpush1.msra.mxu0 0.0
      %3112 = vmatprep.subr.mxu0 0.0
      %3113 = vmatpush1.msra.mxu0 0.0
      %3114 = vmatprep.subr.mxu0 0.0
      %3115 = vmatpush1.msra.mxu0 0.0
      %3116 = vmatprep.subr.mxu0 0.0
      %3117 = vmatpush1.msra.mxu0 0.0
      %3118 = vmatprep.subr.mxu0 0.0
      %3119 = vmatpush1.msra.mxu0 0.0
      %3120 = vmatprep.subr.mxu0 0.0
      %3121 = vmatpush1.msra.mxu0 0.0
      %3122 = vmatprep.subr.mxu0 0.0
      %3123 = vmatpush1.msra.mxu0 0.0
      %3124 = vmatprep.subr.mxu0 0.0
      %3125 = vmatpush1.msra.mxu0 0.0
      %3126 = vmatprep.subr.mxu0 0.0
      %3127 = vmatpush1.msra.mxu0 0.0
      %3128 = vmatprep.subr.mxu0 0.0
      %3129 = vmatpush1.msra.mxu0 0.0
      %3130 = vmatprep.subr.mxu0 0.0
      %3131 = vmatpush1.msra.mxu0 0.0
      %3132 = vmatprep.subr.mxu0 0.0
      %3133 = vmatpush1.msra.mxu0 %v2438
      %3134 = vmatprep.subr.mxu0 0.0
      %3135 = vmatpush2.msra.mxu0 0.0
      %3136 = vmatprep.subr.mxu0 0.0
      %3137 = vmatpush2.msra.mxu0 0.0
      %3138 = vmatprep.subr.mxu0 0.0
      %3139 = vmatpush2.msra.mxu0 0.0
      %3140 = vmatprep.subr.mxu0 0.0
      %3141 = vmatpush2.msra.mxu0 0.0
      %3142 = vmatprep.subr.mxu0 0.0
      %3143 = vmatpush2.msra.mxu0 0.0
      %3144 = vmatprep.subr.mxu0 0.0
      %3145 = vmatpush2.msra.mxu0 0.0
      %3146 = vmatprep.subr.mxu0 0.0
      %3147 = vmatpush2.msra.mxu0 0.0
      %3148 = vmatprep.subr.mxu0 0.0
      %3149 = vmatpush2.msra.mxu0 0.0
      %3150 = vmatprep.subr.mxu0 0.0
      %3151 = vmatpush2.msra.mxu0 0.0
      %3152 = vmatprep.subr.mxu0 0.0
      %3153 = vmatpush2.msra.mxu0 0.0
      %3154 = vmatprep.subr.mxu0 0.0
      %3155 = vmatpush2.msra.mxu0 0.0
      %3156 = vmatprep.subr.mxu0 0.0
      %3157 = vmatpush2.msra.mxu0 0.0
      %3158 = vmatprep.subr.mxu0 0.0
      %3159 = vmatpush2.msra.mxu0 0.0
      %3160 = vmatprep.subr.mxu0 0.0
      %3161 = vmatpush2.msra.mxu0 0.0
      %3162 = vmatprep.subr.mxu0 0.0
      %3163 = vmatpush2.msra.mxu0 0.0
      %3164 = vmatprep.subr.mxu0 0.0
      %3165 = vmatpush2.msra.mxu0 0.0
      %3166 = vmatprep.mubr.f32.mxu0 0.0
      %3167 = vmatmul.mubr.f32.gmra.mxu0 %v3100
      %v3168 = vpop.f32.mrf.mxu0
      %v3169 = vadd.f32 0.0, %v3168
      %v3170 = vpop.f32.mrf.mxu0
      %3171 = vdwg.mxu0
      %v3172 = vadd.f32 %v2930, %v3169
      %3173 = vrot.lane.b32.xlu0 %v2432, 104
      %v3174 = vpop.permute.xlu0 %3173
      %3175 = vrot.lane.b32.xlu0 %v2432, 72
      %v3176 = vpop.permute.xlu0 %3175
      %v3177 = vsel %vm1111, %v3174, 0
      %v3179 = vsel %vm1111, %v3176, 0
      %3181 = vmatprep.subr.mxu0 0.0
      %3182 = vmatpush1.xpose.msra.mxu0 0.0
      %3183 = vmatprep.subr.mxu0 0.0
      %3184 = vmatpush1.xpose.msra.mxu0 0.0
      %3185 = vmatprep.subr.mxu0 0.0
      %3186 = vmatpush1.xpose.msra.mxu0 0.0
      %3187 = vmatprep.subr.mxu0 0.0
      %3188 = vmatpush1.xpose.msra.mxu0 0.0
      %3189 = vmatprep.subr.mxu0 0.0
      %3190 = vmatpush1.xpose.msra.mxu0 0.0
      %3191 = vmatprep.subr.mxu0 0.0
      %3192 = vmatpush1.xpose.msra.mxu0 0.0
      %3193 = vmatprep.subr.mxu0 0.0
      %3194 = vmatpush1.xpose.msra.mxu0 0.0
      %3195 = vmatprep.subr.mxu0 0.0
      %3196 = vmatpush1.xpose.msra.mxu0 0.0
      %3197 = vmatprep.subr.mxu0 0.0
      %3198 = vmatpush1.xpose.msra.mxu0 0.0
      %3199 = vmatprep.subr.mxu0 0.0
      %3200 = vmatpush1.xpose.msra.mxu0 0.0
      %3201 = vmatprep.subr.mxu0 0.0
      %3202 = vmatpush1.xpose.msra.mxu0 0.0
      %3203 = vmatprep.subr.mxu0 0.0
      %3204 = vmatpush1.xpose.msra.mxu0 0.0
      %3205 = vmatprep.subr.mxu0 0.0
      %3206 = vmatpush1.xpose.msra.mxu0 0.0
      %3207 = vmatprep.subr.mxu0 0.0
      %3208 = vmatpush1.xpose.msra.mxu0 0.0
      %3209 = vmatprep.subr.mxu0 0.0
      %3210 = vmatpush1.xpose.msra.mxu0 0.0
      %3211 = vmatprep.subr.mxu0 0.0
      %3212 = vmatpush1.xpose.msra.mxu0 %v3179
      %3213 = vmatprep.subr.mxu0 0.0
      %3214 = vmatpush2.xpose.msra.mxu0 0.0
      %3215 = vmatprep.subr.mxu0 0.0
      %3216 = vmatpush2.xpose.msra.mxu0 0.0
      %3217 = vmatprep.subr.mxu0 0.0
      %3218 = vmatpush2.xpose.msra.mxu0 0.0
      %3219 = vmatprep.subr.mxu0 0.0
      %3220 = vmatpush2.xpose.msra.mxu0 0.0
      %3221 = vmatprep.subr.mxu0 0.0
      %3222 = vmatpush2.xpose.msra.mxu0 0.0
      %3223 = vmatprep.subr.mxu0 0.0
      %3224 = vmatpush2.xpose.msra.mxu0 0.0
      %3225 = vmatprep.subr.mxu0 0.0
      %3226 = vmatpush2.xpose.msra.mxu0 0.0
      %3227 = vmatprep.subr.mxu0 0.0
      %3228 = vmatpush2.xpose.msra.mxu0 0.0
      %3229 = vmatprep.subr.mxu0 0.0
      %3230 = vmatpush2.xpose.msra.mxu0 0.0
      %3231 = vmatprep.subr.mxu0 0.0
      %3232 = vmatpush2.xpose.msra.mxu0 0.0
      %3233 = vmatprep.subr.mxu0 0.0
      %3234 = vmatpush2.xpose.msra.mxu0 0.0
      %3235 = vmatprep.subr.mxu0 0.0
      %3236 = vmatpush2.xpose.msra.mxu0 0.0
      %3237 = vmatprep.subr.mxu0 0.0
      %3238 = vmatpush2.xpose.msra.mxu0 0.0
      %3239 = vmatprep.subr.mxu0 0.0
      %3240 = vmatpush2.xpose.msra.mxu0 0.0
      %3241 = vmatprep.subr.mxu0 0.0
      %3242 = vmatpush2.xpose.msra.mxu0 0.0
      %3243 = vmatprep.subr.mxu0 0.0
      %3244 = vmatpush2.xpose.msra.mxu0 0.0
      %3245 = vmatprep.mubr.f32.mxu0 0.0
      %3246 = vmatmul.mubr.f32.gmra.mxu0 %v3177
      %v3247 = vpop.f32.mrf.mxu0
      %v3248 = vadd.f32 0.0, %v3247
      %v3249 = vpop.f32.mrf.mxu0
      %3250 = vdwg.mxu0
      %v3251 = vmul.f32 %v3248, 0.35355338
      %v3252 = vmul.f32 %v3251, %v1936
      %v3253 = vadd.f32 %v3252, %v1940
      %v3254 = vsel %vm1111, %v3253, -inf
      %3255 = vmax.xlane.f32.xlu0 %v3254
      %v3256 = vpop.xlane.xlu0 %3255
      %v3257 = vsub.f32 %v3253, %v3256
      %v3258 = vmul.f32 %v3257, 1.442695
      %v3259 = vpow.pop %v3258
      %v3260 = vsel %vm1111, %v3259, 0.0
      %3261 = vadd.xlane.f32.xlu0 %v3260
      %v3262 = vpop.xlane.xlu0 %3261
      %v3263 = vrcp.pop %v3262
      %v3264 = vmul.f32 %v3259, %v3263
      %3265 = vrot.lane.b32.xlu0 %v2432, 40
      %v3266 = vpop.permute.xlu0 %3265
      %v3269 = vsel %vm1111, %v3264, 0
      %3271 = vmatprep.subr.mxu0 0.0
      %3272 = vmatpush1.msra.mxu0 0.0
      %3273 = vmatprep.subr.mxu0 0.0
      %3274 = vmatpush1.msra.mxu0 0.0
      %3275 = vmatprep.subr.mxu0 0.0
      %3276 = vmatpush1.msra.mxu0 0.0
      %3277 = vmatprep.subr.mxu0 0.0
      %3278 = vmatpush1.msra.mxu0 0.0
      %3279 = vmatprep.subr.mxu0 0.0
      %3280 = vmatpush1.msra.mxu0 0.0
      %3281 = vmatprep.subr.mxu0 0.0
      %3282 = vmatpush1.msra.mxu0 0.0
      %3283 = vmatprep.subr.mxu0 0.0
      %3284 = vmatpush1.msra.mxu0 0.0
      %3285 = vmatprep.subr.mxu0 0.0
      %3286 = vmatpush1.msra.mxu0 0.0
      %3287 = vmatprep.subr.mxu0 0.0
      %3288 = vmatpush1.msra.mxu0 0.0
      %3289 = vmatprep.subr.mxu0 0.0
      %3290 = vmatpush1.msra.mxu0 0.0
      %3291 = vmatprep.subr.mxu0 0.0
      %3292 = vmatpush1.msra.mxu0 0.0
      %3293 = vmatprep.subr.mxu0 0.0
      %3294 = vmatpush1.msra.mxu0 0.0
      %3295 = vmatprep.subr.mxu0 0.0
      %3296 = vmatpush1.msra.mxu0 0.0
      %3297 = vmatprep.subr.mxu0 0.0
      %3298 = vmatpush1.msra.mxu0 0.0
      %3299 = vmatprep.subr.mxu0 0.0
      %3300 = vmatpush1.msra.mxu0 0.0
      %3301 = vmatprep.subr.mxu0 0.0
      %3302 = vmatpush1.msra.mxu0 %v3266
      %3303 = vmatprep.subr.mxu0 0.0
      %3304 = vmatpush2.msra.mxu0 0.0
      %3305 = vmatprep.subr.mxu0 0.0
      %3306 = vmatpush2.msra.mxu0 0.0
      %3307 = vmatprep.subr.mxu0 0.0
      %3308 = vmatpush2.msra.mxu0 0.0
      %3309 = vmatprep.subr.mxu0 0.0
      %3310 = vmatpush2.msra.mxu0 0.0
      %3311 = vmatprep.subr.mxu0 0.0
      %3312 = vmatpush2.msra.mxu0 0.0
      %3313 = vmatprep.subr.mxu0 0.0
      %3314 = vmatpush2.msra.mxu0 0.0
      %3315 = vmatprep.subr.mxu0 0.0
      %3316 = vmatpush2.msra.mxu0 0.0
      %3317 = vmatprep.subr.mxu0 0.0
      %3318 = vmatpush2.msra.mxu0 0.0
      %3319 = vmatprep.subr.mxu0 0.0
      %3320 = vmatpush2.msra.mxu0 0.0
      %3321 = vmatprep.subr.mxu0 0.0
      %3322 = vmatpush2.msra.mxu0 0.0
      %3323 = vmatprep.subr.mxu0 0.0
      %3324 = vmatpush2.msra.mxu0 0.0
      %3325 = vmatprep.subr.mxu0 0.0
      %3326 = vmatpush2.msra.mxu0 0.0
      %3327 = vmatprep.subr.mxu0 0.0
      %3328 = vmatpush2.msra.mxu0 0.0
      %3329 = vmatprep.subr.mxu0 0.0
      %3330 = vmatpush2.msra.mxu0 0.0
      %3331 = vmatprep.subr.mxu0 0.0
      %3332 = vmatpush2.msra.mxu0 0.0
      %3333 = vmatprep.subr.mxu0 0.0
      %3334 = vmatpush2.msra.mxu0 0.0
      %3335 = vmatprep.mubr.f32.mxu0 0.0
      %3336 = vmatmul.mubr.f32.gmra.mxu0 %v3269
      %v3337 = vpop.f32.mrf.mxu0
      %v3338 = vadd.f32 0.0, %v3337
      %v3339 = vpop.f32.mrf.mxu0
      %3340 = vdwg.mxu0
      %v3342 = vsel %vm1111, %v3338, 0
      %3344 = vmatprep.subr.mxu0 0.0
      %3345 = vmatpush1.msra.mxu0 0.0
      %3346 = vmatprep.subr.mxu0 0.0
      %3347 = vmatpush1.msra.mxu0 0.0
      %3348 = vmatprep.subr.mxu0 0.0
      %3349 = vmatpush1.msra.mxu0 0.0
      %3350 = vmatprep.subr.mxu0 0.0
      %3351 = vmatpush1.msra.mxu0 0.0
      %3352 = vmatprep.subr.mxu0 0.0
      %3353 = vmatpush1.msra.mxu0 0.0
      %3354 = vmatprep.subr.mxu0 0.0
      %3355 = vmatpush1.msra.mxu0 0.0
      %3356 = vmatprep.subr.mxu0 0.0
      %3357 = vmatpush1.msra.mxu0 0.0
      %3358 = vmatprep.subr.mxu0 0.0
      %3359 = vmatpush1.msra.mxu0 0.0
      %3360 = vmatprep.subr.mxu0 0.0
      %3361 = vmatpush1.msra.mxu0 0.0
      %3362 = vmatprep.subr.mxu0 0.0
      %3363 = vmatpush1.msra.mxu0 0.0
      %3364 = vmatprep.subr.mxu0 0.0
      %3365 = vmatpush1.msra.mxu0 0.0
      %3366 = vmatprep.subr.mxu0 0.0
      %3367 = vmatpush1.msra.mxu0 0.0
      %3368 = vmatprep.subr.mxu0 0.0
      %3369 = vmatpush1.msra.mxu0 0.0
      %3370 = vmatprep.subr.mxu0 0.0
      %3371 = vmatpush1.msra.mxu0 0.0
      %3372 = vmatprep.subr.mxu0 0.0
      %3373 = vmatpush1.msra.mxu0 0.0
      %3374 = vmatprep.subr.mxu0 0.0
      %3375 = vmatpush1.msra.mxu0 %v2439
      %3376 = vmatprep.subr.mxu0 0.0
      %3377 = vmatpush2.msra.mxu0 0.0
      %3378 = vmatprep.subr.mxu0 0.0
      %3379 = vmatpush2.msra.mxu0 0.0
      %3380 = vmatprep.subr.mxu0 0.0
      %3381 = vmatpush2.msra.mxu0 0.0
      %3382 = vmatprep.subr.mxu0 0.0
      %3383 = vmatpush2.msra.mxu0 0.0
      %3384 = vmatprep.subr.mxu0 0.0
      %3385 = vmatpush2.msra.mxu0 0.0
      %3386 = vmatprep.subr.mxu0 0.0
      %3387 = vmatpush2.msra.mxu0 0.0
      %3388 = vmatprep.subr.mxu0 0.0
      %3389 = vmatpush2.msra.mxu0 0.0
      %3390 = vmatprep.subr.mxu0 0.0
      %3391 = vmatpush2.msra.mxu0 0.0
      %3392 = vmatprep.subr.mxu0 0.0
      %3393 = vmatpush2.msra.mxu0 0.0
      %3394 = vmatprep.subr.mxu0 0.0
      %3395 = vmatpush2.msra.mxu0 0.0
      %3396 = vmatprep.subr.mxu0 0.0
      %3397 = vmatpush2.msra.mxu0 0.0
      %3398 = vmatprep.subr.mxu0 0.0
      %3399 = vmatpush2.msra.mxu0 0.0
      %3400 = vmatprep.subr.mxu0 0.0
      %3401 = vmatpush2.msra.mxu0 0.0
      %3402 = vmatprep.subr.mxu0 0.0
      %3403 = vmatpush2.msra.mxu0 0.0
      %3404 = vmatprep.subr.mxu0 0.0
      %3405 = vmatpush2.msra.mxu0 0.0
      %3406 = vmatprep.subr.mxu0 0.0
      %3407 = vmatpush2.msra.mxu0 0.0
      %3408 = vmatprep.mubr.f32.mxu0 0.0
      %3409 = vmatmul.mubr.f32.gmra.mxu0 %v3342
      %v3410 = vpop.f32.mrf.mxu0
      %v3411 = vadd.f32 0.0, %v3410
      %v3412 = vpop.f32.mrf.mxu0
      %3413 = vdwg.mxu0
      %v3414 = vadd.f32 %v3172, %v3411
      %v3415 = vadd.f32 %v2317, %v3414
      %s3416 = scalar_lea.vmem %s14, 1
      %v3417 = vld [vmem:[%s3416] sm:$0x1]
      %s3418 = scalar_lea.vmem %s15, 1
      %v3419 = vld [vmem:[%s3418] sm:$0x1]
      %v3420 = vsel %vm990, %v3415, 0.0
      %3421 = vadd.xlane.f32.xlu0 %v3420
      %v3422 = vpop.xlane.xlu0 %3421
      %v3423 = vmul.f32 %v3422, %v994
      %v3424 = vsub.f32 %v3415, %v3423
      %v3425 = vmul.f32 %v3424, %v3424
      %v3426 = vsel %vm990, %v3425, 0.0
      %3427 = vadd.xlane.f32.xlu0 %v3426
      %v3428 = vpop.xlane.xlu0 %3427
      %v3429 = vmul.f32 %v3428, %v994
      %v3430 = vadd.f32 %v3429, 1e-05
      %v3431 = vrsqrt.pop %v3430
      %v3432 = vmul.f32 %v3424, %v3431
      %v3434 = vlaneseq
      %v3435 = vshrl.u32 %v3434, 7
      %v3436 = vsub.s32 0, %v3435
      %v3437 = vrot.slane %v3417, %v3436
      %v3439 = vmul.f32 %v3432, %v3437
      %v3441 = vlaneseq
      %v3442 = vshrl.u32 %v3441, 7
      %v3443 = vsub.s32 0, %v3442
      %v3444 = vrot.slane %v3419, %v3443
      %v3446 = vadd.f32 %v3439, %v3444
      %s3447 = scalar_lea.vmem %s16, 32
      %v3448 = vld [vmem:[%s3447] sm:$0xff]
      %v3449 = vld [vmem:[%s3447 + $0x8] sm:$0xff]
      %v3450 = vld [vmem:[%s3447 + $0x10] sm:$0xff]
      %v3451 = vld [vmem:[%s3447 + $0x18] sm:$0xff]
      %s3452 = scalar_lea.vmem %s17, 1
      %v3453 = vld [vmem:[%s3452] sm:$0x1]
      %v3455 = vlaneseq
      %v3456 = vshrl.u32 %v3455, 7
      %v3457 = vsub.s32 0, %v3456
      %v3458 = vrot.slane %v3453, %v3457
      %v3461 = vsel %vm990, %v3446, 0
      %3463 = vmatprep.subr.mxu0 0.0
      %3464 = vmatpush1.msra.mxu0 0.0
      %3465 = vmatprep.subr.mxu0 0.0
      %3466 = vmatpush1.msra.mxu0 0.0
      %3467 = vmatprep.subr.mxu0 0.0
      %3468 = vmatpush1.msra.mxu0 0.0
      %3469 = vmatprep.subr.mxu0 0.0
      %3470 = vmatpush1.msra.mxu0 0.0
      %3471 = vmatprep.subr.mxu0 0.0
      %3472 = vmatpush1.msra.mxu0 0.0
      %3473 = vmatprep.subr.mxu0 0.0
      %3474 = vmatpush1.msra.mxu0 0.0
      %3475 = vmatprep.subr.mxu0 0.0
      %3476 = vmatpush1.msra.mxu0 0.0
      %3477 = vmatprep.subr.mxu0 0.0
      %3478 = vmatpush1.msra.mxu0 0.0
      %3479 = vmatprep.subr.mxu0 0.0
      %3480 = vmatpush1.msra.mxu0 0.0
      %3481 = vmatprep.subr.mxu0 0.0
      %3482 = vmatpush1.msra.mxu0 0.0
      %3483 = vmatprep.subr.mxu0 0.0
      %3484 = vmatpush1.msra.mxu0 0.0
      %3485 = vmatprep.subr.mxu0 0.0
      %3486 = vmatpush1.msra.mxu0 0.0
      %3487 = vmatprep.subr.mxu0 0.0
      %3488 = vmatpush1.msra.mxu0 %v3451
      %3489 = vmatprep.subr.mxu0 0.0
      %3490 = vmatpush1.msra.mxu0 %v3450
      %3491 = vmatprep.subr.mxu0 0.0
      %3492 = vmatpush1.msra.mxu0 %v3449
      %3493 = vmatprep.subr.mxu0 0.0
      %3494 = vmatpush1.msra.mxu0 %v3448
      %3495 = vmatprep.subr.mxu0 0.0
      %3496 = vmatpush2.msra.mxu0 0.0
      %3497 = vmatprep.subr.mxu0 0.0
      %3498 = vmatpush2.msra.mxu0 0.0
      %3499 = vmatprep.subr.mxu0 0.0
      %3500 = vmatpush2.msra.mxu0 0.0
      %3501 = vmatprep.subr.mxu0 0.0
      %3502 = vmatpush2.msra.mxu0 0.0
      %3503 = vmatprep.subr.mxu0 0.0
      %3504 = vmatpush2.msra.mxu0 0.0
      %3505 = vmatprep.subr.mxu0 0.0
      %3506 = vmatpush2.msra.mxu0 0.0
      %3507 = vmatprep.subr.mxu0 0.0
      %3508 = vmatpush2.msra.mxu0 0.0
      %3509 = vmatprep.subr.mxu0 0.0
      %3510 = vmatpush2.msra.mxu0 0.0
      %3511 = vmatprep.subr.mxu0 0.0
      %3512 = vmatpush2.msra.mxu0 0.0
      %3513 = vmatprep.subr.mxu0 0.0
      %3514 = vmatpush2.msra.mxu0 0.0
      %3515 = vmatprep.subr.mxu0 0.0
      %3516 = vmatpush2.msra.mxu0 0.0
      %3517 = vmatprep.subr.mxu0 0.0
      %3518 = vmatpush2.msra.mxu0 0.0
      %3519 = vmatprep.subr.mxu0 0.0
      %3520 = vmatpush2.msra.mxu0 0.0
      %3521 = vmatprep.subr.mxu0 0.0
      %3522 = vmatpush2.msra.mxu0 0.0
      %3523 = vmatprep.subr.mxu0 0.0
      %3524 = vmatpush2.msra.mxu0 0.0
      %3525 = vmatprep.subr.mxu0 0.0
      %3526 = vmatpush2.msra.mxu0 0.0
      %3527 = vmatprep.mubr.f32.mxu0 0.0
      %3528 = vmatmul.mubr.f32.gmra.mxu0 %v3461
      %v3529 = vpop.f32.mrf.mxu0
      %v3530 = vadd.f32 %v3458, %v3529
      %v3531 = vpop.f32.mrf.mxu0
      %3532 = vdwg.mxu0
      %v3533 = vmul.f32 %v3530, %v3530
      %v3534 = vmul.f32 %v3530, %v3533
      %v3535 = vmul.f32 %v3534, 0.044715
      %v3536 = vadd.f32 %v3530, %v3535
      %v3537 = vmul.f32 %v3536, 0.7978846
      %v3538 = vtanh.pop %v3537
      %v3539 = vadd.f32 %v3538, 1.0
      %v3540 = vmul.f32 %v3539, 0.5
      %v3541 = vmul.f32 %v3530, %v3540
      %s3542 = scalar_lea.vmem %s18, 64
      %v3543 = vld [vmem:[%s3542] sm:$0xff]
      %v3544 = vld [vmem:[%s3542 + $0x8] sm:$0xff]
      %v3545 = vld [vmem:[%s3542 + $0x10] sm:$0xff]
      %v3546 = vld [vmem:[%s3542 + $0x18] sm:$0xff]
      %v3547 = vld [vmem:[%s3542 + $0x20] sm:$0xff]
      %v3548 = vld [vmem:[%s3542 + $0x28] sm:$0xff]
      %v3549 = vld [vmem:[%s3542 + $0x30] sm:$0xff]
      %v3550 = vld [vmem:[%s3542 + $0x38] sm:$0xff]
      %v3552 = vsel %vm2235, %v3541, 0
      %3554 = vmatprep.subr.mxu0 0.0
      %3555 = vmatpush1.msra.mxu0 0.0
      %3556 = vmatprep.subr.mxu0 0.0
      %3557 = vmatpush1.msra.mxu0 0.0
      %3558 = vmatprep.subr.mxu0 0.0
      %3559 = vmatpush1.msra.mxu0 0.0
      %3560 = vmatprep.subr.mxu0 0.0
      %3561 = vmatpush1.msra.mxu0 0.0
      %3562 = vmatprep.subr.mxu0 0.0
      %3563 = vmatpush1.msra.mxu0 0.0
      %3564 = vmatprep.subr.mxu0 0.0
      %3565 = vmatpush1.msra.mxu0 0.0
      %3566 = vmatprep.subr.mxu0 0.0
      %3567 = vmatpush1.msra.mxu0 0.0
      %3568 = vmatprep.subr.mxu0 0.0
      %3569 = vmatpush1.msra.mxu0 0.0
      %3570 = vmatprep.subr.mxu0 0.0
      %3571 = vmatpush1.msra.mxu0 %v3550
      %3572 = vmatprep.subr.mxu0 0.0
      %3573 = vmatpush1.msra.mxu0 %v3549
      %3574 = vmatprep.subr.mxu0 0.0
      %3575 = vmatpush1.msra.mxu0 %v3548
      %3576 = vmatprep.subr.mxu0 0.0
      %3577 = vmatpush1.msra.mxu0 %v3547
      %3578 = vmatprep.subr.mxu0 0.0
      %3579 = vmatpush1.msra.mxu0 %v3546
      %3580 = vmatprep.subr.mxu0 0.0
      %3581 = vmatpush1.msra.mxu0 %v3545
      %3582 = vmatprep.subr.mxu0 0.0
      %3583 = vmatpush1.msra.mxu0 %v3544
      %3584 = vmatprep.subr.mxu0 0.0
      %3585 = vmatpush1.msra.mxu0 %v3543
      %3586 = vmatprep.subr.mxu0 0.0
      %3587 = vmatpush2.msra.mxu0 0.0
      %3588 = vmatprep.subr.mxu0 0.0
      %3589 = vmatpush2.msra.mxu0 0.0
      %3590 = vmatprep.subr.mxu0 0.0
      %3591 = vmatpush2.msra.mxu0 0.0
      %3592 = vmatprep.subr.mxu0 0.0
      %3593 = vmatpush2.msra.mxu0 0.0
      %3594 = vmatprep.subr.mxu0 0.0
      %3595 = vmatpush2.msra.mxu0 0.0
      %3596 = vmatprep.subr.mxu0 0.0
      %3597 = vmatpush2.msra.mxu0 0.0
      %3598 = vmatprep.subr.mxu0 0.0
      %3599 = vmatpush2.msra.mxu0 0.0
      %3600 = vmatprep.subr.mxu0 0.0
      %3601 = vmatpush2.msra.mxu0 0.0
      %3602 = vmatprep.subr.mxu0 0.0
      %3603 = vmatpush2.msra.mxu0 0.0
      %3604 = vmatprep.subr.mxu0 0.0
      %3605 = vmatpush2.msra.mxu0 0.0
      %3606 = vmatprep.subr.mxu0 0.0
      %3607 = vmatpush2.msra.mxu0 0.0
      %3608 = vmatprep.subr.mxu0 0.0
      %3609 = vmatpush2.msra.mxu0 0.0
      %3610 = vmatprep.subr.mxu0 0.0
      %3611 = vmatpush2.msra.mxu0 0.0
      %3612 = vmatprep.subr.mxu0 0.0
      %3613 = vmatpush2.msra.mxu0 0.0
      %3614 = vmatprep.subr.mxu0 0.0
      %3615 = vmatpush2.msra.mxu0 0.0
      %3616 = vmatprep.subr.mxu0 0.0
      %3617 = vmatpush2.msra.mxu0 0.0
      %3618 = vmatprep.mubr.f32.mxu0 0.0
      %3619 = vmatmul.mubr.f32.gmra.mxu0 %v3552
      %v3620 = vpop.f32.mrf.mxu0
      %v3621 = vadd.f32 0.0, %v3620
      %v3622 = vpop.f32.mrf.mxu0
      %3623 = vdwg.mxu0
      %v3624 = vadd.f32 %v3415, %v3621
      %s3625 = scalar_lea.vmem %s19, 1
      %v3626 = vld [vmem:[%s3625] sm:$0x1]
      %v3628 = vlaneseq
      %v3629 = vshrl.u32 %v3628, 7
      %v3630 = vsub.s32 0, %v3629
      %v3631 = vrot.slane %v3626, %v3630
      %v3633 = vadd.f32 %v3624, %v3631
      %v3634 = vld [vmem:[%s20] sm:$0xff]
      %v3635 = vld [vmem:[%s20 + $0x8] sm:$0xff]
      %v3636 = vld [vmem:[%s20 + $0x10] sm:$0xff]
      %v3637 = vld [vmem:[%s20 + $0x18] sm:$0xff]
      %v3638 = vld [vmem:[%s21] sm:$0x1]
      %v3640 = vlaneseq
      %v3641 = vshrl.u32 %v3640, 7
      %v3642 = vsub.s32 0, %v3641
      %v3643 = vrot.slane %v3638, %v3642
      %v3646 = vsel %vm990, %v3633, 0
      %3648 = vmatprep.subr.mxu0 0.0
      %3649 = vmatpush1.msra.mxu0 0.0
      %3650 = vmatprep.subr.mxu0 0.0
      %3651 = vmatpush1.msra.mxu0 0.0
      %3652 = vmatprep.subr.mxu0 0.0
      %3653 = vmatpush1.msra.mxu0 0.0
      %3654 = vmatprep.subr.mxu0 0.0
      %3655 = vmatpush1.msra.mxu0 0.0
      %3656 = vmatprep.subr.mxu0 0.0
      %3657 = vmatpush1.msra.mxu0 0.0
      %3658 = vmatprep.subr.mxu0 0.0
      %3659 = vmatpush1.msra.mxu0 0.0
      %3660 = vmatprep.subr.mxu0 0.0
      %3661 = vmatpush1.msra.mxu0 0.0
      %3662 = vmatprep.subr.mxu0 0.0
      %3663 = vmatpush1.msra.mxu0 0.0
      %3664 = vmatprep.subr.mxu0 0.0
      %3665 = vmatpush1.msra.mxu0 0.0
      %3666 = vmatprep.subr.mxu0 0.0
      %3667 = vmatpush1.msra.mxu0 0.0
      %3668 = vmatprep.subr.mxu0 0.0
      %3669 = vmatpush1.msra.mxu0 0.0
      %3670 = vmatprep.subr.mxu0 0.0
      %3671 = vmatpush1.msra.mxu0 0.0
      %3672 = vmatprep.subr.mxu0 0.0
      %3673 = vmatpush1.msra.mxu0 %v3637
      %3674 = vmatprep.subr.mxu0 0.0
      %3675 = vmatpush1.msra.mxu0 %v3636
      %3676 = vmatprep.subr.mxu0 0.0
      %3677 = vmatpush1.msra.mxu0 %v3635
      %3678 = vmatprep.subr.mxu0 0.0
      %3679 = vmatpush1.msra.mxu0 %v3634
      %3680 = vmatprep.subr.mxu0 0.0
      %3681 = vmatpush2.msra.mxu0 0.0
      %3682 = vmatprep.subr.mxu0 0.0
      %3683 = vmatpush2.msra.mxu0 0.0
      %3684 = vmatprep.subr.mxu0 0.0
      %3685 = vmatpush2.msra.mxu0 0.0
      %3686 = vmatprep.subr.mxu0 0.0
      %3687 = vmatpush2.msra.mxu0 0.0
      %3688 = vmatprep.subr.mxu0 0.0
      %3689 = vmatpush2.msra.mxu0 0.0
      %3690 = vmatprep.subr.mxu0 0.0
      %3691 = vmatpush2.msra.mxu0 0.0
      %3692 = vmatprep.subr.mxu0 0.0
      %3693 = vmatpush2.msra.mxu0 0.0
      %3694 = vmatprep.subr.mxu0 0.0
      %3695 = vmatpush2.msra.mxu0 0.0
      %3696 = vmatprep.subr.mxu0 0.0
      %3697 = vmatpush2.msra.mxu0 0.0
      %3698 = vmatprep.subr.mxu0 0.0
      %3699 = vmatpush2.msra.mxu0 0.0
      %3700 = vmatprep.subr.mxu0 0.0
      %3701 = vmatpush2.msra.mxu0 0.0
      %3702 = vmatprep.subr.mxu0 0.0
      %3703 = vmatpush2.msra.mxu0 0.0
      %3704 = vmatprep.subr.mxu0 0.0
      %3705 = vmatpush2.msra.mxu0 0.0
      %3706 = vmatprep.subr.mxu0 0.0
      %3707 = vmatpush2.msra.mxu0 0.0
      %3708 = vmatprep.subr.mxu0 0.0
      %3709 = vmatpush2.msra.mxu0 0.0
      %3710 = vmatprep.subr.mxu0 0.0
      %3711 = vmatpush2.msra.mxu0 0.0
      %3712 = vmatprep.mubr.f32.mxu0 0.0
      %3713 = vmatmul.mubr.f32.gmra.mxu0 %v3646
      %v3714 = vpop.f32.mrf.mxu0
      %v3715 = vadd.f32 %v3643, %v3714
      %v3716 = vpop.f32.mrf.mxu0
      %3717 = vdwg.mxu0
      %vm3718 = vcmask 23552
      %3719 = vst.msk [vmem:[%s695] sm:$0xff] %vm3718, %v3715
      %p3720 = scmp.lt.s32.totalorder %s33, 1
      %s3721 = scalar_select %p3720, %s33, 1
      %s3722 = smul.addr %s3721, 8
      %s3723 = scalar_lea.vmem %s22, %s3722
      // Predicated region
      $region109: #{rpe_transformer_forward.1} parent=107 // pred_check
        %p3724 = pneg %p523
      $region110: #{rpe_transformer_forward.1} parent=107 // pred_check_branch
        %3726 = sbr.rel (%p3724) target = $region112
      $region111: #{rpe_transformer_forward.1} parent=107 // pred_region
        _
      $region112: #{rpe_transformer_forward.1} parent=107 // pred_fallthru
        _
    $region108: #{rpe_transformer_forward.1} parent=5 // pred_fallthru
      _
    %p3727 = scmp.le.s32.totalorder 2, %s28
    // Predicated region
    $region113: #{rpe_transformer_forward.1} parent=5 // pred_check
      %p3728 = pneg %p3727
    $region114: #{rpe_transformer_forward.1} parent=5 // pred_check_branch
      %3730 = sbr.rel (%p3728) target = $region116
    $region115: #{rpe_transformer_forward.1} parent=5 // pred_region
      %s3731 = ssub.s32 %s28, 2
      // Predicated region
      $region117: #{rpe_transformer_forward.1} parent=115 // pred_check
        %p3732 = pneg %p529
      $region118: #{rpe_transformer_forward.1} parent=115 // pred_check_branch
        %3734 = sbr.rel (%p3732) target = $region120
      $region119: #{rpe_transformer_forward.1} parent=115 // pred_region
        %p3735 = scmp.lt.s32.totalorder %s34, 1
        %s3736 = scalar_select %p3735, %s34, 1
        %s3737 = smul.addr %s3736, 8
        %s3738 = scalar_lea.vmem %s22, %s3737
      $region120: #{rpe_transformer_forward.1} parent=115 // pred_fallthru
        _
    $region116: #{rpe_transformer_forward.1} parent=5 // pred_fallthru
      _
  $region6: #{rpe_transformer_forward.1} parent=0 // loop_footer
    %s32 = sadd.s32 1, %s28
  $region7: #{rpe_transformer_forward.1} parent=0 // loop_footer_branch
    %27 = sbr.rel target = $region3
  $region8: #{rpe_transformer_forward.1} parent=0 // loop_exit
    _

</llo_original>
